<compile_context>
chip_gen: v7x
topology: tpu7x:2x2x1
jax: 0.10.0
libtpu: 0.0.40
codegen_flags: <defaults>
</compile_context>

<pallas_src>
import math

import jax
import jax.numpy as jnp
from jax.experimental import pallas as pl
from jax.experimental.pallas import tpu as pltpu

# ---------------- model hyper-params (small, consistent with the module) ----------------
D_MODEL = 32
NUM_HEADS = 4
NUM_LAYERS = 2
FFN_MUL = 4
HEAD_DIM = D_MODEL // NUM_HEADS
D_FF = D_MODEL * FFN_MUL
LN_EPS = 1e-5
NEG_BIG = 1e30


def _layer_norm(x, gamma, beta, eps=LN_EPS):
    # single-pass statistics: the two cross-lane reductions are independent
    mean = jnp.mean(x, axis=-1, keepdims=True)
    mean_sq = jnp.mean(x * x, axis=-1, keepdims=True)
    var = mean_sq - mean * mean
    return (x - mean) * jax.lax.rsqrt(var + eps) * gamma + beta


def _graph_encoder_kernel(qcode_ref, kcode_ref, x_ref, wa_ref, w2_ref, vec_ref, o_ref):
    """Fused multi-layer post-norm transformer encoder over the folded batch.

    qcode_ref : (N, 1) int32  batch id of each (query) token,        N = B * L
    kcode_ref : (1, N) int32  batch id of each key if valid, else -1
    x_ref     : (N, D)        folded activations
    wa_ref    : (NUM_LAYERS, D, 8D)   packed [Wqkv^T | Wo^T | W1^T] (q-scale folded in)
    w2_ref    : (NUM_LAYERS, 4D, D)   W2^T
    vec_ref   : (NUM_LAYERS, 8, 128)  packed biases + LayerNorm params
    """
    x = x_ref[...]                                   # (N, D)

    # Additive attention bias built in-kernel from O(N) codes, hoisted out of the
    # layer loop: 0 where (same batch AND valid key), -1e30 otherwise.
    allowed = qcode_ref[...] == kcode_ref[...]       # (N,1) vs (1,N) -> (N, N) bool
    bias = jnp.where(allowed, 0.0, -NEG_BIG)         # (N, N) f32

    num_layers = wa_ref.shape[0]
    for layer in range(num_layers):                  # static unrolled layer loop
        wa = wa_ref[layer]                           # (D, 8D)
        wqkv = wa[:, :3 * D_MODEL]                   # (D, 3D)   q-scale pre-folded
        wo = wa[:, 3 * D_MODEL:4 * D_MODEL]          # (D, D)
        w1 = wa[:, 4 * D_MODEL:8 * D_MODEL]          # (D, 4D)
        w2 = w2_ref[layer]                           # (4D, D)

        vec = vec_ref[layer]                         # (8, 128) packed small vectors
        bqkv = vec[0:1, :3 * D_MODEL]
        bo = vec[1:2, :D_MODEL]
        b1 = vec[2:3, :D_FF]
        b2 = vec[3:4, :D_MODEL]
        ln1g = vec[4:5, :D_MODEL]
        ln1b = vec[5:6, :D_MODEL]
        ln2g = vec[6:7, :D_MODEL]
        ln2b = vec[7:8, :D_MODEL]

        # --- multi-head self attention (batch folded, heads via lane slices) ---
        qkv = jnp.dot(x, wqkv, preferred_element_type=jnp.float32) + bqkv   # (N, 3D)

        ctx_parts = []
        for h in range(NUM_HEADS):
            qh = qkv[:, h * HEAD_DIM:(h + 1) * HEAD_DIM]                         # (N, Dh)
            kh = qkv[:, D_MODEL + h * HEAD_DIM:D_MODEL + (h + 1) * HEAD_DIM]     # (N, Dh)
            vh = qkv[:, 2 * D_MODEL + h * HEAD_DIM:2 * D_MODEL + (h + 1) * HEAD_DIM]

            # q . k^T as a direct contraction over the head dim (no transpose op)
            s = jax.lax.dot_general(qh, kh, (((1,), (1,)), ((), ())),
                                    preferred_element_type=jnp.float32)          # (N, N)
            s = s + bias
            m = jnp.max(s, axis=-1, keepdims=True)
            e = jnp.exp(s - m)
            p = e / jnp.sum(e, axis=-1, keepdims=True)          # exact divide (precision)
            ctx_parts.append(jnp.dot(p, vh, preferred_element_type=jnp.float32))  # (N, Dh)

        # merged output projection: one lane concat + one K=32 MXU pass
        ctx = jnp.concatenate(ctx_parts, axis=-1)                                 # (N, D)
        attn = jnp.dot(ctx, wo, preferred_element_type=jnp.float32) + bo          # (N, D)

        # residual + LayerNorm1 (dropout identity in eval)
        x = _layer_norm(x + attn, ln1g, ln1b)

        # --- feed-forward (ReLU) ---
        h1 = jnp.maximum(jnp.dot(x, w1, preferred_element_type=jnp.float32) + b1, 0.0)  # (N, 4D)
        ff = jnp.dot(h1, w2, preferred_element_type=jnp.float32) + b2                   # (N, D)

        # residual + LayerNorm2
        x = _layer_norm(x + ff, ln2g, ln2b)

    # TODO(synk): output last dim stays D=32 (<128 lanes) -> masked vst; lane-dense
    # repack only worth it if N*D grows.
    # TODO(synk): if B*L grows, switch attention to per-graph (B,H,L,L) tiles / a
    # 'parallel' batch grid axis (v7x dual-TC) instead of the folded (N,N) scores.
    o_ref[...] = x


def _full_spec(shape):
    nd = len(shape)
    return pl.BlockSpec(shape, lambda i, _nd=nd: (0,) * _nd)


# ---------------- parameter initialization (deterministic, synthetic, pre-packed) ----------------
def init_params(key, d_model=D_MODEL, num_heads=NUM_HEADS, num_layers=NUM_LAYERS, ffn_mul=FFN_MUL):
    d_ff = d_model * ffn_mul
    head_dim = d_model // num_heads
    scale = 1.0 / math.sqrt(head_dim)
    assert 3 * d_model <= 128 and d_ff <= 128, "packed-vector layout assumes small model dims"

    wa_slabs, w2_t, vecs = [], [], []
    for _ in range(num_layers):
        key, k0, k1, k2, k3 = jax.random.split(key, 5)
        in_proj_w = 0.02 * jax.random.normal(k0, (3 * d_model, d_model), jnp.float32)
        out_proj_w = 0.02 * jax.random.normal(k1, (d_model, d_model), jnp.float32)
        lin1_w = 0.02 * jax.random.normal(k2, (d_ff, d_model), jnp.float32)
        lin2_w = 0.02 * jax.random.normal(k3, (d_model, d_ff), jnp.float32)
        in_proj_b = jnp.zeros((3 * d_model,), jnp.float32)
        out_proj_b = jnp.zeros((d_model,), jnp.float32)
        lin1_b = jnp.zeros((d_ff,), jnp.float32)
        lin2_b = jnp.zeros((d_model,), jnp.float32)
        ln1_g = jnp.ones((d_model,), jnp.float32)
        ln1_b = jnp.zeros((d_model,), jnp.float32)
        ln2_g = jnp.ones((d_model,), jnp.float32)
        ln2_b = jnp.zeros((d_model,), jnp.float32)

        # pre-transpose so all kernel matmuls are plain (M,K)x(K,N); fold 1/sqrt(Dh)
        # into the q columns (and q bias) so the kernel never rescales q.
        wqkv_t = in_proj_w.T.at[:, :d_model].multiply(scale)                # (D, 3D)
        in_proj_b = in_proj_b.at[:d_model].multiply(scale)
        wo_t = out_proj_w.T                                                 # (D, D)
        w1t = lin1_w.T                                                      # (D, 4D)
        wa_slabs.append(jnp.concatenate([wqkv_t, wo_t, w1t], axis=1))       # (D, 8D)
        w2_t.append(lin2_w.T)                                               # (4D, D)

        vec = jnp.zeros((8, 128), jnp.float32)
        vec = vec.at[0, :3 * d_model].set(in_proj_b)
        vec = vec.at[1, :d_model].set(out_proj_b)
        vec = vec.at[2, :d_ff].set(lin1_b)
        vec = vec.at[3, :d_model].set(lin2_b)
        vec = vec.at[4, :d_model].set(ln1_g)
        vec = vec.at[5, :d_model].set(ln1_b)
        vec = vec.at[6, :d_model].set(ln2_g)
        vec = vec.at[7, :d_model].set(ln2_b)
        vecs.append(vec)

    return (jnp.stack(wa_slabs), jnp.stack(w2_t), jnp.stack(vecs))


# ---------------- GraphTransformerModel forward ----------------
@jax.jit
def graph_transformer_forward(node_reps, edge_reps, node_masks, edge_masks, params):
    wa, w2_t, vecs = params
    B, top_k_spans, D = node_reps.shape
    _, top_k_rels, _ = edge_reps.shape
    L = top_k_spans + top_k_rels
    N = B * L

    graph_reps = jnp.concatenate((node_reps, edge_reps), axis=1).astype(jnp.float32)  # (B, L, D)
    graph_masks = jnp.concatenate((node_masks, edge_masks), axis=1)                   # (B, L) True=valid

    # O(N) code vectors only; the (N,N) additive bias is built inside the kernel.
    batch_ids = jnp.broadcast_to(jnp.arange(B, dtype=jnp.int32)[:, None], (B, L))
    qcode = batch_ids.reshape(N, 1)                                                   # query batch id
    kcode = jnp.where(graph_masks, batch_ids, jnp.int32(-1)).reshape(1, N)            # key batch id / -1

    x = graph_reps.reshape(N, D)

    out = pl.pallas_call(
        _graph_encoder_kernel,
        out_shape=jax.ShapeDtypeStruct((N, D), jnp.float32),
        grid=(1,),
        in_specs=[
            _full_spec((N, 1)),              # query batch codes
            _full_spec((1, N)),              # key batch codes (-1 = padded)
            _full_spec((N, D)),              # folded activations
            _full_spec(wa.shape),            # packed [Wqkv^T | Wo^T | W1^T] per layer
            _full_spec(w2_t.shape),          # W2^T per layer
            _full_spec(vecs.shape),          # packed biases / LN params per layer
        ],
        out_specs=_full_spec((N, D)),
        compiler_params=pltpu.CompilerParams(dimension_semantics=("arbitrary",)),
    )(qcode, kcode, x, wa, w2_t, vecs)

    out = out.reshape(B, L, D)
    enriched_node_reps = out[:, :top_k_spans, :]
    enriched_edge_reps = out[:, top_k_spans:, :]
    return enriched_node_reps, enriched_edge_reps


if __name__ == "__main__":
    key = jax.random.PRNGKey(0)
    k_node, k_edge, k_param = jax.random.split(key, 3)

    batch = 2
    top_k_spans = 8
    top_k_rels = 8

    node_reps = jax.random.normal(k_node, (batch, top_k_spans, D_MODEL), jnp.float32)
    edge_reps = jax.random.normal(k_edge, (batch, top_k_rels, D_MODEL), jnp.float32)

    # True = valid token, False = padded (module flips these into a key_padding_mask)
    node_masks = jnp.ones((batch, top_k_spans), dtype=bool)
    edge_masks = jnp.arange(top_k_rels)[None, :] < jnp.array([[6], [4]])   # ragged edge counts

    params = init_params(k_param)

    enriched_nodes, enriched_edges = graph_transformer_forward(
        node_reps, edge_reps, node_masks, edge_masks, params)
    jax.block_until_ready((enriched_nodes, enriched_edges))

    assert enriched_nodes.shape == (batch, top_k_spans, D_MODEL)
    assert enriched_edges.shape == (batch, top_k_rels, D_MODEL)
    assert bool(jnp.all(jnp.isfinite(enriched_nodes))) and bool(jnp.all(jnp.isfinite(enriched_edges)))
    print("KERNEL_OK")
</pallas_src>

<mosaic_0001>
module attributes {stable_mosaic.version = 11 : i64} {
  func.func @_graph_encoder_kernel(%arg0: i32, %arg1: memref<32x1xi32, #tpu.memory_space<vmem>>, %arg2: memref<1x32xi32, #tpu.memory_space<vmem>>, %arg3: memref<32x32xf32, #tpu.memory_space<vmem>>, %arg4: memref<2x32x256xf32, #tpu.memory_space<vmem>>, %arg5: memref<2x128x32xf32, #tpu.memory_space<vmem>>, %arg6: memref<2x8x128xf32, #tpu.memory_space<vmem>>, %arg7: memref<32x32xf32, #tpu.memory_space<vmem>>) attributes {dimension_semantics = [#tpu.dimension_semantics<arbitrary>], iteration_bounds = array<i64: 1>, scalar_prefetch = 0 : i64, scratch_operands = 0 : i64, tpu.core_type = #tpu.core_type<tc>, window_params = [{pipeline_mode = #tpu.pipeline_mode<synchronous>, transform_indices = @transform_0, window_bounds = array<i64: 32, 1>}, {pipeline_mode = #tpu.pipeline_mode<synchronous>, transform_indices = @transform_1, window_bounds = array<i64: 1, 32>}, {pipeline_mode = #tpu.pipeline_mode<synchronous>, transform_indices = @transform_2, window_bounds = array<i64: 32, 32>}, {pipeline_mode = #tpu.pipeline_mode<synchronous>, transform_indices = @transform_3, window_bounds = array<i64: 2, 32, 256>}, {pipeline_mode = #tpu.pipeline_mode<synchronous>, transform_indices = @transform_4, window_bounds = array<i64: 2, 128, 32>}, {pipeline_mode = #tpu.pipeline_mode<synchronous>, transform_indices = @transform_5, window_bounds = array<i64: 2, 8, 128>}, {pipeline_mode = #tpu.pipeline_mode<synchronous>, transform_indices = @transform_6, window_bounds = array<i64: 32, 32>}]} {
    %c0 = arith.constant 0 : index
    %c0_0 = arith.constant 0 : index
    %0 = vector.load %arg3[%c0, %c0_0] : memref<32x32xf32, #tpu.memory_space<vmem>>, vector<32x32xf32>
    %c0_1 = arith.constant 0 : index
    %c0_2 = arith.constant 0 : index
    %1 = vector.load %arg1[%c0_1, %c0_2] : memref<32x1xi32, #tpu.memory_space<vmem>>, vector<32x1xi32>
    %c0_3 = arith.constant 0 : index
    %c0_4 = arith.constant 0 : index
    %2 = vector.load %arg2[%c0_3, %c0_4] : memref<1x32xi32, #tpu.memory_space<vmem>>, vector<1x32xi32>
    %3 = vector.broadcast %1 : vector<32x1xi32> to vector<32x32xi32>
    %4 = vector.broadcast %2 : vector<1x32xi32> to vector<32x32xi32>
    %5 = arith.cmpi eq, %3, %4 : vector<32x32xi32>
    %cst = arith.constant 0.000000e+00 : f32
    %cst_5 = arith.constant -1.000000e+30 : f32
    %6 = vector.broadcast %cst : f32 to vector<32x32xf32>
    %7 = vector.broadcast %cst_5 : f32 to vector<32x32xf32>
    %8 = arith.select %5, %6, %7 : vector<32x32xi1>, vector<32x32xf32>
    %c0_6 = arith.constant 0 : index
    %c0_7 = arith.constant 0 : index
    %c0_8 = arith.constant 0 : index
    %9 = vector.load %arg4[%c0_6, %c0_7, %c0_8] : memref<2x32x256xf32, #tpu.memory_space<vmem>>, vector<1x32x256xf32>
    %10 = vector.shape_cast %9 : vector<1x32x256xf32> to vector<32x256xf32>
    %11 = vector.extract_strided_slice %10 {offsets = [0, 0], sizes = [32, 96], strides = [1, 1]} : vector<32x256xf32> to vector<32x96xf32>
    %12 = vector.extract_strided_slice %10 {offsets = [0, 96], sizes = [32, 32], strides = [1, 1]} : vector<32x256xf32> to vector<32x32xf32>
    %13 = vector.extract_strided_slice %10 {offsets = [0, 128], sizes = [32, 128], strides = [1, 1]} : vector<32x256xf32> to vector<32x128xf32>
    %c0_9 = arith.constant 0 : index
    %c0_10 = arith.constant 0 : index
    %c0_11 = arith.constant 0 : index
    %14 = vector.load %arg5[%c0_9, %c0_10, %c0_11] : memref<2x128x32xf32, #tpu.memory_space<vmem>>, vector<1x128x32xf32>
    %15 = vector.shape_cast %14 : vector<1x128x32xf32> to vector<128x32xf32>
    %c0_12 = arith.constant 0 : index
    %c0_13 = arith.constant 0 : index
    %c0_14 = arith.constant 0 : index
    %16 = vector.load %arg6[%c0_12, %c0_13, %c0_14] : memref<2x8x128xf32, #tpu.memory_space<vmem>>, vector<1x8x128xf32>
    %17 = vector.shape_cast %16 : vector<1x8x128xf32> to vector<8x128xf32>
    %18 = vector.extract_strided_slice %17 {offsets = [0, 0], sizes = [1, 96], strides = [1, 1]} : vector<8x128xf32> to vector<1x96xf32>
    %19 = vector.extract_strided_slice %17 {offsets = [1, 0], sizes = [1, 32], strides = [1, 1]} : vector<8x128xf32> to vector<1x32xf32>
    %20 = vector.extract_strided_slice %17 {offsets = [2, 0], sizes = [1, 128], strides = [1, 1]} : vector<8x128xf32> to vector<1x128xf32>
    %21 = vector.extract_strided_slice %17 {offsets = [3, 0], sizes = [1, 32], strides = [1, 1]} : vector<8x128xf32> to vector<1x32xf32>
    %22 = vector.extract_strided_slice %17 {offsets = [4, 0], sizes = [1, 32], strides = [1, 1]} : vector<8x128xf32> to vector<1x32xf32>
    %23 = vector.extract_strided_slice %17 {offsets = [5, 0], sizes = [1, 32], strides = [1, 1]} : vector<8x128xf32> to vector<1x32xf32>
    %24 = vector.extract_strided_slice %17 {offsets = [6, 0], sizes = [1, 32], strides = [1, 1]} : vector<8x128xf32> to vector<1x32xf32>
    %25 = vector.extract_strided_slice %17 {offsets = [7, 0], sizes = [1, 32], strides = [1, 1]} : vector<8x128xf32> to vector<1x32xf32>
    %cst_15 = arith.constant dense<0.000000e+00> : vector<32x96xf32>
    %26 = tpu.matmul %0, %11, %cst_15 {dimension_numbers = #tpu.dot_dimension_numbers<[1], [0], [0], [1], [0, 0, 1, 1], [], []>} : vector<32x32xf32>, vector<32x96xf32>, vector<32x96xf32> -> vector<32x96xf32>
    %27 = vector.broadcast %18 : vector<1x96xf32> to vector<32x96xf32>
    %28 = arith.addf %26, %27 : vector<32x96xf32>
    %29 = vector.extract_strided_slice %28 {offsets = [0, 0], sizes = [32, 8], strides = [1, 1]} : vector<32x96xf32> to vector<32x8xf32>
    %30 = vector.extract_strided_slice %28 {offsets = [0, 32], sizes = [32, 8], strides = [1, 1]} : vector<32x96xf32> to vector<32x8xf32>
    %31 = vector.extract_strided_slice %28 {offsets = [0, 64], sizes = [32, 8], strides = [1, 1]} : vector<32x96xf32> to vector<32x8xf32>
    %cst_16 = arith.constant dense<0.000000e+00> : vector<32x32xf32>
    %32 = tpu.matmul %29, %30, %cst_16 {dimension_numbers = #tpu.dot_dimension_numbers<[1], [1], [0], [0], [0, 0, 1, 0], [], []>} : vector<32x8xf32>, vector<32x8xf32>, vector<32x32xf32> -> vector<32x32xf32>
    %33 = arith.addf %32, %8 : vector<32x32xf32>
    %cst_17 = arith.constant dense<0xFF800000> : vector<32xf32>
    %34 = vector.multi_reduction <maximumf>, %33, %cst_17 [1] : vector<32x32xf32> to vector<32xf32>
    %35 = vector.shape_cast %34 : vector<32xf32> to vector<32x1xf32>
    %36 = vector.broadcast %35 : vector<32x1xf32> to vector<32x32xf32>
    %37 = arith.subf %33, %36 : vector<32x32xf32>
    %38 = math.exp %37 : vector<32x32xf32>
    %cst_18 = arith.constant dense<0.000000e+00> : vector<32xf32>
    %39 = vector.multi_reduction <add>, %38, %cst_18 [1] : vector<32x32xf32> to vector<32xf32>
    %40 = vector.shape_cast %39 : vector<32xf32> to vector<32x1xf32>
    %41 = vector.broadcast %40 : vector<32x1xf32> to vector<32x32xf32>
    %42 = arith.divf %38, %41 : vector<32x32xf32>
    %cst_19 = arith.constant dense<0.000000e+00> : vector<32x8xf32>
    %43 = tpu.matmul %42, %31, %cst_19 {dimension_numbers = #tpu.dot_dimension_numbers<[1], [0], [0], [1], [0, 0, 1, 1], [], []>} : vector<32x32xf32>, vector<32x8xf32>, vector<32x8xf32> -> vector<32x8xf32>
    %44 = vector.extract_strided_slice %28 {offsets = [0, 8], sizes = [32, 8], strides = [1, 1]} : vector<32x96xf32> to vector<32x8xf32>
    %45 = vector.extract_strided_slice %28 {offsets = [0, 40], sizes = [32, 8], strides = [1, 1]} : vector<32x96xf32> to vector<32x8xf32>
    %46 = vector.extract_strided_slice %28 {offsets = [0, 72], sizes = [32, 8], strides = [1, 1]} : vector<32x96xf32> to vector<32x8xf32>
    %cst_20 = arith.constant dense<0.000000e+00> : vector<32x32xf32>
    %47 = tpu.matmul %44, %45, %cst_20 {dimension_numbers = #tpu.dot_dimension_numbers<[1], [1], [0], [0], [0, 0, 1, 0], [], []>} : vector<32x8xf32>, vector<32x8xf32>, vector<32x32xf32> -> vector<32x32xf32>
    %48 = arith.addf %47, %8 : vector<32x32xf32>
    %cst_21 = arith.constant dense<0xFF800000> : vector<32xf32>
    %49 = vector.multi_reduction <maximumf>, %48, %cst_21 [1] : vector<32x32xf32> to vector<32xf32>
    %50 = vector.shape_cast %49 : vector<32xf32> to vector<32x1xf32>
    %51 = vector.broadcast %50 : vector<32x1xf32> to vector<32x32xf32>
    %52 = arith.subf %48, %51 : vector<32x32xf32>
    %53 = math.exp %52 : vector<32x32xf32>
    %cst_22 = arith.constant dense<0.000000e+00> : vector<32xf32>
    %54 = vector.multi_reduction <add>, %53, %cst_22 [1] : vector<32x32xf32> to vector<32xf32>
    %55 = vector.shape_cast %54 : vector<32xf32> to vector<32x1xf32>
    %56 = vector.broadcast %55 : vector<32x1xf32> to vector<32x32xf32>
    %57 = arith.divf %53, %56 : vector<32x32xf32>
    %cst_23 = arith.constant dense<0.000000e+00> : vector<32x8xf32>
    %58 = tpu.matmul %57, %46, %cst_23 {dimension_numbers = #tpu.dot_dimension_numbers<[1], [0], [0], [1], [0, 0, 1, 1], [], []>} : vector<32x32xf32>, vector<32x8xf32>, vector<32x8xf32> -> vector<32x8xf32>
    %59 = vector.extract_strided_slice %28 {offsets = [0, 16], sizes = [32, 8], strides = [1, 1]} : vector<32x96xf32> to vector<32x8xf32>
    %60 = vector.extract_strided_slice %28 {offsets = [0, 48], sizes = [32, 8], strides = [1, 1]} : vector<32x96xf32> to vector<32x8xf32>
    %61 = vector.extract_strided_slice %28 {offsets = [0, 80], sizes = [32, 8], strides = [1, 1]} : vector<32x96xf32> to vector<32x8xf32>
    %cst_24 = arith.constant dense<0.000000e+00> : vector<32x32xf32>
    %62 = tpu.matmul %59, %60, %cst_24 {dimension_numbers = #tpu.dot_dimension_numbers<[1], [1], [0], [0], [0, 0, 1, 0], [], []>} : vector<32x8xf32>, vector<32x8xf32>, vector<32x32xf32> -> vector<32x32xf32>
    %63 = arith.addf %62, %8 : vector<32x32xf32>
    %cst_25 = arith.constant dense<0xFF800000> : vector<32xf32>
    %64 = vector.multi_reduction <maximumf>, %63, %cst_25 [1] : vector<32x32xf32> to vector<32xf32>
    %65 = vector.shape_cast %64 : vector<32xf32> to vector<32x1xf32>
    %66 = vector.broadcast %65 : vector<32x1xf32> to vector<32x32xf32>
    %67 = arith.subf %63, %66 : vector<32x32xf32>
    %68 = math.exp %67 : vector<32x32xf32>
    %cst_26 = arith.constant dense<0.000000e+00> : vector<32xf32>
    %69 = vector.multi_reduction <add>, %68, %cst_26 [1] : vector<32x32xf32> to vector<32xf32>
    %70 = vector.shape_cast %69 : vector<32xf32> to vector<32x1xf32>
    %71 = vector.broadcast %70 : vector<32x1xf32> to vector<32x32xf32>
    %72 = arith.divf %68, %71 : vector<32x32xf32>
    %cst_27 = arith.constant dense<0.000000e+00> : vector<32x8xf32>
    %73 = tpu.matmul %72, %61, %cst_27 {dimension_numbers = #tpu.dot_dimension_numbers<[1], [0], [0], [1], [0, 0, 1, 1], [], []>} : vector<32x32xf32>, vector<32x8xf32>, vector<32x8xf32> -> vector<32x8xf32>
    %74 = vector.extract_strided_slice %28 {offsets = [0, 24], sizes = [32, 8], strides = [1, 1]} : vector<32x96xf32> to vector<32x8xf32>
    %75 = vector.extract_strided_slice %28 {offsets = [0, 56], sizes = [32, 8], strides = [1, 1]} : vector<32x96xf32> to vector<32x8xf32>
    %76 = vector.extract_strided_slice %28 {offsets = [0, 88], sizes = [32, 8], strides = [1, 1]} : vector<32x96xf32> to vector<32x8xf32>
    %cst_28 = arith.constant dense<0.000000e+00> : vector<32x32xf32>
    %77 = tpu.matmul %74, %75, %cst_28 {dimension_numbers = #tpu.dot_dimension_numbers<[1], [1], [0], [0], [0, 0, 1, 0], [], []>} : vector<32x8xf32>, vector<32x8xf32>, vector<32x32xf32> -> vector<32x32xf32>
    %78 = arith.addf %77, %8 : vector<32x32xf32>
    %cst_29 = arith.constant dense<0xFF800000> : vector<32xf32>
    %79 = vector.multi_reduction <maximumf>, %78, %cst_29 [1] : vector<32x32xf32> to vector<32xf32>
    %80 = vector.shape_cast %79 : vector<32xf32> to vector<32x1xf32>
    %81 = vector.broadcast %80 : vector<32x1xf32> to vector<32x32xf32>
    %82 = arith.subf %78, %81 : vector<32x32xf32>
    %83 = math.exp %82 : vector<32x32xf32>
    %cst_30 = arith.constant dense<0.000000e+00> : vector<32xf32>
    %84 = vector.multi_reduction <add>, %83, %cst_30 [1] : vector<32x32xf32> to vector<32xf32>
    %85 = vector.shape_cast %84 : vector<32xf32> to vector<32x1xf32>
    %86 = vector.broadcast %85 : vector<32x1xf32> to vector<32x32xf32>
    %87 = arith.divf %83, %86 : vector<32x32xf32>
    %cst_31 = arith.constant dense<0.000000e+00> : vector<32x8xf32>
    %88 = tpu.matmul %87, %76, %cst_31 {dimension_numbers = #tpu.dot_dimension_numbers<[1], [0], [0], [1], [0, 0, 1, 1], [], []>} : vector<32x32xf32>, vector<32x8xf32>, vector<32x8xf32> -> vector<32x8xf32>
    %89 = tpu.concatenate %43, %58, %73, %88 in 1 : vector<32x8xf32>, vector<32x8xf32>, vector<32x8xf32>, vector<32x8xf32> -> vector<32x32xf32>
    %cst_32 = arith.constant dense<0.000000e+00> : vector<32x32xf32>
    %90 = tpu.matmul %89, %12, %cst_32 {dimension_numbers = #tpu.dot_dimension_numbers<[1], [0], [0], [1], [0, 0, 1, 1], [], []>} : vector<32x32xf32>, vector<32x32xf32>, vector<32x32xf32> -> vector<32x32xf32>
    %91 = vector.broadcast %19 : vector<1x32xf32> to vector<32x32xf32>
    %92 = arith.addf %90, %91 : vector<32x32xf32>
    %93 = arith.addf %0, %92 : vector<32x32xf32>
    %cst_33 = arith.constant dense<0.000000e+00> : vector<32xf32>
    %94 = vector.multi_reduction <add>, %93, %cst_33 [1] : vector<32x32xf32> to vector<32xf32>
    %95 = vector.shape_cast %94 : vector<32xf32> to vector<32x1xf32>
    %cst_34 = arith.constant 3.200000e+01 : f32
    %96 = vector.broadcast %cst_34 : f32 to vector<32x1xf32>
    %97 = arith.divf %95, %96 : vector<32x1xf32>
    %98 = arith.mulf %93, %93 : vector<32x32xf32>
    %cst_35 = arith.constant dense<0.000000e+00> : vector<32xf32>
    %99 = vector.multi_reduction <add>, %98, %cst_35 [1] : vector<32x32xf32> to vector<32xf32>
    %100 = vector.shape_cast %99 : vector<32xf32> to vector<32x1xf32>
    %cst_36 = arith.constant 3.200000e+01 : f32
    %101 = vector.broadcast %cst_36 : f32 to vector<32x1xf32>
    %102 = arith.divf %100, %101 : vector<32x1xf32>
    %103 = arith.mulf %97, %97 : vector<32x1xf32>
    %104 = arith.subf %102, %103 : vector<32x1xf32>
    %105 = vector.broadcast %97 : vector<32x1xf32> to vector<32x32xf32>
    %106 = arith.subf %93, %105 : vector<32x32xf32>
    %cst_37 = arith.constant 9.99999974E-6 : f32
    %107 = vector.broadcast %cst_37 : f32 to vector<32x1xf32>
    %108 = arith.addf %104, %107 : vector<32x1xf32>
    %109 = math.rsqrt %108 : vector<32x1xf32>
    %110 = vector.broadcast %109 : vector<32x1xf32> to vector<32x32xf32>
    %111 = arith.mulf %106, %110 : vector<32x32xf32>
    %112 = vector.broadcast %22 : vector<1x32xf32> to vector<32x32xf32>
    %113 = arith.mulf %111, %112 : vector<32x32xf32>
    %114 = vector.broadcast %23 : vector<1x32xf32> to vector<32x32xf32>
    %115 = arith.addf %113, %114 : vector<32x32xf32>
    %cst_38 = arith.constant dense<0.000000e+00> : vector<32x128xf32>
    %116 = tpu.matmul %115, %13, %cst_38 {dimension_numbers = #tpu.dot_dimension_numbers<[1], [0], [0], [1], [0, 0, 1, 1], [], []>} : vector<32x32xf32>, vector<32x128xf32>, vector<32x128xf32> -> vector<32x128xf32>
    %117 = vector.broadcast %20 : vector<1x128xf32> to vector<32x128xf32>
    %118 = arith.addf %116, %117 : vector<32x128xf32>
    %cst_39 = arith.constant 0.000000e+00 : f32
    %119 = vector.broadcast %cst_39 : f32 to vector<32x128xf32>
    %120 = arith.maximumf %118, %119 : vector<32x128xf32>
    %cst_40 = arith.constant dense<0.000000e+00> : vector<32x32xf32>
    %121 = tpu.matmul %120, %15, %cst_40 {dimension_numbers = #tpu.dot_dimension_numbers<[1], [0], [0], [1], [0, 0, 1, 1], [], []>} : vector<32x128xf32>, vector<128x32xf32>, vector<32x32xf32> -> vector<32x32xf32>
    %122 = vector.broadcast %21 : vector<1x32xf32> to vector<32x32xf32>
    %123 = arith.addf %121, %122 : vector<32x32xf32>
    %124 = arith.addf %115, %123 : vector<32x32xf32>
    %cst_41 = arith.constant dense<0.000000e+00> : vector<32xf32>
    %125 = vector.multi_reduction <add>, %124, %cst_41 [1] : vector<32x32xf32> to vector<32xf32>
    %126 = vector.shape_cast %125 : vector<32xf32> to vector<32x1xf32>
    %cst_42 = arith.constant 3.200000e+01 : f32
    %127 = vector.broadcast %cst_42 : f32 to vector<32x1xf32>
    %128 = arith.divf %126, %127 : vector<32x1xf32>
    %129 = arith.mulf %124, %124 : vector<32x32xf32>
    %cst_43 = arith.constant dense<0.000000e+00> : vector<32xf32>
    %130 = vector.multi_reduction <add>, %129, %cst_43 [1] : vector<32x32xf32> to vector<32xf32>
    %131 = vector.shape_cast %130 : vector<32xf32> to vector<32x1xf32>
    %cst_44 = arith.constant 3.200000e+01 : f32
    %132 = vector.broadcast %cst_44 : f32 to vector<32x1xf32>
    %133 = arith.divf %131, %132 : vector<32x1xf32>
    %134 = arith.mulf %128, %128 : vector<32x1xf32>
    %135 = arith.subf %133, %134 : vector<32x1xf32>
    %136 = vector.broadcast %128 : vector<32x1xf32> to vector<32x32xf32>
    %137 = arith.subf %124, %136 : vector<32x32xf32>
    %cst_45 = arith.constant 9.99999974E-6 : f32
    %138 = vector.broadcast %cst_45 : f32 to vector<32x1xf32>
    %139 = arith.addf %135, %138 : vector<32x1xf32>
    %140 = math.rsqrt %139 : vector<32x1xf32>
    %141 = vector.broadcast %140 : vector<32x1xf32> to vector<32x32xf32>
    %142 = arith.mulf %137, %141 : vector<32x32xf32>
    %143 = vector.broadcast %24 : vector<1x32xf32> to vector<32x32xf32>
    %144 = arith.mulf %142, %143 : vector<32x32xf32>
    %145 = vector.broadcast %25 : vector<1x32xf32> to vector<32x32xf32>
    %146 = arith.addf %144, %145 : vector<32x32xf32>
    %c1 = arith.constant 1 : index
    %c0_46 = arith.constant 0 : index
    %c0_47 = arith.constant 0 : index
    %147 = vector.load %arg4[%c1, %c0_46, %c0_47] : memref<2x32x256xf32, #tpu.memory_space<vmem>>, vector<1x32x256xf32>
    %148 = vector.shape_cast %147 : vector<1x32x256xf32> to vector<32x256xf32>
    %149 = vector.extract_strided_slice %148 {offsets = [0, 0], sizes = [32, 96], strides = [1, 1]} : vector<32x256xf32> to vector<32x96xf32>
    %150 = vector.extract_strided_slice %148 {offsets = [0, 96], sizes = [32, 32], strides = [1, 1]} : vector<32x256xf32> to vector<32x32xf32>
    %151 = vector.extract_strided_slice %148 {offsets = [0, 128], sizes = [32, 128], strides = [1, 1]} : vector<32x256xf32> to vector<32x128xf32>
    %c1_48 = arith.constant 1 : index
    %c0_49 = arith.constant 0 : index
    %c0_50 = arith.constant 0 : index
    %152 = vector.load %arg5[%c1_48, %c0_49, %c0_50] : memref<2x128x32xf32, #tpu.memory_space<vmem>>, vector<1x128x32xf32>
    %153 = vector.shape_cast %152 : vector<1x128x32xf32> to vector<128x32xf32>
    %c1_51 = arith.constant 1 : index
    %c0_52 = arith.constant 0 : index
    %c0_53 = arith.constant 0 : index
    %154 = vector.load %arg6[%c1_51, %c0_52, %c0_53] : memref<2x8x128xf32, #tpu.memory_space<vmem>>, vector<1x8x128xf32>
    %155 = vector.shape_cast %154 : vector<1x8x128xf32> to vector<8x128xf32>
    %156 = vector.extract_strided_slice %155 {offsets = [0, 0], sizes = [1, 96], strides = [1, 1]} : vector<8x128xf32> to vector<1x96xf32>
    %157 = vector.extract_strided_slice %155 {offsets = [1, 0], sizes = [1, 32], strides = [1, 1]} : vector<8x128xf32> to vector<1x32xf32>
    %158 = vector.extract_strided_slice %155 {offsets = [2, 0], sizes = [1, 128], strides = [1, 1]} : vector<8x128xf32> to vector<1x128xf32>
    %159 = vector.extract_strided_slice %155 {offsets = [3, 0], sizes = [1, 32], strides = [1, 1]} : vector<8x128xf32> to vector<1x32xf32>
    %160 = vector.extract_strided_slice %155 {offsets = [4, 0], sizes = [1, 32], strides = [1, 1]} : vector<8x128xf32> to vector<1x32xf32>
    %161 = vector.extract_strided_slice %155 {offsets = [5, 0], sizes = [1, 32], strides = [1, 1]} : vector<8x128xf32> to vector<1x32xf32>
    %162 = vector.extract_strided_slice %155 {offsets = [6, 0], sizes = [1, 32], strides = [1, 1]} : vector<8x128xf32> to vector<1x32xf32>
    %163 = vector.extract_strided_slice %155 {offsets = [7, 0], sizes = [1, 32], strides = [1, 1]} : vector<8x128xf32> to vector<1x32xf32>
    %cst_54 = arith.constant dense<0.000000e+00> : vector<32x96xf32>
    %164 = tpu.matmul %146, %149, %cst_54 {dimension_numbers = #tpu.dot_dimension_numbers<[1], [0], [0], [1], [0, 0, 1, 1], [], []>} : vector<32x32xf32>, vector<32x96xf32>, vector<32x96xf32> -> vector<32x96xf32>
    %165 = vector.broadcast %156 : vector<1x96xf32> to vector<32x96xf32>
    %166 = arith.addf %164, %165 : vector<32x96xf32>
    %167 = vector.extract_strided_slice %166 {offsets = [0, 0], sizes = [32, 8], strides = [1, 1]} : vector<32x96xf32> to vector<32x8xf32>
    %168 = vector.extract_strided_slice %166 {offsets = [0, 32], sizes = [32, 8], strides = [1, 1]} : vector<32x96xf32> to vector<32x8xf32>
    %169 = vector.extract_strided_slice %166 {offsets = [0, 64], sizes = [32, 8], strides = [1, 1]} : vector<32x96xf32> to vector<32x8xf32>
    %cst_55 = arith.constant dense<0.000000e+00> : vector<32x32xf32>
    %170 = tpu.matmul %167, %168, %cst_55 {dimension_numbers = #tpu.dot_dimension_numbers<[1], [1], [0], [0], [0, 0, 1, 0], [], []>} : vector<32x8xf32>, vector<32x8xf32>, vector<32x32xf32> -> vector<32x32xf32>
    %171 = arith.addf %170, %8 : vector<32x32xf32>
    %cst_56 = arith.constant dense<0xFF800000> : vector<32xf32>
    %172 = vector.multi_reduction <maximumf>, %171, %cst_56 [1] : vector<32x32xf32> to vector<32xf32>
    %173 = vector.shape_cast %172 : vector<32xf32> to vector<32x1xf32>
    %174 = vector.broadcast %173 : vector<32x1xf32> to vector<32x32xf32>
    %175 = arith.subf %171, %174 : vector<32x32xf32>
    %176 = math.exp %175 : vector<32x32xf32>
    %cst_57 = arith.constant dense<0.000000e+00> : vector<32xf32>
    %177 = vector.multi_reduction <add>, %176, %cst_57 [1] : vector<32x32xf32> to vector<32xf32>
    %178 = vector.shape_cast %177 : vector<32xf32> to vector<32x1xf32>
    %179 = vector.broadcast %178 : vector<32x1xf32> to vector<32x32xf32>
    %180 = arith.divf %176, %179 : vector<32x32xf32>
    %cst_58 = arith.constant dense<0.000000e+00> : vector<32x8xf32>
    %181 = tpu.matmul %180, %169, %cst_58 {dimension_numbers = #tpu.dot_dimension_numbers<[1], [0], [0], [1], [0, 0, 1, 1], [], []>} : vector<32x32xf32>, vector<32x8xf32>, vector<32x8xf32> -> vector<32x8xf32>
    %182 = vector.extract_strided_slice %166 {offsets = [0, 8], sizes = [32, 8], strides = [1, 1]} : vector<32x96xf32> to vector<32x8xf32>
    %183 = vector.extract_strided_slice %166 {offsets = [0, 40], sizes = [32, 8], strides = [1, 1]} : vector<32x96xf32> to vector<32x8xf32>
    %184 = vector.extract_strided_slice %166 {offsets = [0, 72], sizes = [32, 8], strides = [1, 1]} : vector<32x96xf32> to vector<32x8xf32>
    %cst_59 = arith.constant dense<0.000000e+00> : vector<32x32xf32>
    %185 = tpu.matmul %182, %183, %cst_59 {dimension_numbers = #tpu.dot_dimension_numbers<[1], [1], [0], [0], [0, 0, 1, 0], [], []>} : vector<32x8xf32>, vector<32x8xf32>, vector<32x32xf32> -> vector<32x32xf32>
    %186 = arith.addf %185, %8 : vector<32x32xf32>
    %cst_60 = arith.constant dense<0xFF800000> : vector<32xf32>
    %187 = vector.multi_reduction <maximumf>, %186, %cst_60 [1] : vector<32x32xf32> to vector<32xf32>
    %188 = vector.shape_cast %187 : vector<32xf32> to vector<32x1xf32>
    %189 = vector.broadcast %188 : vector<32x1xf32> to vector<32x32xf32>
    %190 = arith.subf %186, %189 : vector<32x32xf32>
    %191 = math.exp %190 : vector<32x32xf32>
    %cst_61 = arith.constant dense<0.000000e+00> : vector<32xf32>
    %192 = vector.multi_reduction <add>, %191, %cst_61 [1] : vector<32x32xf32> to vector<32xf32>
    %193 = vector.shape_cast %192 : vector<32xf32> to vector<32x1xf32>
    %194 = vector.broadcast %193 : vector<32x1xf32> to vector<32x32xf32>
    %195 = arith.divf %191, %194 : vector<32x32xf32>
    %cst_62 = arith.constant dense<0.000000e+00> : vector<32x8xf32>
    %196 = tpu.matmul %195, %184, %cst_62 {dimension_numbers = #tpu.dot_dimension_numbers<[1], [0], [0], [1], [0, 0, 1, 1], [], []>} : vector<32x32xf32>, vector<32x8xf32>, vector<32x8xf32> -> vector<32x8xf32>
    %197 = vector.extract_strided_slice %166 {offsets = [0, 16], sizes = [32, 8], strides = [1, 1]} : vector<32x96xf32> to vector<32x8xf32>
    %198 = vector.extract_strided_slice %166 {offsets = [0, 48], sizes = [32, 8], strides = [1, 1]} : vector<32x96xf32> to vector<32x8xf32>
    %199 = vector.extract_strided_slice %166 {offsets = [0, 80], sizes = [32, 8], strides = [1, 1]} : vector<32x96xf32> to vector<32x8xf32>
    %cst_63 = arith.constant dense<0.000000e+00> : vector<32x32xf32>
    %200 = tpu.matmul %197, %198, %cst_63 {dimension_numbers = #tpu.dot_dimension_numbers<[1], [1], [0], [0], [0, 0, 1, 0], [], []>} : vector<32x8xf32>, vector<32x8xf32>, vector<32x32xf32> -> vector<32x32xf32>
    %201 = arith.addf %200, %8 : vector<32x32xf32>
    %cst_64 = arith.constant dense<0xFF800000> : vector<32xf32>
    %202 = vector.multi_reduction <maximumf>, %201, %cst_64 [1] : vector<32x32xf32> to vector<32xf32>
    %203 = vector.shape_cast %202 : vector<32xf32> to vector<32x1xf32>
    %204 = vector.broadcast %203 : vector<32x1xf32> to vector<32x32xf32>
    %205 = arith.subf %201, %204 : vector<32x32xf32>
    %206 = math.exp %205 : vector<32x32xf32>
    %cst_65 = arith.constant dense<0.000000e+00> : vector<32xf32>
    %207 = vector.multi_reduction <add>, %206, %cst_65 [1] : vector<32x32xf32> to vector<32xf32>
    %208 = vector.shape_cast %207 : vector<32xf32> to vector<32x1xf32>
    %209 = vector.broadcast %208 : vector<32x1xf32> to vector<32x32xf32>
    %210 = arith.divf %206, %209 : vector<32x32xf32>
    %cst_66 = arith.constant dense<0.000000e+00> : vector<32x8xf32>
    %211 = tpu.matmul %210, %199, %cst_66 {dimension_numbers = #tpu.dot_dimension_numbers<[1], [0], [0], [1], [0, 0, 1, 1], [], []>} : vector<32x32xf32>, vector<32x8xf32>, vector<32x8xf32> -> vector<32x8xf32>
    %212 = vector.extract_strided_slice %166 {offsets = [0, 24], sizes = [32, 8], strides = [1, 1]} : vector<32x96xf32> to vector<32x8xf32>
    %213 = vector.extract_strided_slice %166 {offsets = [0, 56], sizes = [32, 8], strides = [1, 1]} : vector<32x96xf32> to vector<32x8xf32>
    %214 = vector.extract_strided_slice %166 {offsets = [0, 88], sizes = [32, 8], strides = [1, 1]} : vector<32x96xf32> to vector<32x8xf32>
    %cst_67 = arith.constant dense<0.000000e+00> : vector<32x32xf32>
    %215 = tpu.matmul %212, %213, %cst_67 {dimension_numbers = #tpu.dot_dimension_numbers<[1], [1], [0], [0], [0, 0, 1, 0], [], []>} : vector<32x8xf32>, vector<32x8xf32>, vector<32x32xf32> -> vector<32x32xf32>
    %216 = arith.addf %215, %8 : vector<32x32xf32>
    %cst_68 = arith.constant dense<0xFF800000> : vector<32xf32>
    %217 = vector.multi_reduction <maximumf>, %216, %cst_68 [1] : vector<32x32xf32> to vector<32xf32>
    %218 = vector.shape_cast %217 : vector<32xf32> to vector<32x1xf32>
    %219 = vector.broadcast %218 : vector<32x1xf32> to vector<32x32xf32>
    %220 = arith.subf %216, %219 : vector<32x32xf32>
    %221 = math.exp %220 : vector<32x32xf32>
    %cst_69 = arith.constant dense<0.000000e+00> : vector<32xf32>
    %222 = vector.multi_reduction <add>, %221, %cst_69 [1] : vector<32x32xf32> to vector<32xf32>
    %223 = vector.shape_cast %222 : vector<32xf32> to vector<32x1xf32>
    %224 = vector.broadcast %223 : vector<32x1xf32> to vector<32x32xf32>
    %225 = arith.divf %221, %224 : vector<32x32xf32>
    %cst_70 = arith.constant dense<0.000000e+00> : vector<32x8xf32>
    %226 = tpu.matmul %225, %214, %cst_70 {dimension_numbers = #tpu.dot_dimension_numbers<[1], [0], [0], [1], [0, 0, 1, 1], [], []>} : vector<32x32xf32>, vector<32x8xf32>, vector<32x8xf32> -> vector<32x8xf32>
    %227 = tpu.concatenate %181, %196, %211, %226 in 1 : vector<32x8xf32>, vector<32x8xf32>, vector<32x8xf32>, vector<32x8xf32> -> vector<32x32xf32>
    %cst_71 = arith.constant dense<0.000000e+00> : vector<32x32xf32>
    %228 = tpu.matmul %227, %150, %cst_71 {dimension_numbers = #tpu.dot_dimension_numbers<[1], [0], [0], [1], [0, 0, 1, 1], [], []>} : vector<32x32xf32>, vector<32x32xf32>, vector<32x32xf32> -> vector<32x32xf32>
    %229 = vector.broadcast %157 : vector<1x32xf32> to vector<32x32xf32>
    %230 = arith.addf %228, %229 : vector<32x32xf32>
    %231 = arith.addf %146, %230 : vector<32x32xf32>
    %cst_72 = arith.constant dense<0.000000e+00> : vector<32xf32>
    %232 = vector.multi_reduction <add>, %231, %cst_72 [1] : vector<32x32xf32> to vector<32xf32>
    %233 = vector.shape_cast %232 : vector<32xf32> to vector<32x1xf32>
    %cst_73 = arith.constant 3.200000e+01 : f32
    %234 = vector.broadcast %cst_73 : f32 to vector<32x1xf32>
    %235 = arith.divf %233, %234 : vector<32x1xf32>
    %236 = arith.mulf %231, %231 : vector<32x32xf32>
    %cst_74 = arith.constant dense<0.000000e+00> : vector<32xf32>
    %237 = vector.multi_reduction <add>, %236, %cst_74 [1] : vector<32x32xf32> to vector<32xf32>
    %238 = vector.shape_cast %237 : vector<32xf32> to vector<32x1xf32>
    %cst_75 = arith.constant 3.200000e+01 : f32
    %239 = vector.broadcast %cst_75 : f32 to vector<32x1xf32>
    %240 = arith.divf %238, %239 : vector<32x1xf32>
    %241 = arith.mulf %235, %235 : vector<32x1xf32>
    %242 = arith.subf %240, %241 : vector<32x1xf32>
    %243 = vector.broadcast %235 : vector<32x1xf32> to vector<32x32xf32>
    %244 = arith.subf %231, %243 : vector<32x32xf32>
    %cst_76 = arith.constant 9.99999974E-6 : f32
    %245 = vector.broadcast %cst_76 : f32 to vector<32x1xf32>
    %246 = arith.addf %242, %245 : vector<32x1xf32>
    %247 = math.rsqrt %246 : vector<32x1xf32>
    %248 = vector.broadcast %247 : vector<32x1xf32> to vector<32x32xf32>
    %249 = arith.mulf %244, %248 : vector<32x32xf32>
    %250 = vector.broadcast %160 : vector<1x32xf32> to vector<32x32xf32>
    %251 = arith.mulf %249, %250 : vector<32x32xf32>
    %252 = vector.broadcast %161 : vector<1x32xf32> to vector<32x32xf32>
    %253 = arith.addf %251, %252 : vector<32x32xf32>
    %cst_77 = arith.constant dense<0.000000e+00> : vector<32x128xf32>
    %254 = tpu.matmul %253, %151, %cst_77 {dimension_numbers = #tpu.dot_dimension_numbers<[1], [0], [0], [1], [0, 0, 1, 1], [], []>} : vector<32x32xf32>, vector<32x128xf32>, vector<32x128xf32> -> vector<32x128xf32>
    %255 = vector.broadcast %158 : vector<1x128xf32> to vector<32x128xf32>
    %256 = arith.addf %254, %255 : vector<32x128xf32>
    %cst_78 = arith.constant 0.000000e+00 : f32
    %257 = vector.broadcast %cst_78 : f32 to vector<32x128xf32>
    %258 = arith.maximumf %256, %257 : vector<32x128xf32>
    %cst_79 = arith.constant dense<0.000000e+00> : vector<32x32xf32>
    %259 = tpu.matmul %258, %153, %cst_79 {dimension_numbers = #tpu.dot_dimension_numbers<[1], [0], [0], [1], [0, 0, 1, 1], [], []>} : vector<32x128xf32>, vector<128x32xf32>, vector<32x32xf32> -> vector<32x32xf32>
    %260 = vector.broadcast %159 : vector<1x32xf32> to vector<32x32xf32>
    %261 = arith.addf %259, %260 : vector<32x32xf32>
    %262 = arith.addf %253, %261 : vector<32x32xf32>
    %cst_80 = arith.constant dense<0.000000e+00> : vector<32xf32>
    %263 = vector.multi_reduction <add>, %262, %cst_80 [1] : vector<32x32xf32> to vector<32xf32>
    %264 = vector.shape_cast %263 : vector<32xf32> to vector<32x1xf32>
    %cst_81 = arith.constant 3.200000e+01 : f32
    %265 = vector.broadcast %cst_81 : f32 to vector<32x1xf32>
    %266 = arith.divf %264, %265 : vector<32x1xf32>
    %267 = arith.mulf %262, %262 : vector<32x32xf32>
    %cst_82 = arith.constant dense<0.000000e+00> : vector<32xf32>
    %268 = vector.multi_reduction <add>, %267, %cst_82 [1] : vector<32x32xf32> to vector<32xf32>
    %269 = vector.shape_cast %268 : vector<32xf32> to vector<32x1xf32>
    %cst_83 = arith.constant 3.200000e+01 : f32
    %270 = vector.broadcast %cst_83 : f32 to vector<32x1xf32>
    %271 = arith.divf %269, %270 : vector<32x1xf32>
    %272 = arith.mulf %266, %266 : vector<32x1xf32>
    %273 = arith.subf %271, %272 : vector<32x1xf32>
    %274 = vector.broadcast %266 : vector<32x1xf32> to vector<32x32xf32>
    %275 = arith.subf %262, %274 : vector<32x32xf32>
    %cst_84 = arith.constant 9.99999974E-6 : f32
    %276 = vector.broadcast %cst_84 : f32 to vector<32x1xf32>
    %277 = arith.addf %273, %276 : vector<32x1xf32>
    %278 = math.rsqrt %277 : vector<32x1xf32>
    %279 = vector.broadcast %278 : vector<32x1xf32> to vector<32x32xf32>
    %280 = arith.mulf %275, %279 : vector<32x32xf32>
    %281 = vector.broadcast %162 : vector<1x32xf32> to vector<32x32xf32>
    %282 = arith.mulf %280, %281 : vector<32x32xf32>
    %283 = vector.broadcast %163 : vector<1x32xf32> to vector<32x32xf32>
    %284 = arith.addf %282, %283 : vector<32x32xf32>
    %c0_85 = arith.constant 0 : index
    %c0_86 = arith.constant 0 : index
    %285 = vector.load %arg7[%c0_85, %c0_86] : memref<32x32xf32, #tpu.memory_space<vmem>>, vector<32x32xf32>
    tpu.vector_store %arg7[%c0_85, %c0_86], %284 {strides = array<i32>} : memref<32x32xf32, #tpu.memory_space<vmem>>, vector<32x32xf32>,
    return
  }
  func.func @transform_0(%arg0: i32) -> (i32, i32) {
    %c0_i32 = arith.constant 0 : i32
    %c0_i32_0 = arith.constant 0 : i32
    %c0_i32_1 = arith.constant 0 : i32
    return %c0_i32, %c0_i32_0 : i32, i32
  }
  func.func @transform_1(%arg0: i32) -> (i32, i32) {
    %c0_i32 = arith.constant 0 : i32
    %c0_i32_0 = arith.constant 0 : i32
    %c0_i32_1 = arith.constant 0 : i32
    return %c0_i32, %c0_i32_0 : i32, i32
  }
  func.func @transform_2(%arg0: i32) -> (i32, i32) {
    %c0_i32 = arith.constant 0 : i32
    %c0_i32_0 = arith.constant 0 : i32
    %c0_i32_1 = arith.constant 0 : i32
    return %c0_i32, %c0_i32_0 : i32, i32
  }
  func.func @transform_3(%arg0: i32) -> (i32, i32, i32) {
    %c0_i32 = arith.constant 0 : i32
    %c0_i32_0 = arith.constant 0 : i32
    %c0_i32_1 = arith.constant 0 : i32
    %c0_i32_2 = arith.constant 0 : i32
    return %c0_i32, %c0_i32_0, %c0_i32_1 : i32, i32, i32
  }
  func.func @transform_4(%arg0: i32) -> (i32, i32, i32) {
    %c0_i32 = arith.constant 0 : i32
    %c0_i32_0 = arith.constant 0 : i32
    %c0_i32_1 = arith.constant 0 : i32
    %c0_i32_2 = arith.constant 0 : i32
    return %c0_i32, %c0_i32_0, %c0_i32_1 : i32, i32, i32
  }
  func.func @transform_5(%arg0: i32) -> (i32, i32, i32) {
    %c0_i32 = arith.constant 0 : i32
    %c0_i32_0 = arith.constant 0 : i32
    %c0_i32_1 = arith.constant 0 : i32
    %c0_i32_2 = arith.constant 0 : i32
    return %c0_i32, %c0_i32_0, %c0_i32_1 : i32, i32, i32
  }
  func.func @transform_6(%arg0: i32) -> (i32, i32) {
    %c0_i32 = arith.constant 0 : i32
    %c0_i32_0 = arith.constant 0 : i32
    %c0_i32_1 = arith.constant 0 : i32
    return %c0_i32, %c0_i32_0 : i32, i32
  }
}

</mosaic_0001>

<llo_original>
// kernel: graph_transformer_forward.1
$region0: #{graph_transformer_forward.1}
  #allocation0 [shape = 'u32[]', space=smem, size = 0x4, offset = 0x4, fixed_abs, tag = 'smem constant byte address 0x4 - core index']
  #allocation1 [shape = 'u32[144,128]{1,0:T(1,128)}', space=vmem, size = 0x12000, scoped, tag = 'internal scratch']
  %s0 = inlined_call_operand.vmem [shape: s32[32,1], index: 0, kind: input, shape index: {}]
  %s1 = inlined_call_operand.vmem [shape: s32[1,32], index: 1, kind: input, shape index: {}]
  %s2 = inlined_call_operand.vmem [shape: f32[32,32], index: 2, kind: input, shape index: {}]
  %s3 = inlined_call_operand.vmem [shape: f32[2,32,256], index: 3, kind: input, shape index: {}]
  %s4 = inlined_call_operand.vmem [shape: f32[2,128,32], index: 4, kind: input, shape index: {}]
  %s5 = inlined_call_operand.vmem [shape: f32[2,8,128], index: 5, kind: input, shape index: {}]
  %s6 = inlined_call_operand.vmem [shape: f32[32,32], index: 6, kind: output, shape index: {}]
  %s7 = sld [smem:[#allocation0]]
  $region34: #{graph_transformer_forward.1} parent=0
    _
  %s9 = ssub.s32 1, %s7
  %s10 = scalar_select 0, %s9, %s7
  // Predicated region
  $region2: #{graph_transformer_forward.1} parent=0 // pred_check
    _
  $region3: #{graph_transformer_forward.1} parent=0 // pred_check_branch
    %12 = sbr.rel (0) target = $region5
  $region4: #{graph_transformer_forward.1} parent=0 // pred_region
    _
  $region5: #{graph_transformer_forward.1} parent=0 // pred_fallthru
    _
  // Predicated region
  $region6: #{graph_transformer_forward.1} parent=0 // pred_check
    _
  $region7: #{graph_transformer_forward.1} parent=0 // pred_check_branch
    %14 = sbr.rel (0) target = $region9
  $region8: #{graph_transformer_forward.1} parent=0 // pred_region
    _
  $region9: #{graph_transformer_forward.1} parent=0 // pred_fallthru
    _
  // Predicated region
  $region10: #{graph_transformer_forward.1} parent=0 // pred_check
    _
  $region11: #{graph_transformer_forward.1} parent=0 // pred_check_branch
    %16 = sbr.rel (0) target = $region13
  $region12: #{graph_transformer_forward.1} parent=0 // pred_region
    _
  $region13: #{graph_transformer_forward.1} parent=0 // pred_fallthru
    _
  // Predicated region
  $region14: #{graph_transformer_forward.1} parent=0 // pred_check
    _
  $region15: #{graph_transformer_forward.1} parent=0 // pred_check_branch
    %18 = sbr.rel (0) target = $region17
  $region16: #{graph_transformer_forward.1} parent=0 // pred_region
    _
  $region17: #{graph_transformer_forward.1} parent=0 // pred_fallthru
    _
  // Predicated region
  $region18: #{graph_transformer_forward.1} parent=0 // pred_check
    _
  $region19: #{graph_transformer_forward.1} parent=0 // pred_check_branch
    %20 = sbr.rel (0) target = $region21
  $region20: #{graph_transformer_forward.1} parent=0 // pred_region
    _
  $region21: #{graph_transformer_forward.1} parent=0 // pred_fallthru
    _
  // Predicated region
  $region22: #{graph_transformer_forward.1} parent=0 // pred_check
    _
  $region23: #{graph_transformer_forward.1} parent=0 // pred_check_branch
    %22 = sbr.rel (0) target = $region25
  $region24: #{graph_transformer_forward.1} parent=0 // pred_region
    _
  $region25: #{graph_transformer_forward.1} parent=0 // pred_fallthru
    _
  %v23 = vld [vmem:[%s2] sm:$0xff]
  %v24 = vld [vmem:[%s2 + $0x8] sm:$0xff]
  %v25 = vld [vmem:[%s2 + $0x10] sm:$0xff]
  %v26 = vld [vmem:[%s2 + $0x18] sm:$0xff]
  %v27 = vld [vmem:[%s0] sm:$0xff]
  %v28 = vld [vmem:[%s0 + $0x8] sm:$0xff]
  %v29 = vld [vmem:[%s0 + $0x10] sm:$0xff]
  %v30 = vld [vmem:[%s0 + $0x18] sm:$0xff]
  %v31 = vld [vmem:[%s1] sm:$0x1]
  %32 = vset.pattern.permute.xlu0 0
  %33 = vperm.xlu0 %32, %v27
  %v34 = vpop.permute.xlu0 %33
  %35 = vset.pattern.permute.xlu0 0
  %36 = vperm.xlu0 %35, %v28
  %v37 = vpop.permute.xlu0 %36
  %38 = vset.pattern.permute.xlu0 0
  %39 = vperm.xlu0 %38, %v29
  %v40 = vpop.permute.xlu0 %39
  %41 = vset.pattern.permute.xlu0 0
  %42 = vperm.xlu0 %41, %v30
  %v43 = vpop.permute.xlu0 %42
  %v44 = vlaneseq
  %v45 = vshrl.u32 %v44, 7
  %v46 = vsub.s32 0, %v45
  %v47 = vrot.slane %v31, %v46
  %vm48 = vcmp.eq.s32.totalorder %v34, %v47
  %vm49 = vcmp.eq.s32.totalorder %v37, %v47
  %vm50 = vcmp.eq.s32.totalorder %v40, %v47
  %vm51 = vcmp.eq.s32.totalorder %v43, %v47
  %v52 = vsel %vm48, 0.0, -1e+30
  %v53 = vsel %vm49, 0.0, -1e+30
  %v54 = vsel %vm50, 0.0, -1e+30
  %v55 = vsel %vm51, 0.0, -1e+30
  %v56 = vld [vmem:[%s3] sm:$0xff]
  %v57 = vld [vmem:[%s3 + $0x8] sm:$0xff]
  %v58 = vld [vmem:[%s3 + $0x10] sm:$0xff]
  %v59 = vld [vmem:[%s3 + $0x18] sm:$0xff]
  %v60 = vld [vmem:[%s3 + $0x20] sm:$0xff]
  %v61 = vld [vmem:[%s3 + $0x28] sm:$0xff]
  %v62 = vld [vmem:[%s3 + $0x30] sm:$0xff]
  %v63 = vld [vmem:[%s3 + $0x38] sm:$0xff]
  %v64 = vld [vmem:[%s4] sm:$0xff]
  %v65 = vld [vmem:[%s4 + $0x8] sm:$0xff]
  %v66 = vld [vmem:[%s4 + $0x10] sm:$0xff]
  %v67 = vld [vmem:[%s4 + $0x18] sm:$0xff]
  %v68 = vld [vmem:[%s4 + $0x20] sm:$0xff]
  %v69 = vld [vmem:[%s4 + $0x28] sm:$0xff]
  %v70 = vld [vmem:[%s4 + $0x30] sm:$0xff]
  %v71 = vld [vmem:[%s4 + $0x38] sm:$0xff]
  %v72 = vld [vmem:[%s4 + $0x40] sm:$0xff]
  %v73 = vld [vmem:[%s4 + $0x48] sm:$0xff]
  %v74 = vld [vmem:[%s4 + $0x50] sm:$0xff]
  %v75 = vld [vmem:[%s4 + $0x58] sm:$0xff]
  %v76 = vld [vmem:[%s4 + $0x60] sm:$0xff]
  %v77 = vld [vmem:[%s4 + $0x68] sm:$0xff]
  %v78 = vld [vmem:[%s4 + $0x70] sm:$0xff]
  %v79 = vld [vmem:[%s4 + $0x78] sm:$0xff]
  %v80 = vld [vmem:[%s5] sm:$0xff]
  %v81 = vlaneseq
  %v82 = vshrl.u32 %v81, 7
  %v83 = vsub.s32 0, %v82
  %v84 = vrot.slane %v80, %v83
  %vm85 = vcmask 261120
  %v87 = vsel %vm85, %v23, 0
  %v90 = vsel %vm85, %v24, 0
  %v93 = vsel %vm85, %v25, 0
  %v96 = vsel %vm85, %v26, 0
  %98 = vmatprep.subr.mxu0 0.0
  %99 = vmatpush1.msra.mxu0 %v56
  %100 = vmatprep.subr.mxu0 0.0
  %101 = vmatpush1.msra.mxu0 %v58
  %102 = vmatprep.subr.mxu0 0.0
  %103 = vmatpush1.msra.mxu0 %v60
  %104 = vmatprep.subr.mxu0 0.0
  %105 = vmatpush1.msra.mxu0 %v62
  %106 = vmatprep.subr.mxu0 0.0
  %107 = vmatpush1.msra.mxu0 0.0
  %108 = vmatprep.subr.mxu0 0.0
  %109 = vmatpush1.msra.mxu0 0.0
  %110 = vmatprep.subr.mxu0 0.0
  %111 = vmatpush1.msra.mxu0 0.0
  %112 = vmatprep.subr.mxu0 0.0
  %113 = vmatpush1.msra.mxu0 0.0
  %114 = vmatprep.subr.mxu0 0.0
  %115 = vmatpush1.msra.mxu0 0.0
  %116 = vmatprep.subr.mxu0 0.0
  %117 = vmatpush1.msra.mxu0 0.0
  %118 = vmatprep.subr.mxu0 0.0
  %119 = vmatpush1.msra.mxu0 0.0
  %120 = vmatprep.subr.mxu0 0.0
  %121 = vmatpush1.msra.mxu0 0.0
  %122 = vmatprep.subr.mxu0 0.0
  %123 = vmatpush1.msra.mxu0 0.0
  %124 = vmatprep.subr.mxu0 0.0
  %125 = vmatpush1.msra.mxu0 0.0
  %126 = vmatprep.subr.mxu0 0.0
  %127 = vmatpush1.msra.mxu0 0.0
  %128 = vmatprep.subr.mxu0 0.0
  %129 = vmatpush1.msra.mxu0 0.0
  %130 = vmatprep.subr.mxu0 0.0
  %131 = vmatpush1.msra.mxu0 0.0
  %132 = vmatprep.subr.mxu0 0.0
  %133 = vmatpush1.msra.mxu0 0.0
  %134 = vmatprep.subr.mxu0 0.0
  %135 = vmatpush1.msra.mxu0 0.0
  %136 = vmatprep.subr.mxu0 0.0
  %137 = vmatpush1.msra.mxu0 0.0
  %138 = vmatprep.subr.mxu0 0.0
  %139 = vmatpush1.msra.mxu0 0.0
  %140 = vmatprep.subr.mxu0 0.0
  %141 = vmatpush1.msra.mxu0 0.0
  %142 = vmatprep.subr.mxu0 0.0
  %143 = vmatpush1.msra.mxu0 0.0
  %144 = vmatprep.subr.mxu0 0.0
  %145 = vmatpush1.msra.mxu0 0.0
  %146 = vmatprep.subr.mxu0 0.0
  %147 = vmatpush1.msra.mxu0 0.0
  %148 = vmatprep.subr.mxu0 0.0
  %149 = vmatpush1.msra.mxu0 0.0
  %150 = vmatprep.subr.mxu0 0.0
  %151 = vmatpush1.msra.mxu0 0.0
  %152 = vmatprep.subr.mxu0 0.0
  %153 = vmatpush1.msra.mxu0 0.0
  %154 = vmatprep.subr.mxu0 0.0
  %155 = vmatpush1.msra.mxu0 0.0
  %156 = vmatprep.subr.mxu0 0.0
  %157 = vmatpush1.msra.mxu0 0.0
  %158 = vmatprep.subr.mxu0 0.0
  %159 = vmatpush1.msra.mxu0 0.0
  %160 = vmatprep.subr.mxu0 0.0
  %161 = vmatpush1.msra.mxu0 0.0
  %162 = vmatprep.mubr.f32.mxu0 0.0
  %163 = vmatmul.mubr.f32.gmra.mrb[0].mxu0 %v87
  %v164 = vpop.f32.mrb[0].mxu0
  %v165 = vadd.f32 %v84, %v164
  %v166 = vpop.f32.mrb[0].mxu0
  %167 = vmatprep.mubr.f32.mxu0 0.0
  %168 = vmatmul.mubr.f32.gmra.mrb[0].mxu0 %v90
  %v169 = vpop.f32.mrb[0].mxu0
  %v170 = vadd.f32 %v84, %v169
  %v171 = vpop.f32.mrb[0].mxu0
  %172 = vmatprep.mubr.f32.mxu0 0.0
  %173 = vmatmul.mubr.f32.gmra.mrb[0].mxu0 %v93
  %v174 = vpop.f32.mrb[0].mxu0
  %v175 = vadd.f32 %v84, %v174
  %v176 = vpop.f32.mrb[0].mxu0
  %177 = vmatprep.mubr.f32.mxu0 0.0
  %178 = vmatmul.mubr.f32.gmra.mrb[0].mxu0 %v96
  %v179 = vpop.f32.mrb[0].mxu0
  %v180 = vadd.f32 %v84, %v179
  %v181 = vpop.f32.mrb[0].mxu0
  %182 = vdwg.mxu0
  %187 = vrot.lane.b32.xlu0 %v165, 96
  %v188 = vpop.permute.xlu0 %187
  %189 = vrot.lane.b32.xlu0 %v170, 96
  %v190 = vpop.permute.xlu0 %189
  %191 = vrot.lane.b32.xlu0 %v175, 96
  %v192 = vpop.permute.xlu0 %191
  %193 = vrot.lane.b32.xlu0 %v180, 96
  %v194 = vpop.permute.xlu0 %193
  %vm195 = vcmask 64512
  %v196 = vsel %vm195, %v165, 0
  %v198 = vsel %vm195, %v170, 0
  %v200 = vsel %vm195, %v175, 0
  %v202 = vsel %vm195, %v180, 0
  %v204 = vsel %vm195, %v188, 0
  %v206 = vsel %vm195, %v190, 0
  %v208 = vsel %vm195, %v192, 0
  %v210 = vsel %vm195, %v194, 0
  %212 = vmatprep.subr.mxu0 0.0
  %213 = vmatpush1.xpose.msra.mxu0 %v204
  %214 = vmatprep.subr.mxu0 0.0
  %215 = vmatpush1.xpose.msra.mxu0 %v206
  %216 = vmatprep.subr.mxu0 0.0
  %217 = vmatpush1.xpose.msra.mxu0 %v208
  %218 = vmatprep.subr.mxu0 0.0
  %219 = vmatpush1.xpose.msra.mxu0 %v210
  %220 = vmatprep.subr.mxu0 0.0
  %221 = vmatpush1.xpose.msra.mxu0 0.0
  %222 = vmatprep.subr.mxu0 0.0
  %223 = vmatpush1.xpose.msra.mxu0 0.0
  %224 = vmatprep.subr.mxu0 0.0
  %225 = vmatpush1.xpose.msra.mxu0 0.0
  %226 = vmatprep.subr.mxu0 0.0
  %227 = vmatpush1.xpose.msra.mxu0 0.0
  %228 = vmatprep.subr.mxu0 0.0
  %229 = vmatpush1.xpose.msra.mxu0 0.0
  %230 = vmatprep.subr.mxu0 0.0
  %231 = vmatpush1.xpose.msra.mxu0 0.0
  %232 = vmatprep.subr.mxu0 0.0
  %233 = vmatpush1.xpose.msra.mxu0 0.0
  %234 = vmatprep.subr.mxu0 0.0
  %235 = vmatpush1.xpose.msra.mxu0 0.0
  %236 = vmatprep.subr.mxu0 0.0
  %237 = vmatpush1.xpose.msra.mxu0 0.0
  %238 = vmatprep.subr.mxu0 0.0
  %239 = vmatpush1.xpose.msra.mxu0 0.0
  %240 = vmatprep.subr.mxu0 0.0
  %241 = vmatpush1.xpose.msra.mxu0 0.0
  %242 = vmatprep.subr.mxu0 0.0
  %243 = vmatpush1.xpose.msra.mxu0 0.0
  %244 = vmatprep.subr.mxu0 0.0
  %245 = vmatpush1.xpose.msra.mxu0 0.0
  %246 = vmatprep.subr.mxu0 0.0
  %247 = vmatpush1.xpose.msra.mxu0 0.0
  %248 = vmatprep.subr.mxu0 0.0
  %249 = vmatpush1.xpose.msra.mxu0 0.0
  %250 = vmatprep.subr.mxu0 0.0
  %251 = vmatpush1.xpose.msra.mxu0 0.0
  %252 = vmatprep.subr.mxu0 0.0
  %253 = vmatpush1.xpose.msra.mxu0 0.0
  %254 = vmatprep.subr.mxu0 0.0
  %255 = vmatpush1.xpose.msra.mxu0 0.0
  %256 = vmatprep.subr.mxu0 0.0
  %257 = vmatpush1.xpose.msra.mxu0 0.0
  %258 = vmatprep.subr.mxu0 0.0
  %259 = vmatpush1.xpose.msra.mxu0 0.0
  %260 = vmatprep.subr.mxu0 0.0
  %261 = vmatpush1.xpose.msra.mxu0 0.0
  %262 = vmatprep.subr.mxu0 0.0
  %263 = vmatpush1.xpose.msra.mxu0 0.0
  %264 = vmatprep.subr.mxu0 0.0
  %265 = vmatpush1.xpose.msra.mxu0 0.0
  %266 = vmatprep.subr.mxu0 0.0
  %267 = vmatpush1.xpose.msra.mxu0 0.0
  %268 = vmatprep.subr.mxu0 0.0
  %269 = vmatpush1.xpose.msra.mxu0 0.0
  %270 = vmatprep.subr.mxu0 0.0
  %271 = vmatpush1.xpose.msra.mxu0 0.0
  %272 = vmatprep.subr.mxu0 0.0
  %273 = vmatpush1.xpose.msra.mxu0 0.0
  %274 = vmatprep.subr.mxu0 0.0
  %275 = vmatpush1.xpose.msra.mxu0 0.0
  %276 = vmatprep.mubr.f32.mxu0 0.0
  %277 = vmatmul.mubr.f32.gmra.mrb[0].mxu0 %v196
  %v278 = vpop.f32.mrb[0].mxu0
  %v279 = vadd.f32 %v52, %v278
  %v280 = vpop.f32.mrb[0].mxu0
  %281 = vmatprep.mubr.f32.mxu0 0.0
  %282 = vmatmul.mubr.f32.gmra.mrb[0].mxu0 %v198
  %v283 = vpop.f32.mrb[0].mxu0
  %v284 = vadd.f32 %v53, %v283
  %v285 = vpop.f32.mrb[0].mxu0
  %286 = vmatprep.mubr.f32.mxu0 0.0
  %287 = vmatmul.mubr.f32.gmra.mrb[0].mxu0 %v200
  %v288 = vpop.f32.mrb[0].mxu0
  %v289 = vadd.f32 %v54, %v288
  %v290 = vpop.f32.mrb[0].mxu0
  %291 = vmatprep.mubr.f32.mxu0 0.0
  %292 = vmatmul.mubr.f32.gmra.mrb[0].mxu0 %v202
  %v293 = vpop.f32.mrb[0].mxu0
  %v294 = vadd.f32 %v55, %v293
  %v295 = vpop.f32.mrb[0].mxu0
  %296 = vdwg.mxu0
  %v297 = vsel %vm85, %v279, -inf
  %298 = vmax.xlane.f32.xlu0 %v297
  %v299 = vpop.xlane.xlu0 %298
  %v300 = vsel %vm85, %v284, -inf
  %301 = vmax.xlane.f32.xlu0 %v300
  %v302 = vpop.xlane.xlu0 %301
  %v303 = vsel %vm85, %v289, -inf
  %304 = vmax.xlane.f32.xlu0 %v303
  %v305 = vpop.xlane.xlu0 %304
  %v306 = vsel %vm85, %v294, -inf
  %307 = vmax.xlane.f32.xlu0 %v306
  %v308 = vpop.xlane.xlu0 %307
  %v309 = vsub.f32 %v279, %v299
  %v310 = vsub.f32 %v284, %v302
  %v311 = vsub.f32 %v289, %v305
  %v312 = vsub.f32 %v294, %v308
  %v313 = vmul.f32 %v309, 1.442695
  %v314 = vpow.pop %v313
  %v315 = vmul.f32 %v310, 1.442695
  %v316 = vpow.pop %v315
  %v317 = vmul.f32 %v311, 1.442695
  %v318 = vpow.pop %v317
  %v319 = vmul.f32 %v312, 1.442695
  %v320 = vpow.pop %v319
  %v321 = vsel %vm85, %v314, 0.0
  %322 = vadd.xlane.f32.xlu0 %v321
  %v323 = vpop.xlane.xlu0 %322
  %v324 = vsel %vm85, %v316, 0.0
  %325 = vadd.xlane.f32.xlu0 %v324
  %v326 = vpop.xlane.xlu0 %325
  %v327 = vsel %vm85, %v318, 0.0
  %328 = vadd.xlane.f32.xlu0 %v327
  %v329 = vpop.xlane.xlu0 %328
  %v330 = vsel %vm85, %v320, 0.0
  %331 = vadd.xlane.f32.xlu0 %v330
  %v332 = vpop.xlane.xlu0 %331
  %v333 = vrcp.pop %v323
  %v334 = vmul.f32 %v314, %v333
  %v335 = vrcp.pop %v326
  %v336 = vmul.f32 %v316, %v335
  %v337 = vrcp.pop %v329
  %v338 = vmul.f32 %v318, %v337
  %v339 = vrcp.pop %v332
  %v340 = vmul.f32 %v320, %v339
  %341 = vrot.lane.b32.xlu0 %v165, 64
  %v342 = vpop.permute.xlu0 %341
  %343 = vrot.lane.b32.xlu0 %v170, 64
  %v344 = vpop.permute.xlu0 %343
  %345 = vrot.lane.b32.xlu0 %v175, 64
  %v346 = vpop.permute.xlu0 %345
  %347 = vrot.lane.b32.xlu0 %v180, 64
  %v348 = vpop.permute.xlu0 %347
  %v354 = vsel %vm85, %v334, 0
  %v357 = vsel %vm85, %v336, 0
  %v360 = vsel %vm85, %v338, 0
  %v363 = vsel %vm85, %v340, 0
  %365 = vmatprep.subr.mxu0 0.0
  %366 = vmatpush1.msra.mxu0 %v342
  %367 = vmatprep.subr.mxu0 0.0
  %368 = vmatpush1.msra.mxu0 %v344
  %369 = vmatprep.subr.mxu0 0.0
  %370 = vmatpush1.msra.mxu0 %v346
  %371 = vmatprep.subr.mxu0 0.0
  %372 = vmatpush1.msra.mxu0 %v348
  %373 = vmatprep.subr.mxu0 0.0
  %374 = vmatpush1.msra.mxu0 0.0
  %375 = vmatprep.subr.mxu0 0.0
  %376 = vmatpush1.msra.mxu0 0.0
  %377 = vmatprep.subr.mxu0 0.0
  %378 = vmatpush1.msra.mxu0 0.0
  %379 = vmatprep.subr.mxu0 0.0
  %380 = vmatpush1.msra.mxu0 0.0
  %381 = vmatprep.subr.mxu0 0.0
  %382 = vmatpush1.msra.mxu0 0.0
  %383 = vmatprep.subr.mxu0 0.0
  %384 = vmatpush1.msra.mxu0 0.0
  %385 = vmatprep.subr.mxu0 0.0
  %386 = vmatpush1.msra.mxu0 0.0
  %387 = vmatprep.subr.mxu0 0.0
  %388 = vmatpush1.msra.mxu0 0.0
  %389 = vmatprep.subr.mxu0 0.0
  %390 = vmatpush1.msra.mxu0 0.0
  %391 = vmatprep.subr.mxu0 0.0
  %392 = vmatpush1.msra.mxu0 0.0
  %393 = vmatprep.subr.mxu0 0.0
  %394 = vmatpush1.msra.mxu0 0.0
  %395 = vmatprep.subr.mxu0 0.0
  %396 = vmatpush1.msra.mxu0 0.0
  %397 = vmatprep.subr.mxu0 0.0
  %398 = vmatpush1.msra.mxu0 0.0
  %399 = vmatprep.subr.mxu0 0.0
  %400 = vmatpush1.msra.mxu0 0.0
  %401 = vmatprep.subr.mxu0 0.0
  %402 = vmatpush1.msra.mxu0 0.0
  %403 = vmatprep.subr.mxu0 0.0
  %404 = vmatpush1.msra.mxu0 0.0
  %405 = vmatprep.subr.mxu0 0.0
  %406 = vmatpush1.msra.mxu0 0.0
  %407 = vmatprep.subr.mxu0 0.0
  %408 = vmatpush1.msra.mxu0 0.0
  %409 = vmatprep.subr.mxu0 0.0
  %410 = vmatpush1.msra.mxu0 0.0
  %411 = vmatprep.subr.mxu0 0.0
  %412 = vmatpush1.msra.mxu0 0.0
  %413 = vmatprep.subr.mxu0 0.0
  %414 = vmatpush1.msra.mxu0 0.0
  %415 = vmatprep.subr.mxu0 0.0
  %416 = vmatpush1.msra.mxu0 0.0
  %417 = vmatprep.subr.mxu0 0.0
  %418 = vmatpush1.msra.mxu0 0.0
  %419 = vmatprep.subr.mxu0 0.0
  %420 = vmatpush1.msra.mxu0 0.0
  %421 = vmatprep.subr.mxu0 0.0
  %422 = vmatpush1.msra.mxu0 0.0
  %423 = vmatprep.subr.mxu0 0.0
  %424 = vmatpush1.msra.mxu0 0.0
  %425 = vmatprep.subr.mxu0 0.0
  %426 = vmatpush1.msra.mxu0 0.0
  %427 = vmatprep.subr.mxu0 0.0
  %428 = vmatpush1.msra.mxu0 0.0
  %429 = vmatprep.mubr.f32.mxu0 0.0
  %430 = vmatmul.mubr.f32.gmra.mrb[0].mxu0 %v354
  %v431 = vpop.f32.mrb[0].mxu0
  %v432 = vadd.f32 0.0, %v431
  %v433 = vpop.f32.mrb[0].mxu0
  %434 = vmatprep.mubr.f32.mxu0 0.0
  %435 = vmatmul.mubr.f32.gmra.mrb[0].mxu0 %v357
  %v436 = vpop.f32.mrb[0].mxu0
  %v437 = vadd.f32 0.0, %v436
  %v438 = vpop.f32.mrb[0].mxu0
  %439 = vmatprep.mubr.f32.mxu0 0.0
  %440 = vmatmul.mubr.f32.gmra.mrb[0].mxu0 %v360
  %v441 = vpop.f32.mrb[0].mxu0
  %v442 = vadd.f32 0.0, %v441
  %v443 = vpop.f32.mrb[0].mxu0
  %444 = vmatprep.mubr.f32.mxu0 0.0
  %445 = vmatmul.mubr.f32.gmra.mrb[0].mxu0 %v363
  %v446 = vpop.f32.mrb[0].mxu0
  %v447 = vadd.f32 0.0, %v446
  %v448 = vpop.f32.mrb[0].mxu0
  %449 = vdwg.mxu0
  %450 = vrot.lane.b32.xlu0 %v165, 120
  %v451 = vpop.permute.xlu0 %450
  %452 = vrot.lane.b32.xlu0 %v170, 120
  %v453 = vpop.permute.xlu0 %452
  %454 = vrot.lane.b32.xlu0 %v175, 120
  %v455 = vpop.permute.xlu0 %454
  %456 = vrot.lane.b32.xlu0 %v180, 120
  %v457 = vpop.permute.xlu0 %456
  %458 = vrot.lane.b32.xlu0 %v165, 88
  %v459 = vpop.permute.xlu0 %458
  %460 = vrot.lane.b32.xlu0 %v170, 88
  %v461 = vpop.permute.xlu0 %460
  %462 = vrot.lane.b32.xlu0 %v175, 88
  %v463 = vpop.permute.xlu0 %462
  %464 = vrot.lane.b32.xlu0 %v180, 88
  %v465 = vpop.permute.xlu0 %464
  %v466 = vsel %vm195, %v451, 0
  %v468 = vsel %vm195, %v453, 0
  %v470 = vsel %vm195, %v455, 0
  %v472 = vsel %vm195, %v457, 0
  %v474 = vsel %vm195, %v459, 0
  %v476 = vsel %vm195, %v461, 0
  %v478 = vsel %vm195, %v463, 0
  %v480 = vsel %vm195, %v465, 0
  %482 = vmatprep.subr.mxu0 0.0
  %483 = vmatpush1.xpose.msra.mxu0 %v474
  %484 = vmatprep.subr.mxu0 0.0
  %485 = vmatpush1.xpose.msra.mxu0 %v476
  %486 = vmatprep.subr.mxu0 0.0
  %487 = vmatpush1.xpose.msra.mxu0 %v478
  %488 = vmatprep.subr.mxu0 0.0
  %489 = vmatpush1.xpose.msra.mxu0 %v480
  %490 = vmatprep.subr.mxu0 0.0
  %491 = vmatpush1.xpose.msra.mxu0 0.0
  %492 = vmatprep.subr.mxu0 0.0
  %493 = vmatpush1.xpose.msra.mxu0 0.0
  %494 = vmatprep.subr.mxu0 0.0
  %495 = vmatpush1.xpose.msra.mxu0 0.0
  %496 = vmatprep.subr.mxu0 0.0
  %497 = vmatpush1.xpose.msra.mxu0 0.0
  %498 = vmatprep.subr.mxu0 0.0
  %499 = vmatpush1.xpose.msra.mxu0 0.0
  %500 = vmatprep.subr.mxu0 0.0
  %501 = vmatpush1.xpose.msra.mxu0 0.0
  %502 = vmatprep.subr.mxu0 0.0
  %503 = vmatpush1.xpose.msra.mxu0 0.0
  %504 = vmatprep.subr.mxu0 0.0
  %505 = vmatpush1.xpose.msra.mxu0 0.0
  %506 = vmatprep.subr.mxu0 0.0
  %507 = vmatpush1.xpose.msra.mxu0 0.0
  %508 = vmatprep.subr.mxu0 0.0
  %509 = vmatpush1.xpose.msra.mxu0 0.0
  %510 = vmatprep.subr.mxu0 0.0
  %511 = vmatpush1.xpose.msra.mxu0 0.0
  %512 = vmatprep.subr.mxu0 0.0
  %513 = vmatpush1.xpose.msra.mxu0 0.0
  %514 = vmatprep.subr.mxu0 0.0
  %515 = vmatpush1.xpose.msra.mxu0 0.0
  %516 = vmatprep.subr.mxu0 0.0
  %517 = vmatpush1.xpose.msra.mxu0 0.0
  %518 = vmatprep.subr.mxu0 0.0
  %519 = vmatpush1.xpose.msra.mxu0 0.0
  %520 = vmatprep.subr.mxu0 0.0
  %521 = vmatpush1.xpose.msra.mxu0 0.0
  %522 = vmatprep.subr.mxu0 0.0
  %523 = vmatpush1.xpose.msra.mxu0 0.0
  %524 = vmatprep.subr.mxu0 0.0
  %525 = vmatpush1.xpose.msra.mxu0 0.0
  %526 = vmatprep.subr.mxu0 0.0
  %527 = vmatpush1.xpose.msra.mxu0 0.0
  %528 = vmatprep.subr.mxu0 0.0
  %529 = vmatpush1.xpose.msra.mxu0 0.0
  %530 = vmatprep.subr.mxu0 0.0
  %531 = vmatpush1.xpose.msra.mxu0 0.0
  %532 = vmatprep.subr.mxu0 0.0
  %533 = vmatpush1.xpose.msra.mxu0 0.0
  %534 = vmatprep.subr.mxu0 0.0
  %535 = vmatpush1.xpose.msra.mxu0 0.0
  %536 = vmatprep.subr.mxu0 0.0
  %537 = vmatpush1.xpose.msra.mxu0 0.0
  %538 = vmatprep.subr.mxu0 0.0
  %539 = vmatpush1.xpose.msra.mxu0 0.0
  %540 = vmatprep.subr.mxu0 0.0
  %541 = vmatpush1.xpose.msra.mxu0 0.0
  %542 = vmatprep.subr.mxu0 0.0
  %543 = vmatpush1.xpose.msra.mxu0 0.0
  %544 = vmatprep.subr.mxu0 0.0
  %545 = vmatpush1.xpose.msra.mxu0 0.0
  %546 = vmatprep.mubr.f32.mxu0 0.0
  %547 = vmatmul.mubr.f32.gmra.mrb[0].mxu0 %v466
  %v548 = vpop.f32.mrb[0].mxu0
  %v549 = vadd.f32 %v52, %v548
  %v550 = vpop.f32.mrb[0].mxu0
  %551 = vmatprep.mubr.f32.mxu0 0.0
  %552 = vmatmul.mubr.f32.gmra.mrb[0].mxu0 %v468
  %v553 = vpop.f32.mrb[0].mxu0
  %v554 = vadd.f32 %v53, %v553
  %v555 = vpop.f32.mrb[0].mxu0
  %556 = vmatprep.mubr.f32.mxu0 0.0
  %557 = vmatmul.mubr.f32.gmra.mrb[0].mxu0 %v470
  %v558 = vpop.f32.mrb[0].mxu0
  %v559 = vadd.f32 %v54, %v558
  %v560 = vpop.f32.mrb[0].mxu0
  %561 = vmatprep.mubr.f32.mxu0 0.0
  %562 = vmatmul.mubr.f32.gmra.mrb[0].mxu0 %v472
  %v563 = vpop.f32.mrb[0].mxu0
  %v564 = vadd.f32 %v55, %v563
  %v565 = vpop.f32.mrb[0].mxu0
  %566 = vdwg.mxu0
  %v567 = vsel %vm85, %v549, -inf
  %568 = vmax.xlane.f32.xlu0 %v567
  %v569 = vpop.xlane.xlu0 %568
  %v570 = vsel %vm85, %v554, -inf
  %571 = vmax.xlane.f32.xlu0 %v570
  %v572 = vpop.xlane.xlu0 %571
  %v573 = vsel %vm85, %v559, -inf
  %574 = vmax.xlane.f32.xlu0 %v573
  %v575 = vpop.xlane.xlu0 %574
  %v576 = vsel %vm85, %v564, -inf
  %577 = vmax.xlane.f32.xlu0 %v576
  %v578 = vpop.xlane.xlu0 %577
  %v579 = vsub.f32 %v549, %v569
  %v580 = vsub.f32 %v554, %v572
  %v581 = vsub.f32 %v559, %v575
  %v582 = vsub.f32 %v564, %v578
  %v583 = vmul.f32 %v579, 1.442695
  %v584 = vpow.pop %v583
  %v585 = vmul.f32 %v580, 1.442695
  %v586 = vpow.pop %v585
  %v587 = vmul.f32 %v581, 1.442695
  %v588 = vpow.pop %v587
  %v589 = vmul.f32 %v582, 1.442695
  %v590 = vpow.pop %v589
  %v591 = vsel %vm85, %v584, 0.0
  %592 = vadd.xlane.f32.xlu0 %v591
  %v593 = vpop.xlane.xlu0 %592
  %v594 = vsel %vm85, %v586, 0.0
  %595 = vadd.xlane.f32.xlu0 %v594
  %v596 = vpop.xlane.xlu0 %595
  %v597 = vsel %vm85, %v588, 0.0
  %598 = vadd.xlane.f32.xlu0 %v597
  %v599 = vpop.xlane.xlu0 %598
  %v600 = vsel %vm85, %v590, 0.0
  %601 = vadd.xlane.f32.xlu0 %v600
  %v602 = vpop.xlane.xlu0 %601
  %v603 = vrcp.pop %v593
  %v604 = vmul.f32 %v584, %v603
  %v605 = vrcp.pop %v596
  %v606 = vmul.f32 %v586, %v605
  %v607 = vrcp.pop %v599
  %v608 = vmul.f32 %v588, %v607
  %v609 = vrcp.pop %v602
  %v610 = vmul.f32 %v590, %v609
  %611 = vrot.lane.b32.xlu0 %v165, 56
  %v612 = vpop.permute.xlu0 %611
  %613 = vrot.lane.b32.xlu0 %v170, 56
  %v614 = vpop.permute.xlu0 %613
  %615 = vrot.lane.b32.xlu0 %v175, 56
  %v616 = vpop.permute.xlu0 %615
  %617 = vrot.lane.b32.xlu0 %v180, 56
  %v618 = vpop.permute.xlu0 %617
  %v624 = vsel %vm85, %v604, 0
  %v627 = vsel %vm85, %v606, 0
  %v630 = vsel %vm85, %v608, 0
  %v633 = vsel %vm85, %v610, 0
  %635 = vmatprep.subr.mxu0 0.0
  %636 = vmatpush1.msra.mxu0 %v612
  %637 = vmatprep.subr.mxu0 0.0
  %638 = vmatpush1.msra.mxu0 %v614
  %639 = vmatprep.subr.mxu0 0.0
  %640 = vmatpush1.msra.mxu0 %v616
  %641 = vmatprep.subr.mxu0 0.0
  %642 = vmatpush1.msra.mxu0 %v618
  %643 = vmatprep.subr.mxu0 0.0
  %644 = vmatpush1.msra.mxu0 0.0
  %645 = vmatprep.subr.mxu0 0.0
  %646 = vmatpush1.msra.mxu0 0.0
  %647 = vmatprep.subr.mxu0 0.0
  %648 = vmatpush1.msra.mxu0 0.0
  %649 = vmatprep.subr.mxu0 0.0
  %650 = vmatpush1.msra.mxu0 0.0
  %651 = vmatprep.subr.mxu0 0.0
  %652 = vmatpush1.msra.mxu0 0.0
  %653 = vmatprep.subr.mxu0 0.0
  %654 = vmatpush1.msra.mxu0 0.0
  %655 = vmatprep.subr.mxu0 0.0
  %656 = vmatpush1.msra.mxu0 0.0
  %657 = vmatprep.subr.mxu0 0.0
  %658 = vmatpush1.msra.mxu0 0.0
  %659 = vmatprep.subr.mxu0 0.0
  %660 = vmatpush1.msra.mxu0 0.0
  %661 = vmatprep.subr.mxu0 0.0
  %662 = vmatpush1.msra.mxu0 0.0
  %663 = vmatprep.subr.mxu0 0.0
  %664 = vmatpush1.msra.mxu0 0.0
  %665 = vmatprep.subr.mxu0 0.0
  %666 = vmatpush1.msra.mxu0 0.0
  %667 = vmatprep.subr.mxu0 0.0
  %668 = vmatpush1.msra.mxu0 0.0
  %669 = vmatprep.subr.mxu0 0.0
  %670 = vmatpush1.msra.mxu0 0.0
  %671 = vmatprep.subr.mxu0 0.0
  %672 = vmatpush1.msra.mxu0 0.0
  %673 = vmatprep.subr.mxu0 0.0
  %674 = vmatpush1.msra.mxu0 0.0
  %675 = vmatprep.subr.mxu0 0.0
  %676 = vmatpush1.msra.mxu0 0.0
  %677 = vmatprep.subr.mxu0 0.0
  %678 = vmatpush1.msra.mxu0 0.0
  %679 = vmatprep.subr.mxu0 0.0
  %680 = vmatpush1.msra.mxu0 0.0
  %681 = vmatprep.subr.mxu0 0.0
  %682 = vmatpush1.msra.mxu0 0.0
  %683 = vmatprep.subr.mxu0 0.0
  %684 = vmatpush1.msra.mxu0 0.0
  %685 = vmatprep.subr.mxu0 0.0
  %686 = vmatpush1.msra.mxu0 0.0
  %687 = vmatprep.subr.mxu0 0.0
  %688 = vmatpush1.msra.mxu0 0.0
  %689 = vmatprep.subr.mxu0 0.0
  %690 = vmatpush1.msra.mxu0 0.0
  %691 = vmatprep.subr.mxu0 0.0
  %692 = vmatpush1.msra.mxu0 0.0
  %693 = vmatprep.subr.mxu0 0.0
  %694 = vmatpush1.msra.mxu0 0.0
  %695 = vmatprep.subr.mxu0 0.0
  %696 = vmatpush1.msra.mxu0 0.0
  %697 = vmatprep.subr.mxu0 0.0
  %698 = vmatpush1.msra.mxu0 0.0
  %699 = vmatprep.mubr.f32.mxu0 0.0
  %700 = vmatmul.mubr.f32.gmra.mrb[0].mxu0 %v624
  %v701 = vpop.f32.mrb[0].mxu0
  %v702 = vadd.f32 0.0, %v701
  %v703 = vpop.f32.mrb[0].mxu0
  %704 = vmatprep.mubr.f32.mxu0 0.0
  %705 = vmatmul.mubr.f32.gmra.mrb[0].mxu0 %v627
  %v706 = vpop.f32.mrb[0].mxu0
  %v707 = vadd.f32 0.0, %v706
  %v708 = vpop.f32.mrb[0].mxu0
  %709 = vmatprep.mubr.f32.mxu0 0.0
  %710 = vmatmul.mubr.f32.gmra.mrb[0].mxu0 %v630
  %v711 = vpop.f32.mrb[0].mxu0
  %v712 = vadd.f32 0.0, %v711
  %v713 = vpop.f32.mrb[0].mxu0
  %714 = vmatprep.mubr.f32.mxu0 0.0
  %715 = vmatmul.mubr.f32.gmra.mrb[0].mxu0 %v633
  %v716 = vpop.f32.mrb[0].mxu0
  %v717 = vadd.f32 0.0, %v716
  %v718 = vpop.f32.mrb[0].mxu0
  %719 = vdwg.mxu0
  %720 = vrot.lane.b32.xlu0 %v165, 112
  %v721 = vpop.permute.xlu0 %720
  %722 = vrot.lane.b32.xlu0 %v170, 112
  %v723 = vpop.permute.xlu0 %722
  %724 = vrot.lane.b32.xlu0 %v175, 112
  %v725 = vpop.permute.xlu0 %724
  %726 = vrot.lane.b32.xlu0 %v180, 112
  %v727 = vpop.permute.xlu0 %726
  %728 = vrot.lane.b32.xlu0 %v165, 80
  %v729 = vpop.permute.xlu0 %728
  %730 = vrot.lane.b32.xlu0 %v170, 80
  %v731 = vpop.permute.xlu0 %730
  %732 = vrot.lane.b32.xlu0 %v175, 80
  %v733 = vpop.permute.xlu0 %732
  %734 = vrot.lane.b32.xlu0 %v180, 80
  %v735 = vpop.permute.xlu0 %734
  %v736 = vsel %vm195, %v721, 0
  %v738 = vsel %vm195, %v723, 0
  %v740 = vsel %vm195, %v725, 0
  %v742 = vsel %vm195, %v727, 0
  %v744 = vsel %vm195, %v729, 0
  %v746 = vsel %vm195, %v731, 0
  %v748 = vsel %vm195, %v733, 0
  %v750 = vsel %vm195, %v735, 0
  %752 = vmatprep.subr.mxu0 0.0
  %753 = vmatpush1.xpose.msra.mxu0 %v744
  %754 = vmatprep.subr.mxu0 0.0
  %755 = vmatpush1.xpose.msra.mxu0 %v746
  %756 = vmatprep.subr.mxu0 0.0
  %757 = vmatpush1.xpose.msra.mxu0 %v748
  %758 = vmatprep.subr.mxu0 0.0
  %759 = vmatpush1.xpose.msra.mxu0 %v750
  %760 = vmatprep.subr.mxu0 0.0
  %761 = vmatpush1.xpose.msra.mxu0 0.0
  %762 = vmatprep.subr.mxu0 0.0
  %763 = vmatpush1.xpose.msra.mxu0 0.0
  %764 = vmatprep.subr.mxu0 0.0
  %765 = vmatpush1.xpose.msra.mxu0 0.0
  %766 = vmatprep.subr.mxu0 0.0
  %767 = vmatpush1.xpose.msra.mxu0 0.0
  %768 = vmatprep.subr.mxu0 0.0
  %769 = vmatpush1.xpose.msra.mxu0 0.0
  %770 = vmatprep.subr.mxu0 0.0
  %771 = vmatpush1.xpose.msra.mxu0 0.0
  %772 = vmatprep.subr.mxu0 0.0
  %773 = vmatpush1.xpose.msra.mxu0 0.0
  %774 = vmatprep.subr.mxu0 0.0
  %775 = vmatpush1.xpose.msra.mxu0 0.0
  %776 = vmatprep.subr.mxu0 0.0
  %777 = vmatpush1.xpose.msra.mxu0 0.0
  %778 = vmatprep.subr.mxu0 0.0
  %779 = vmatpush1.xpose.msra.mxu0 0.0
  %780 = vmatprep.subr.mxu0 0.0
  %781 = vmatpush1.xpose.msra.mxu0 0.0
  %782 = vmatprep.subr.mxu0 0.0
  %783 = vmatpush1.xpose.msra.mxu0 0.0
  %784 = vmatprep.subr.mxu0 0.0
  %785 = vmatpush1.xpose.msra.mxu0 0.0
  %786 = vmatprep.subr.mxu0 0.0
  %787 = vmatpush1.xpose.msra.mxu0 0.0
  %788 = vmatprep.subr.mxu0 0.0
  %789 = vmatpush1.xpose.msra.mxu0 0.0
  %790 = vmatprep.subr.mxu0 0.0
  %791 = vmatpush1.xpose.msra.mxu0 0.0
  %792 = vmatprep.subr.mxu0 0.0
  %793 = vmatpush1.xpose.msra.mxu0 0.0
  %794 = vmatprep.subr.mxu0 0.0
  %795 = vmatpush1.xpose.msra.mxu0 0.0
  %796 = vmatprep.subr.mxu0 0.0
  %797 = vmatpush1.xpose.msra.mxu0 0.0
  %798 = vmatprep.subr.mxu0 0.0
  %799 = vmatpush1.xpose.msra.mxu0 0.0
  %800 = vmatprep.subr.mxu0 0.0
  %801 = vmatpush1.xpose.msra.mxu0 0.0
  %802 = vmatprep.subr.mxu0 0.0
  %803 = vmatpush1.xpose.msra.mxu0 0.0
  %804 = vmatprep.subr.mxu0 0.0
  %805 = vmatpush1.xpose.msra.mxu0 0.0
  %806 = vmatprep.subr.mxu0 0.0
  %807 = vmatpush1.xpose.msra.mxu0 0.0
  %808 = vmatprep.subr.mxu0 0.0
  %809 = vmatpush1.xpose.msra.mxu0 0.0
  %810 = vmatprep.subr.mxu0 0.0
  %811 = vmatpush1.xpose.msra.mxu0 0.0
  %812 = vmatprep.subr.mxu0 0.0
  %813 = vmatpush1.xpose.msra.mxu0 0.0
  %814 = vmatprep.subr.mxu0 0.0
  %815 = vmatpush1.xpose.msra.mxu0 0.0
  %816 = vmatprep.mubr.f32.mxu0 0.0
  %817 = vmatmul.mubr.f32.gmra.mrb[0].mxu0 %v736
  %v818 = vpop.f32.mrb[0].mxu0
  %v819 = vadd.f32 %v52, %v818
  %v820 = vpop.f32.mrb[0].mxu0
  %821 = vmatprep.mubr.f32.mxu0 0.0
  %822 = vmatmul.mubr.f32.gmra.mrb[0].mxu0 %v738
  %v823 = vpop.f32.mrb[0].mxu0
  %v824 = vadd.f32 %v53, %v823
  %v825 = vpop.f32.mrb[0].mxu0
  %826 = vmatprep.mubr.f32.mxu0 0.0
  %827 = vmatmul.mubr.f32.gmra.mrb[0].mxu0 %v740
  %v828 = vpop.f32.mrb[0].mxu0
  %v829 = vadd.f32 %v54, %v828
  %v830 = vpop.f32.mrb[0].mxu0
  %831 = vmatprep.mubr.f32.mxu0 0.0
  %832 = vmatmul.mubr.f32.gmra.mrb[0].mxu0 %v742
  %v833 = vpop.f32.mrb[0].mxu0
  %v834 = vadd.f32 %v55, %v833
  %v835 = vpop.f32.mrb[0].mxu0
  %836 = vdwg.mxu0
  %v837 = vsel %vm85, %v819, -inf
  %838 = vmax.xlane.f32.xlu0 %v837
  %v839 = vpop.xlane.xlu0 %838
  %v840 = vsel %vm85, %v824, -inf
  %841 = vmax.xlane.f32.xlu0 %v840
  %v842 = vpop.xlane.xlu0 %841
  %v843 = vsel %vm85, %v829, -inf
  %844 = vmax.xlane.f32.xlu0 %v843
  %v845 = vpop.xlane.xlu0 %844
  %v846 = vsel %vm85, %v834, -inf
  %847 = vmax.xlane.f32.xlu0 %v846
  %v848 = vpop.xlane.xlu0 %847
  %v849 = vsub.f32 %v819, %v839
  %v850 = vsub.f32 %v824, %v842
  %v851 = vsub.f32 %v829, %v845
  %v852 = vsub.f32 %v834, %v848
  %v853 = vmul.f32 %v849, 1.442695
  %v854 = vpow.pop %v853
  %v855 = vmul.f32 %v850, 1.442695
  %v856 = vpow.pop %v855
  %v857 = vmul.f32 %v851, 1.442695
  %v858 = vpow.pop %v857
  %v859 = vmul.f32 %v852, 1.442695
  %v860 = vpow.pop %v859
  %v861 = vsel %vm85, %v854, 0.0
  %862 = vadd.xlane.f32.xlu0 %v861
  %v863 = vpop.xlane.xlu0 %862
  %v864 = vsel %vm85, %v856, 0.0
  %865 = vadd.xlane.f32.xlu0 %v864
  %v866 = vpop.xlane.xlu0 %865
  %v867 = vsel %vm85, %v858, 0.0
  %868 = vadd.xlane.f32.xlu0 %v867
  %v869 = vpop.xlane.xlu0 %868
  %v870 = vsel %vm85, %v860, 0.0
  %871 = vadd.xlane.f32.xlu0 %v870
  %v872 = vpop.xlane.xlu0 %871
  %v873 = vrcp.pop %v863
  %v874 = vmul.f32 %v854, %v873
  %v875 = vrcp.pop %v866
  %v876 = vmul.f32 %v856, %v875
  %v877 = vrcp.pop %v869
  %v878 = vmul.f32 %v858, %v877
  %v879 = vrcp.pop %v872
  %v880 = vmul.f32 %v860, %v879
  %881 = vrot.lane.b32.xlu0 %v165, 48
  %v882 = vpop.permute.xlu0 %881
  %883 = vrot.lane.b32.xlu0 %v170, 48
  %v884 = vpop.permute.xlu0 %883
  %885 = vrot.lane.b32.xlu0 %v175, 48
  %v886 = vpop.permute.xlu0 %885
  %887 = vrot.lane.b32.xlu0 %v180, 48
  %v888 = vpop.permute.xlu0 %887
  %v894 = vsel %vm85, %v874, 0
  %v897 = vsel %vm85, %v876, 0
  %v900 = vsel %vm85, %v878, 0
  %v903 = vsel %vm85, %v880, 0
  %905 = vmatprep.subr.mxu0 0.0
  %906 = vmatpush1.msra.mxu0 %v882
  %907 = vmatprep.subr.mxu0 0.0
  %908 = vmatpush1.msra.mxu0 %v884
  %909 = vmatprep.subr.mxu0 0.0
  %910 = vmatpush1.msra.mxu0 %v886
  %911 = vmatprep.subr.mxu0 0.0
  %912 = vmatpush1.msra.mxu0 %v888
  %913 = vmatprep.subr.mxu0 0.0
  %914 = vmatpush1.msra.mxu0 0.0
  %915 = vmatprep.subr.mxu0 0.0
  %916 = vmatpush1.msra.mxu0 0.0
  %917 = vmatprep.subr.mxu0 0.0
  %918 = vmatpush1.msra.mxu0 0.0
  %919 = vmatprep.subr.mxu0 0.0
  %920 = vmatpush1.msra.mxu0 0.0
  %921 = vmatprep.subr.mxu0 0.0
  %922 = vmatpush1.msra.mxu0 0.0
  %923 = vmatprep.subr.mxu0 0.0
  %924 = vmatpush1.msra.mxu0 0.0
  %925 = vmatprep.subr.mxu0 0.0
  %926 = vmatpush1.msra.mxu0 0.0
  %927 = vmatprep.subr.mxu0 0.0
  %928 = vmatpush1.msra.mxu0 0.0
  %929 = vmatprep.subr.mxu0 0.0
  %930 = vmatpush1.msra.mxu0 0.0
  %931 = vmatprep.subr.mxu0 0.0
  %932 = vmatpush1.msra.mxu0 0.0
  %933 = vmatprep.subr.mxu0 0.0
  %934 = vmatpush1.msra.mxu0 0.0
  %935 = vmatprep.subr.mxu0 0.0
  %936 = vmatpush1.msra.mxu0 0.0
  %937 = vmatprep.subr.mxu0 0.0
  %938 = vmatpush1.msra.mxu0 0.0
  %939 = vmatprep.subr.mxu0 0.0
  %940 = vmatpush1.msra.mxu0 0.0
  %941 = vmatprep.subr.mxu0 0.0
  %942 = vmatpush1.msra.mxu0 0.0
  %943 = vmatprep.subr.mxu0 0.0
  %944 = vmatpush1.msra.mxu0 0.0
  %945 = vmatprep.subr.mxu0 0.0
  %946 = vmatpush1.msra.mxu0 0.0
  %947 = vmatprep.subr.mxu0 0.0
  %948 = vmatpush1.msra.mxu0 0.0
  %949 = vmatprep.subr.mxu0 0.0
  %950 = vmatpush1.msra.mxu0 0.0
  %951 = vmatprep.subr.mxu0 0.0
  %952 = vmatpush1.msra.mxu0 0.0
  %953 = vmatprep.subr.mxu0 0.0
  %954 = vmatpush1.msra.mxu0 0.0
  %955 = vmatprep.subr.mxu0 0.0
  %956 = vmatpush1.msra.mxu0 0.0
  %957 = vmatprep.subr.mxu0 0.0
  %958 = vmatpush1.msra.mxu0 0.0
  %959 = vmatprep.subr.mxu0 0.0
  %960 = vmatpush1.msra.mxu0 0.0
  %961 = vmatprep.subr.mxu0 0.0
  %962 = vmatpush1.msra.mxu0 0.0
  %963 = vmatprep.subr.mxu0 0.0
  %964 = vmatpush1.msra.mxu0 0.0
  %965 = vmatprep.subr.mxu0 0.0
  %966 = vmatpush1.msra.mxu0 0.0
  %967 = vmatprep.subr.mxu0 0.0
  %968 = vmatpush1.msra.mxu0 0.0
  %969 = vmatprep.mubr.f32.mxu0 0.0
  %970 = vmatmul.mubr.f32.gmra.mrb[0].mxu0 %v894
  %v971 = vpop.f32.mrb[0].mxu0
  %v972 = vadd.f32 0.0, %v971
  %v973 = vpop.f32.mrb[0].mxu0
  %974 = vmatprep.mubr.f32.mxu0 0.0
  %975 = vmatmul.mubr.f32.gmra.mrb[0].mxu0 %v897
  %v976 = vpop.f32.mrb[0].mxu0
  %v977 = vadd.f32 0.0, %v976
  %v978 = vpop.f32.mrb[0].mxu0
  %979 = vmatprep.mubr.f32.mxu0 0.0
  %980 = vmatmul.mubr.f32.gmra.mrb[0].mxu0 %v900
  %v981 = vpop.f32.mrb[0].mxu0
  %v982 = vadd.f32 0.0, %v981
  %v983 = vpop.f32.mrb[0].mxu0
  %984 = vmatprep.mubr.f32.mxu0 0.0
  %985 = vmatmul.mubr.f32.gmra.mrb[0].mxu0 %v903
  %v986 = vpop.f32.mrb[0].mxu0
  %v987 = vadd.f32 0.0, %v986
  %v988 = vpop.f32.mrb[0].mxu0
  %989 = vdwg.mxu0
  %990 = vrot.lane.b32.xlu0 %v165, 104
  %v991 = vpop.permute.xlu0 %990
  %992 = vrot.lane.b32.xlu0 %v170, 104
  %v993 = vpop.permute.xlu0 %992
  %994 = vrot.lane.b32.xlu0 %v175, 104
  %v995 = vpop.permute.xlu0 %994
  %996 = vrot.lane.b32.xlu0 %v180, 104
  %v997 = vpop.permute.xlu0 %996
  %998 = vrot.lane.b32.xlu0 %v165, 72
  %v999 = vpop.permute.xlu0 %998
  %1000 = vrot.lane.b32.xlu0 %v170, 72
  %v1001 = vpop.permute.xlu0 %1000
  %1002 = vrot.lane.b32.xlu0 %v175, 72
  %v1003 = vpop.permute.xlu0 %1002
  %1004 = vrot.lane.b32.xlu0 %v180, 72
  %v1005 = vpop.permute.xlu0 %1004
  %v1006 = vsel %vm195, %v991, 0
  %v1008 = vsel %vm195, %v993, 0
  %v1010 = vsel %vm195, %v995, 0
  %v1012 = vsel %vm195, %v997, 0
  %v1014 = vsel %vm195, %v999, 0
  %v1016 = vsel %vm195, %v1001, 0
  %v1018 = vsel %vm195, %v1003, 0
  %v1020 = vsel %vm195, %v1005, 0
  %1022 = vmatprep.subr.mxu0 0.0
  %1023 = vmatpush1.xpose.msra.mxu0 %v1014
  %1024 = vmatprep.subr.mxu0 0.0
  %1025 = vmatpush1.xpose.msra.mxu0 %v1016
  %1026 = vmatprep.subr.mxu0 0.0
  %1027 = vmatpush1.xpose.msra.mxu0 %v1018
  %1028 = vmatprep.subr.mxu0 0.0
  %1029 = vmatpush1.xpose.msra.mxu0 %v1020
  %1030 = vmatprep.subr.mxu0 0.0
  %1031 = vmatpush1.xpose.msra.mxu0 0.0
  %1032 = vmatprep.subr.mxu0 0.0
  %1033 = vmatpush1.xpose.msra.mxu0 0.0
  %1034 = vmatprep.subr.mxu0 0.0
  %1035 = vmatpush1.xpose.msra.mxu0 0.0
  %1036 = vmatprep.subr.mxu0 0.0
  %1037 = vmatpush1.xpose.msra.mxu0 0.0
  %1038 = vmatprep.subr.mxu0 0.0
  %1039 = vmatpush1.xpose.msra.mxu0 0.0
  %1040 = vmatprep.subr.mxu0 0.0
  %1041 = vmatpush1.xpose.msra.mxu0 0.0
  %1042 = vmatprep.subr.mxu0 0.0
  %1043 = vmatpush1.xpose.msra.mxu0 0.0
  %1044 = vmatprep.subr.mxu0 0.0
  %1045 = vmatpush1.xpose.msra.mxu0 0.0
  %1046 = vmatprep.subr.mxu0 0.0
  %1047 = vmatpush1.xpose.msra.mxu0 0.0
  %1048 = vmatprep.subr.mxu0 0.0
  %1049 = vmatpush1.xpose.msra.mxu0 0.0
  %1050 = vmatprep.subr.mxu0 0.0
  %1051 = vmatpush1.xpose.msra.mxu0 0.0
  %1052 = vmatprep.subr.mxu0 0.0
  %1053 = vmatpush1.xpose.msra.mxu0 0.0
  %1054 = vmatprep.subr.mxu0 0.0
  %1055 = vmatpush1.xpose.msra.mxu0 0.0
  %1056 = vmatprep.subr.mxu0 0.0
  %1057 = vmatpush1.xpose.msra.mxu0 0.0
  %1058 = vmatprep.subr.mxu0 0.0
  %1059 = vmatpush1.xpose.msra.mxu0 0.0
  %1060 = vmatprep.subr.mxu0 0.0
  %1061 = vmatpush1.xpose.msra.mxu0 0.0
  %1062 = vmatprep.subr.mxu0 0.0
  %1063 = vmatpush1.xpose.msra.mxu0 0.0
  %1064 = vmatprep.subr.mxu0 0.0
  %1065 = vmatpush1.xpose.msra.mxu0 0.0
  %1066 = vmatprep.subr.mxu0 0.0
  %1067 = vmatpush1.xpose.msra.mxu0 0.0
  %1068 = vmatprep.subr.mxu0 0.0
  %1069 = vmatpush1.xpose.msra.mxu0 0.0
  %1070 = vmatprep.subr.mxu0 0.0
  %1071 = vmatpush1.xpose.msra.mxu0 0.0
  %1072 = vmatprep.subr.mxu0 0.0
  %1073 = vmatpush1.xpose.msra.mxu0 0.0
  %1074 = vmatprep.subr.mxu0 0.0
  %1075 = vmatpush1.xpose.msra.mxu0 0.0
  %1076 = vmatprep.subr.mxu0 0.0
  %1077 = vmatpush1.xpose.msra.mxu0 0.0
  %1078 = vmatprep.subr.mxu0 0.0
  %1079 = vmatpush1.xpose.msra.mxu0 0.0
  %1080 = vmatprep.subr.mxu0 0.0
  %1081 = vmatpush1.xpose.msra.mxu0 0.0
  %1082 = vmatprep.subr.mxu0 0.0
  %1083 = vmatpush1.xpose.msra.mxu0 0.0
  %1084 = vmatprep.subr.mxu0 0.0
  %1085 = vmatpush1.xpose.msra.mxu0 0.0
  %1086 = vmatprep.mubr.f32.mxu0 0.0
  %1087 = vmatmul.mubr.f32.gmra.mrb[0].mxu0 %v1006
  %v1088 = vpop.f32.mrb[0].mxu0
  %v1089 = vadd.f32 %v52, %v1088
  %v1090 = vpop.f32.mrb[0].mxu0
  %1091 = vmatprep.mubr.f32.mxu0 0.0
  %1092 = vmatmul.mubr.f32.gmra.mrb[0].mxu0 %v1008
  %v1093 = vpop.f32.mrb[0].mxu0
  %v1094 = vadd.f32 %v53, %v1093
  %v1095 = vpop.f32.mrb[0].mxu0
  %1096 = vmatprep.mubr.f32.mxu0 0.0
  %1097 = vmatmul.mubr.f32.gmra.mrb[0].mxu0 %v1010
  %v1098 = vpop.f32.mrb[0].mxu0
  %v1099 = vadd.f32 %v54, %v1098
  %v1100 = vpop.f32.mrb[0].mxu0
  %1101 = vmatprep.mubr.f32.mxu0 0.0
  %1102 = vmatmul.mubr.f32.gmra.mrb[0].mxu0 %v1012
  %v1103 = vpop.f32.mrb[0].mxu0
  %v1104 = vadd.f32 %v55, %v1103
  %v1105 = vpop.f32.mrb[0].mxu0
  %1106 = vdwg.mxu0
  %v1107 = vsel %vm85, %v1089, -inf
  %1108 = vmax.xlane.f32.xlu0 %v1107
  %v1109 = vpop.xlane.xlu0 %1108
  %v1110 = vsel %vm85, %v1094, -inf
  %1111 = vmax.xlane.f32.xlu0 %v1110
  %v1112 = vpop.xlane.xlu0 %1111
  %v1113 = vsel %vm85, %v1099, -inf
  %1114 = vmax.xlane.f32.xlu0 %v1113
  %v1115 = vpop.xlane.xlu0 %1114
  %v1116 = vsel %vm85, %v1104, -inf
  %1117 = vmax.xlane.f32.xlu0 %v1116
  %v1118 = vpop.xlane.xlu0 %1117
  %v1119 = vsub.f32 %v1089, %v1109
  %v1120 = vsub.f32 %v1094, %v1112
  %v1121 = vsub.f32 %v1099, %v1115
  %v1122 = vsub.f32 %v1104, %v1118
  %v1123 = vmul.f32 %v1119, 1.442695
  %v1124 = vpow.pop %v1123
  %v1125 = vmul.f32 %v1120, 1.442695
  %v1126 = vpow.pop %v1125
  %v1127 = vmul.f32 %v1121, 1.442695
  %v1128 = vpow.pop %v1127
  %v1129 = vmul.f32 %v1122, 1.442695
  %v1130 = vpow.pop %v1129
  %v1131 = vsel %vm85, %v1124, 0.0
  %1132 = vadd.xlane.f32.xlu0 %v1131
  %v1133 = vpop.xlane.xlu0 %1132
  %v1134 = vsel %vm85, %v1126, 0.0
  %1135 = vadd.xlane.f32.xlu0 %v1134
  %v1136 = vpop.xlane.xlu0 %1135
  %v1137 = vsel %vm85, %v1128, 0.0
  %1138 = vadd.xlane.f32.xlu0 %v1137
  %v1139 = vpop.xlane.xlu0 %1138
  %v1140 = vsel %vm85, %v1130, 0.0
  %1141 = vadd.xlane.f32.xlu0 %v1140
  %v1142 = vpop.xlane.xlu0 %1141
  %v1143 = vrcp.pop %v1133
  %v1144 = vmul.f32 %v1124, %v1143
  %v1145 = vrcp.pop %v1136
  %v1146 = vmul.f32 %v1126, %v1145
  %v1147 = vrcp.pop %v1139
  %v1148 = vmul.f32 %v1128, %v1147
  %v1149 = vrcp.pop %v1142
  %v1150 = vmul.f32 %v1130, %v1149
  %1151 = vrot.lane.b32.xlu0 %v165, 40
  %v1152 = vpop.permute.xlu0 %1151
  %1153 = vrot.lane.b32.xlu0 %v170, 40
  %v1154 = vpop.permute.xlu0 %1153
  %1155 = vrot.lane.b32.xlu0 %v175, 40
  %v1156 = vpop.permute.xlu0 %1155
  %1157 = vrot.lane.b32.xlu0 %v180, 40
  %v1158 = vpop.permute.xlu0 %1157
  %v1164 = vsel %vm85, %v1144, 0
  %v1167 = vsel %vm85, %v1146, 0
  %v1170 = vsel %vm85, %v1148, 0
  %v1173 = vsel %vm85, %v1150, 0
  %1175 = vmatprep.subr.mxu0 0.0
  %1176 = vmatpush1.msra.mxu0 %v1152
  %1177 = vmatprep.subr.mxu0 0.0
  %1178 = vmatpush1.msra.mxu0 %v1154
  %1179 = vmatprep.subr.mxu0 0.0
  %1180 = vmatpush1.msra.mxu0 %v1156
  %1181 = vmatprep.subr.mxu0 0.0
  %1182 = vmatpush1.msra.mxu0 %v1158
  %1183 = vmatprep.subr.mxu0 0.0
  %1184 = vmatpush1.msra.mxu0 0.0
  %1185 = vmatprep.subr.mxu0 0.0
  %1186 = vmatpush1.msra.mxu0 0.0
  %1187 = vmatprep.subr.mxu0 0.0
  %1188 = vmatpush1.msra.mxu0 0.0
  %1189 = vmatprep.subr.mxu0 0.0
  %1190 = vmatpush1.msra.mxu0 0.0
  %1191 = vmatprep.subr.mxu0 0.0
  %1192 = vmatpush1.msra.mxu0 0.0
  %1193 = vmatprep.subr.mxu0 0.0
  %1194 = vmatpush1.msra.mxu0 0.0
  %1195 = vmatprep.subr.mxu0 0.0
  %1196 = vmatpush1.msra.mxu0 0.0
  %1197 = vmatprep.subr.mxu0 0.0
  %1198 = vmatpush1.msra.mxu0 0.0
  %1199 = vmatprep.subr.mxu0 0.0
  %1200 = vmatpush1.msra.mxu0 0.0
  %1201 = vmatprep.subr.mxu0 0.0
  %1202 = vmatpush1.msra.mxu0 0.0
  %1203 = vmatprep.subr.mxu0 0.0
  %1204 = vmatpush1.msra.mxu0 0.0
  %1205 = vmatprep.subr.mxu0 0.0
  %1206 = vmatpush1.msra.mxu0 0.0
  %1207 = vmatprep.subr.mxu0 0.0
  %1208 = vmatpush1.msra.mxu0 0.0
  %1209 = vmatprep.subr.mxu0 0.0
  %1210 = vmatpush1.msra.mxu0 0.0
  %1211 = vmatprep.subr.mxu0 0.0
  %1212 = vmatpush1.msra.mxu0 0.0
  %1213 = vmatprep.subr.mxu0 0.0
  %1214 = vmatpush1.msra.mxu0 0.0
  %1215 = vmatprep.subr.mxu0 0.0
  %1216 = vmatpush1.msra.mxu0 0.0
  %1217 = vmatprep.subr.mxu0 0.0
  %1218 = vmatpush1.msra.mxu0 0.0
  %1219 = vmatprep.subr.mxu0 0.0
  %1220 = vmatpush1.msra.mxu0 0.0
  %1221 = vmatprep.subr.mxu0 0.0
  %1222 = vmatpush1.msra.mxu0 0.0
  %1223 = vmatprep.subr.mxu0 0.0
  %1224 = vmatpush1.msra.mxu0 0.0
  %1225 = vmatprep.subr.mxu0 0.0
  %1226 = vmatpush1.msra.mxu0 0.0
  %1227 = vmatprep.subr.mxu0 0.0
  %1228 = vmatpush1.msra.mxu0 0.0
  %1229 = vmatprep.subr.mxu0 0.0
  %1230 = vmatpush1.msra.mxu0 0.0
  %1231 = vmatprep.subr.mxu0 0.0
  %1232 = vmatpush1.msra.mxu0 0.0
  %1233 = vmatprep.subr.mxu0 0.0
  %1234 = vmatpush1.msra.mxu0 0.0
  %1235 = vmatprep.subr.mxu0 0.0
  %1236 = vmatpush1.msra.mxu0 0.0
  %1237 = vmatprep.subr.mxu0 0.0
  %1238 = vmatpush1.msra.mxu0 0.0
  %1239 = vmatprep.mubr.f32.mxu0 0.0
  %1240 = vmatmul.mubr.f32.gmra.mrb[0].mxu0 %v1164
  %v1241 = vpop.f32.mrb[0].mxu0
  %v1242 = vadd.f32 0.0, %v1241
  %v1243 = vpop.f32.mrb[0].mxu0
  %1244 = vmatprep.mubr.f32.mxu0 0.0
  %1245 = vmatmul.mubr.f32.gmra.mrb[0].mxu0 %v1167
  %v1246 = vpop.f32.mrb[0].mxu0
  %v1247 = vadd.f32 0.0, %v1246
  %v1248 = vpop.f32.mrb[0].mxu0
  %1249 = vmatprep.mubr.f32.mxu0 0.0
  %1250 = vmatmul.mubr.f32.gmra.mrb[0].mxu0 %v1170
  %v1251 = vpop.f32.mrb[0].mxu0
  %v1252 = vadd.f32 0.0, %v1251
  %v1253 = vpop.f32.mrb[0].mxu0
  %1254 = vmatprep.mubr.f32.mxu0 0.0
  %1255 = vmatmul.mubr.f32.gmra.mrb[0].mxu0 %v1173
  %v1256 = vpop.f32.mrb[0].mxu0
  %v1257 = vadd.f32 0.0, %v1256
  %v1258 = vpop.f32.mrb[0].mxu0
  %1259 = vdwg.mxu0
  %1264 = vrot.lane.b32.xlu0 %v702, 8
  %v1265 = vpop.permute.xlu0 %1264
  %1266 = vrot.lane.b32.xlu0 %v707, 8
  %v1267 = vpop.permute.xlu0 %1266
  %1268 = vrot.lane.b32.xlu0 %v712, 8
  %v1269 = vpop.permute.xlu0 %1268
  %1270 = vrot.lane.b32.xlu0 %v717, 8
  %v1271 = vpop.permute.xlu0 %1270
  %1280 = vrot.lane.b32.xlu0 %v972, 16
  %v1281 = vpop.permute.xlu0 %1280
  %1282 = vrot.lane.b32.xlu0 %v977, 16
  %v1283 = vpop.permute.xlu0 %1282
  %1284 = vrot.lane.b32.xlu0 %v982, 16
  %v1285 = vpop.permute.xlu0 %1284
  %1286 = vrot.lane.b32.xlu0 %v987, 16
  %v1287 = vpop.permute.xlu0 %1286
  %1296 = vrot.lane.b32.xlu0 %v1242, 24
  %v1297 = vpop.permute.xlu0 %1296
  %1298 = vrot.lane.b32.xlu0 %v1247, 24
  %v1299 = vpop.permute.xlu0 %1298
  %1300 = vrot.lane.b32.xlu0 %v1252, 24
  %v1301 = vpop.permute.xlu0 %1300
  %1302 = vrot.lane.b32.xlu0 %v1257, 24
  %v1303 = vpop.permute.xlu0 %1302
  %v1308 = vsel %vm195, %v432, %v1265
  %v1309 = vsel %vm195, %v437, %v1267
  %v1310 = vsel %vm195, %v442, %v1269
  %v1311 = vsel %vm195, %v447, %v1271
  %vm1312 = vcmask 130048
  %v1313 = vsel %vm1312, %v1308, %v1281
  %v1314 = vsel %vm1312, %v1309, %v1283
  %v1315 = vsel %vm1312, %v1310, %v1285
  %v1316 = vsel %vm1312, %v1311, %v1287
  %vm1317 = vcmask 195584
  %v1318 = vsel %vm1317, %v1313, %v1297
  %v1319 = vsel %vm1317, %v1314, %v1299
  %v1320 = vsel %vm1317, %v1315, %v1301
  %v1321 = vsel %vm1317, %v1316, %v1303
  %v1322 = vlaneseq
  %v1323 = vshrl.u32 %v1322, 7
  %v1324 = vsub.s32 1, %v1323
  %v1325 = vrot.slane %v80, %v1324
  %1330 = vrot.lane.b32.xlu0 %v56, 32
  %v1331 = vpop.permute.xlu0 %1330
  %1332 = vrot.lane.b32.xlu0 %v58, 32
  %v1333 = vpop.permute.xlu0 %1332
  %1334 = vrot.lane.b32.xlu0 %v60, 32
  %v1335 = vpop.permute.xlu0 %1334
  %1336 = vrot.lane.b32.xlu0 %v62, 32
  %v1337 = vpop.permute.xlu0 %1336
  %v1343 = vsel %vm85, %v1318, 0
  %v1346 = vsel %vm85, %v1319, 0
  %v1349 = vsel %vm85, %v1320, 0
  %v1352 = vsel %vm85, %v1321, 0
  %1354 = vmatprep.subr.mxu0 0.0
  %1355 = vmatpush1.msra.mxu0 %v1331
  %1356 = vmatprep.subr.mxu0 0.0
  %1357 = vmatpush1.msra.mxu0 %v1333
  %1358 = vmatprep.subr.mxu0 0.0
  %1359 = vmatpush1.msra.mxu0 %v1335
  %1360 = vmatprep.subr.mxu0 0.0
  %1361 = vmatpush1.msra.mxu0 %v1337
  %1362 = vmatprep.subr.mxu0 0.0
  %1363 = vmatpush1.msra.mxu0 0.0
  %1364 = vmatprep.subr.mxu0 0.0
  %1365 = vmatpush1.msra.mxu0 0.0
  %1366 = vmatprep.subr.mxu0 0.0
  %1367 = vmatpush1.msra.mxu0 0.0
  %1368 = vmatprep.subr.mxu0 0.0
  %1369 = vmatpush1.msra.mxu0 0.0
  %1370 = vmatprep.subr.mxu0 0.0
  %1371 = vmatpush1.msra.mxu0 0.0
  %1372 = vmatprep.subr.mxu0 0.0
  %1373 = vmatpush1.msra.mxu0 0.0
  %1374 = vmatprep.subr.mxu0 0.0
  %1375 = vmatpush1.msra.mxu0 0.0
  %1376 = vmatprep.subr.mxu0 0.0
  %1377 = vmatpush1.msra.mxu0 0.0
  %1378 = vmatprep.subr.mxu0 0.0
  %1379 = vmatpush1.msra.mxu0 0.0
  %1380 = vmatprep.subr.mxu0 0.0
  %1381 = vmatpush1.msra.mxu0 0.0
  %1382 = vmatprep.subr.mxu0 0.0
  %1383 = vmatpush1.msra.mxu0 0.0
  %1384 = vmatprep.subr.mxu0 0.0
  %1385 = vmatpush1.msra.mxu0 0.0
  %1386 = vmatprep.subr.mxu0 0.0
  %1387 = vmatpush1.msra.mxu0 0.0
  %1388 = vmatprep.subr.mxu0 0.0
  %1389 = vmatpush1.msra.mxu0 0.0
  %1390 = vmatprep.subr.mxu0 0.0
  %1391 = vmatpush1.msra.mxu0 0.0
  %1392 = vmatprep.subr.mxu0 0.0
  %1393 = vmatpush1.msra.mxu0 0.0
  %1394 = vmatprep.subr.mxu0 0.0
  %1395 = vmatpush1.msra.mxu0 0.0
  %1396 = vmatprep.subr.mxu0 0.0
  %1397 = vmatpush1.msra.mxu0 0.0
  %1398 = vmatprep.subr.mxu0 0.0
  %1399 = vmatpush1.msra.mxu0 0.0
  %1400 = vmatprep.subr.mxu0 0.0
  %1401 = vmatpush1.msra.mxu0 0.0
  %1402 = vmatprep.subr.mxu0 0.0
  %1403 = vmatpush1.msra.mxu0 0.0
  %1404 = vmatprep.subr.mxu0 0.0
  %1405 = vmatpush1.msra.mxu0 0.0
  %1406 = vmatprep.subr.mxu0 0.0
  %1407 = vmatpush1.msra.mxu0 0.0
  %1408 = vmatprep.subr.mxu0 0.0
  %1409 = vmatpush1.msra.mxu0 0.0
  %1410 = vmatprep.subr.mxu0 0.0
  %1411 = vmatpush1.msra.mxu0 0.0
  %1412 = vmatprep.subr.mxu0 0.0
  %1413 = vmatpush1.msra.mxu0 0.0
  %1414 = vmatprep.subr.mxu0 0.0
  %1415 = vmatpush1.msra.mxu0 0.0
  %1416 = vmatprep.subr.mxu0 0.0
  %1417 = vmatpush1.msra.mxu0 0.0
  %1418 = vmatprep.mubr.f32.mxu0 0.0
  %1419 = vmatmul.mubr.f32.gmra.mrb[0].mxu0 %v1343
  %v1420 = vpop.f32.mrb[0].mxu0
  %v1421 = vadd.f32 %v1325, %v1420
  %v1422 = vpop.f32.mrb[0].mxu0
  %1423 = vmatprep.mubr.f32.mxu0 0.0
  %1424 = vmatmul.mubr.f32.gmra.mrb[0].mxu0 %v1346
  %v1425 = vpop.f32.mrb[0].mxu0
  %v1426 = vadd.f32 %v1325, %v1425
  %v1427 = vpop.f32.mrb[0].mxu0
  %1428 = vmatprep.mubr.f32.mxu0 0.0
  %1429 = vmatmul.mubr.f32.gmra.mrb[0].mxu0 %v1349
  %v1430 = vpop.f32.mrb[0].mxu0
  %v1431 = vadd.f32 %v1325, %v1430
  %v1432 = vpop.f32.mrb[0].mxu0
  %1433 = vmatprep.mubr.f32.mxu0 0.0
  %1434 = vmatmul.mubr.f32.gmra.mrb[0].mxu0 %v1352
  %v1435 = vpop.f32.mrb[0].mxu0
  %v1436 = vadd.f32 %v1325, %v1435
  %v1437 = vpop.f32.mrb[0].mxu0
  %1438 = vdwg.mxu0
  %v1439 = vadd.f32 %v23, %v1421
  %v1440 = vadd.f32 %v24, %v1426
  %v1441 = vadd.f32 %v25, %v1431
  %v1442 = vadd.f32 %v26, %v1436
  %v1443 = vsel %vm85, %v1439, 0.0
  %1444 = vadd.xlane.f32.xlu0 %v1443
  %v1445 = vpop.xlane.xlu0 %1444
  %v1446 = vsel %vm85, %v1440, 0.0
  %1447 = vadd.xlane.f32.xlu0 %v1446
  %v1448 = vpop.xlane.xlu0 %1447
  %v1449 = vsel %vm85, %v1441, 0.0
  %1450 = vadd.xlane.f32.xlu0 %v1449
  %v1451 = vpop.xlane.xlu0 %1450
  %v1452 = vsel %vm85, %v1442, 0.0
  %1453 = vadd.xlane.f32.xlu0 %v1452
  %v1454 = vpop.xlane.xlu0 %1453
  %v1455 = vrcp.pop 32.0
  %v1456 = vmul.f32 %v1445, %v1455
  %v1457 = vmul.f32 %v1448, %v1455
  %v1458 = vmul.f32 %v1451, %v1455
  %v1459 = vmul.f32 %v1454, %v1455
  %v1460 = vmul.f32 %v1439, %v1439
  %v1461 = vmul.f32 %v1440, %v1440
  %v1462 = vmul.f32 %v1441, %v1441
  %v1463 = vmul.f32 %v1442, %v1442
  %v1464 = vsel %vm85, %v1460, 0.0
  %1465 = vadd.xlane.f32.xlu0 %v1464
  %v1466 = vpop.xlane.xlu0 %1465
  %v1467 = vsel %vm85, %v1461, 0.0
  %1468 = vadd.xlane.f32.xlu0 %v1467
  %v1469 = vpop.xlane.xlu0 %1468
  %v1470 = vsel %vm85, %v1462, 0.0
  %1471 = vadd.xlane.f32.xlu0 %v1470
  %v1472 = vpop.xlane.xlu0 %1471
  %v1473 = vsel %vm85, %v1463, 0.0
  %1474 = vadd.xlane.f32.xlu0 %v1473
  %v1475 = vpop.xlane.xlu0 %1474
  %v1476 = vmul.f32 %v1466, %v1455
  %v1477 = vmul.f32 %v1469, %v1455
  %v1478 = vmul.f32 %v1472, %v1455
  %v1479 = vmul.f32 %v1475, %v1455
  %v1480 = vmul.f32 %v1456, %v1456
  %v1481 = vmul.f32 %v1457, %v1457
  %v1482 = vmul.f32 %v1458, %v1458
  %v1483 = vmul.f32 %v1459, %v1459
  %v1484 = vsub.f32 %v1476, %v1480
  %v1485 = vsub.f32 %v1477, %v1481
  %v1486 = vsub.f32 %v1478, %v1482
  %v1487 = vsub.f32 %v1479, %v1483
  %v1488 = vsub.f32 %v1439, %v1456
  %v1489 = vsub.f32 %v1440, %v1457
  %v1490 = vsub.f32 %v1441, %v1458
  %v1491 = vsub.f32 %v1442, %v1459
  %v1492 = vadd.f32 %v1484, 1e-05
  %v1493 = vadd.f32 %v1485, 1e-05
  %v1494 = vadd.f32 %v1486, 1e-05
  %v1495 = vadd.f32 %v1487, 1e-05
  %v1496 = vrsqrt.pop %v1492
  %v1497 = vrsqrt.pop %v1493
  %v1498 = vrsqrt.pop %v1494
  %v1499 = vrsqrt.pop %v1495
  %v1500 = vmul.f32 %v1488, %v1496
  %v1501 = vmul.f32 %v1489, %v1497
  %v1502 = vmul.f32 %v1490, %v1498
  %v1503 = vmul.f32 %v1491, %v1499
  %v1504 = vlaneseq
  %v1505 = vshrl.u32 %v1504, 7
  %v1506 = vsub.s32 4, %v1505
  %v1507 = vrot.slane %v80, %v1506
  %v1508 = vmul.f32 %v1500, %v1507
  %v1509 = vmul.f32 %v1501, %v1507
  %v1510 = vmul.f32 %v1502, %v1507
  %v1511 = vmul.f32 %v1503, %v1507
  %v1512 = vlaneseq
  %v1513 = vshrl.u32 %v1512, 7
  %v1514 = vsub.s32 5, %v1513
  %v1515 = vrot.slane %v80, %v1514
  %v1516 = vadd.f32 %v1508, %v1515
  %v1517 = vadd.f32 %v1509, %v1515
  %v1518 = vadd.f32 %v1510, %v1515
  %v1519 = vadd.f32 %v1511, %v1515
  %v1520 = vlaneseq
  %v1521 = vshrl.u32 %v1520, 7
  %v1522 = vsub.s32 2, %v1521
  %v1523 = vrot.slane %v80, %v1522
  %v1525 = vsel %vm85, %v1516, 0
  %v1528 = vsel %vm85, %v1517, 0
  %v1531 = vsel %vm85, %v1518, 0
  %v1534 = vsel %vm85, %v1519, 0
  %1536 = vmatprep.subr.mxu0 0.0
  %1537 = vmatpush1.msra.mxu0 %v57
  %1538 = vmatprep.subr.mxu0 0.0
  %1539 = vmatpush1.msra.mxu0 %v59
  %1540 = vmatprep.subr.mxu0 0.0
  %1541 = vmatpush1.msra.mxu0 %v61
  %1542 = vmatprep.subr.mxu0 0.0
  %1543 = vmatpush1.msra.mxu0 %v63
  %1544 = vmatprep.subr.mxu0 0.0
  %1545 = vmatpush1.msra.mxu0 0.0
  %1546 = vmatprep.subr.mxu0 0.0
  %1547 = vmatpush1.msra.mxu0 0.0
  %1548 = vmatprep.subr.mxu0 0.0
  %1549 = vmatpush1.msra.mxu0 0.0
  %1550 = vmatprep.subr.mxu0 0.0
  %1551 = vmatpush1.msra.mxu0 0.0
  %1552 = vmatprep.subr.mxu0 0.0
  %1553 = vmatpush1.msra.mxu0 0.0
  %1554 = vmatprep.subr.mxu0 0.0
  %1555 = vmatpush1.msra.mxu0 0.0
  %1556 = vmatprep.subr.mxu0 0.0
  %1557 = vmatpush1.msra.mxu0 0.0
  %1558 = vmatprep.subr.mxu0 0.0
  %1559 = vmatpush1.msra.mxu0 0.0
  %1560 = vmatprep.subr.mxu0 0.0
  %1561 = vmatpush1.msra.mxu0 0.0
  %1562 = vmatprep.subr.mxu0 0.0
  %1563 = vmatpush1.msra.mxu0 0.0
  %1564 = vmatprep.subr.mxu0 0.0
  %1565 = vmatpush1.msra.mxu0 0.0
  %1566 = vmatprep.subr.mxu0 0.0
  %1567 = vmatpush1.msra.mxu0 0.0
  %1568 = vmatprep.subr.mxu0 0.0
  %1569 = vmatpush1.msra.mxu0 0.0
  %1570 = vmatprep.subr.mxu0 0.0
  %1571 = vmatpush1.msra.mxu0 0.0
  %1572 = vmatprep.subr.mxu0 0.0
  %1573 = vmatpush1.msra.mxu0 0.0
  %1574 = vmatprep.subr.mxu0 0.0
  %1575 = vmatpush1.msra.mxu0 0.0
  %1576 = vmatprep.subr.mxu0 0.0
  %1577 = vmatpush1.msra.mxu0 0.0
  %1578 = vmatprep.subr.mxu0 0.0
  %1579 = vmatpush1.msra.mxu0 0.0
  %1580 = vmatprep.subr.mxu0 0.0
  %1581 = vmatpush1.msra.mxu0 0.0
  %1582 = vmatprep.subr.mxu0 0.0
  %1583 = vmatpush1.msra.mxu0 0.0
  %1584 = vmatprep.subr.mxu0 0.0
  %1585 = vmatpush1.msra.mxu0 0.0
  %1586 = vmatprep.subr.mxu0 0.0
  %1587 = vmatpush1.msra.mxu0 0.0
  %1588 = vmatprep.subr.mxu0 0.0
  %1589 = vmatpush1.msra.mxu0 0.0
  %1590 = vmatprep.subr.mxu0 0.0
  %1591 = vmatpush1.msra.mxu0 0.0
  %1592 = vmatprep.subr.mxu0 0.0
  %1593 = vmatpush1.msra.mxu0 0.0
  %1594 = vmatprep.subr.mxu0 0.0
  %1595 = vmatpush1.msra.mxu0 0.0
  %1596 = vmatprep.subr.mxu0 0.0
  %1597 = vmatpush1.msra.mxu0 0.0
  %1598 = vmatprep.subr.mxu0 0.0
  %1599 = vmatpush1.msra.mxu0 0.0
  %1600 = vmatprep.mubr.f32.mxu0 0.0
  %1601 = vmatmul.mubr.f32.gmra.mrb[0].mxu0 %v1525
  %v1602 = vpop.f32.mrb[0].mxu0
  %v1603 = vadd.f32 %v1523, %v1602
  %v1604 = vpop.f32.mrb[0].mxu0
  %1605 = vmatprep.mubr.f32.mxu0 0.0
  %1606 = vmatmul.mubr.f32.gmra.mrb[0].mxu0 %v1528
  %v1607 = vpop.f32.mrb[0].mxu0
  %v1608 = vadd.f32 %v1523, %v1607
  %v1609 = vpop.f32.mrb[0].mxu0
  %1610 = vmatprep.mubr.f32.mxu0 0.0
  %1611 = vmatmul.mubr.f32.gmra.mrb[0].mxu0 %v1531
  %v1612 = vpop.f32.mrb[0].mxu0
  %v1613 = vadd.f32 %v1523, %v1612
  %v1614 = vpop.f32.mrb[0].mxu0
  %1615 = vmatprep.mubr.f32.mxu0 0.0
  %1616 = vmatmul.mubr.f32.gmra.mrb[0].mxu0 %v1534
  %v1617 = vpop.f32.mrb[0].mxu0
  %v1618 = vadd.f32 %v1523, %v1617
  %v1619 = vpop.f32.mrb[0].mxu0
  %1620 = vdwg.mxu0
  %v1621 = vmax.f32 %v1603, 0.0
  %v1622 = vmax.f32 %v1608, 0.0
  %v1623 = vmax.f32 %v1613, 0.0
  %v1624 = vmax.f32 %v1618, 0.0
  %v1625 = vlaneseq
  %v1626 = vshrl.u32 %v1625, 7
  %v1627 = vsub.s32 3, %v1626
  %v1628 = vrot.slane %v80, %v1627
  %1629 = vmatprep.subr.mxu0 0.0
  %1630 = vmatpush1.msra.mxu0 %v64
  %1631 = vmatprep.subr.mxu0 0.0
  %1632 = vmatpush1.msra.mxu0 %v65
  %1633 = vmatprep.subr.mxu0 0.0
  %1634 = vmatpush1.msra.mxu0 %v66
  %1635 = vmatprep.subr.mxu0 0.0
  %1636 = vmatpush1.msra.mxu0 %v67
  %1637 = vmatprep.subr.mxu0 0.0
  %1638 = vmatpush1.msra.mxu0 %v68
  %1639 = vmatprep.subr.mxu0 0.0
  %1640 = vmatpush1.msra.mxu0 %v69
  %1641 = vmatprep.subr.mxu0 0.0
  %1642 = vmatpush1.msra.mxu0 %v70
  %1643 = vmatprep.subr.mxu0 0.0
  %1644 = vmatpush1.msra.mxu0 %v71
  %1645 = vmatprep.subr.mxu0 0.0
  %1646 = vmatpush1.msra.mxu0 %v72
  %1647 = vmatprep.subr.mxu0 0.0
  %1648 = vmatpush1.msra.mxu0 %v73
  %1649 = vmatprep.subr.mxu0 0.0
  %1650 = vmatpush1.msra.mxu0 %v74
  %1651 = vmatprep.subr.mxu0 0.0
  %1652 = vmatpush1.msra.mxu0 %v75
  %1653 = vmatprep.subr.mxu0 0.0
  %1654 = vmatpush1.msra.mxu0 %v76
  %1655 = vmatprep.subr.mxu0 0.0
  %1656 = vmatpush1.msra.mxu0 %v77
  %1657 = vmatprep.subr.mxu0 0.0
  %1658 = vmatpush1.msra.mxu0 %v78
  %1659 = vmatprep.subr.mxu0 0.0
  %1660 = vmatpush1.msra.mxu0 %v79
  %1661 = vmatprep.subr.mxu0 0.0
  %1662 = vmatpush1.msra.mxu0 0.0
  %1663 = vmatprep.subr.mxu0 0.0
  %1664 = vmatpush1.msra.mxu0 0.0
  %1665 = vmatprep.subr.mxu0 0.0
  %1666 = vmatpush1.msra.mxu0 0.0
  %1667 = vmatprep.subr.mxu0 0.0
  %1668 = vmatpush1.msra.mxu0 0.0
  %1669 = vmatprep.subr.mxu0 0.0
  %1670 = vmatpush1.msra.mxu0 0.0
  %1671 = vmatprep.subr.mxu0 0.0
  %1672 = vmatpush1.msra.mxu0 0.0
  %1673 = vmatprep.subr.mxu0 0.0
  %1674 = vmatpush1.msra.mxu0 0.0
  %1675 = vmatprep.subr.mxu0 0.0
  %1676 = vmatpush1.msra.mxu0 0.0
  %1677 = vmatprep.subr.mxu0 0.0
  %1678 = vmatpush1.msra.mxu0 0.0
  %1679 = vmatprep.subr.mxu0 0.0
  %1680 = vmatpush1.msra.mxu0 0.0
  %1681 = vmatprep.subr.mxu0 0.0
  %1682 = vmatpush1.msra.mxu0 0.0
  %1683 = vmatprep.subr.mxu0 0.0
  %1684 = vmatpush1.msra.mxu0 0.0
  %1685 = vmatprep.subr.mxu0 0.0
  %1686 = vmatpush1.msra.mxu0 0.0
  %1687 = vmatprep.subr.mxu0 0.0
  %1688 = vmatpush1.msra.mxu0 0.0
  %1689 = vmatprep.subr.mxu0 0.0
  %1690 = vmatpush1.msra.mxu0 0.0
  %1691 = vmatprep.subr.mxu0 0.0
  %1692 = vmatpush1.msra.mxu0 0.0
  %1693 = vmatprep.mubr.f32.mxu0 0.0
  %1694 = vmatmul.mubr.f32.gmra.mrb[0].mxu0 %v1621
  %v1695 = vpop.f32.mrb[0].mxu0
  %v1696 = vadd.f32 %v1628, %v1695
  %v1697 = vpop.f32.mrb[0].mxu0
  %1698 = vmatprep.mubr.f32.mxu0 0.0
  %1699 = vmatmul.mubr.f32.gmra.mrb[0].mxu0 %v1622
  %v1700 = vpop.f32.mrb[0].mxu0
  %v1701 = vadd.f32 %v1628, %v1700
  %v1702 = vpop.f32.mrb[0].mxu0
  %1703 = vmatprep.mubr.f32.mxu0 0.0
  %1704 = vmatmul.mubr.f32.gmra.mrb[0].mxu0 %v1623
  %v1705 = vpop.f32.mrb[0].mxu0
  %v1706 = vadd.f32 %v1628, %v1705
  %v1707 = vpop.f32.mrb[0].mxu0
  %1708 = vmatprep.mubr.f32.mxu0 0.0
  %1709 = vmatmul.mubr.f32.gmra.mrb[0].mxu0 %v1624
  %v1710 = vpop.f32.mrb[0].mxu0
  %v1711 = vadd.f32 %v1628, %v1710
  %v1712 = vpop.f32.mrb[0].mxu0
  %1713 = vdwg.mxu0
  %v1714 = vadd.f32 %v1516, %v1696
  %v1715 = vadd.f32 %v1517, %v1701
  %v1716 = vadd.f32 %v1518, %v1706
  %v1717 = vadd.f32 %v1519, %v1711
  %v1718 = vsel %vm85, %v1714, 0.0
  %1719 = vadd.xlane.f32.xlu0 %v1718
  %v1720 = vpop.xlane.xlu0 %1719
  %v1721 = vsel %vm85, %v1715, 0.0
  %1722 = vadd.xlane.f32.xlu0 %v1721
  %v1723 = vpop.xlane.xlu0 %1722
  %v1724 = vsel %vm85, %v1716, 0.0
  %1725 = vadd.xlane.f32.xlu0 %v1724
  %v1726 = vpop.xlane.xlu0 %1725
  %v1727 = vsel %vm85, %v1717, 0.0
  %1728 = vadd.xlane.f32.xlu0 %v1727
  %v1729 = vpop.xlane.xlu0 %1728
  %v1730 = vmul.f32 %v1720, %v1455
  %v1731 = vmul.f32 %v1723, %v1455
  %v1732 = vmul.f32 %v1726, %v1455
  %v1733 = vmul.f32 %v1729, %v1455
  %v1734 = vmul.f32 %v1714, %v1714
  %v1735 = vmul.f32 %v1715, %v1715
  %v1736 = vmul.f32 %v1716, %v1716
  %v1737 = vmul.f32 %v1717, %v1717
  %v1738 = vsel %vm85, %v1734, 0.0
  %1739 = vadd.xlane.f32.xlu0 %v1738
  %v1740 = vpop.xlane.xlu0 %1739
  %v1741 = vsel %vm85, %v1735, 0.0
  %1742 = vadd.xlane.f32.xlu0 %v1741
  %v1743 = vpop.xlane.xlu0 %1742
  %v1744 = vsel %vm85, %v1736, 0.0
  %1745 = vadd.xlane.f32.xlu0 %v1744
  %v1746 = vpop.xlane.xlu0 %1745
  %v1747 = vsel %vm85, %v1737, 0.0
  %1748 = vadd.xlane.f32.xlu0 %v1747
  %v1749 = vpop.xlane.xlu0 %1748
  %v1750 = vmul.f32 %v1740, %v1455
  %v1751 = vmul.f32 %v1743, %v1455
  %v1752 = vmul.f32 %v1746, %v1455
  %v1753 = vmul.f32 %v1749, %v1455
  %v1754 = vmul.f32 %v1730, %v1730
  %v1755 = vmul.f32 %v1731, %v1731
  %v1756 = vmul.f32 %v1732, %v1732
  %v1757 = vmul.f32 %v1733, %v1733
  %v1758 = vsub.f32 %v1750, %v1754
  %v1759 = vsub.f32 %v1751, %v1755
  %v1760 = vsub.f32 %v1752, %v1756
  %v1761 = vsub.f32 %v1753, %v1757
  %v1762 = vsub.f32 %v1714, %v1730
  %v1763 = vsub.f32 %v1715, %v1731
  %v1764 = vsub.f32 %v1716, %v1732
  %v1765 = vsub.f32 %v1717, %v1733
  %v1766 = vadd.f32 %v1758, 1e-05
  %v1767 = vadd.f32 %v1759, 1e-05
  %v1768 = vadd.f32 %v1760, 1e-05
  %v1769 = vadd.f32 %v1761, 1e-05
  %v1770 = vrsqrt.pop %v1766
  %v1771 = vrsqrt.pop %v1767
  %v1772 = vrsqrt.pop %v1768
  %v1773 = vrsqrt.pop %v1769
  %v1774 = vmul.f32 %v1762, %v1770
  %v1775 = vmul.f32 %v1763, %v1771
  %v1776 = vmul.f32 %v1764, %v1772
  %v1777 = vmul.f32 %v1765, %v1773
  %v1778 = vlaneseq
  %v1779 = vshrl.u32 %v1778, 7
  %v1780 = vsub.s32 6, %v1779
  %v1781 = vrot.slane %v80, %v1780
  %v1782 = vmul.f32 %v1774, %v1781
  %v1783 = vmul.f32 %v1775, %v1781
  %v1784 = vmul.f32 %v1776, %v1781
  %v1785 = vmul.f32 %v1777, %v1781
  %v1786 = vlaneseq
  %v1787 = vshrl.u32 %v1786, 7
  %v1788 = vsub.s32 7, %v1787
  %v1789 = vrot.slane %v80, %v1788
  %v1790 = vadd.f32 %v1782, %v1789
  %v1791 = vadd.f32 %v1783, %v1789
  %v1792 = vadd.f32 %v1784, %v1789
  %v1793 = vadd.f32 %v1785, %v1789
  %s1794 = scalar_lea.vmem %s3, 64
  %v1795 = vld [vmem:[%s1794] sm:$0xff]
  %v1796 = vld [vmem:[%s1794 + $0x8] sm:$0xff]
  %v1797 = vld [vmem:[%s1794 + $0x10] sm:$0xff]
  %v1798 = vld [vmem:[%s1794 + $0x18] sm:$0xff]
  %v1799 = vld [vmem:[%s1794 + $0x20] sm:$0xff]
  %v1800 = vld [vmem:[%s1794 + $0x28] sm:$0xff]
  %v1801 = vld [vmem:[%s1794 + $0x30] sm:$0xff]
  %v1802 = vld [vmem:[%s1794 + $0x38] sm:$0xff]
  %s1803 = scalar_lea.vmem %s4, 128
  %v1804 = vld [vmem:[%s1803] sm:$0xff]
  %v1805 = vld [vmem:[%s1803 + $0x8] sm:$0xff]
  %v1806 = vld [vmem:[%s1803 + $0x10] sm:$0xff]
  %v1807 = vld [vmem:[%s1803 + $0x18] sm:$0xff]
  %v1808 = vld [vmem:[%s1803 + $0x20] sm:$0xff]
  %v1809 = vld [vmem:[%s1803 + $0x28] sm:$0xff]
  %v1810 = vld [vmem:[%s1803 + $0x30] sm:$0xff]
  %v1811 = vld [vmem:[%s1803 + $0x38] sm:$0xff]
  %v1812 = vld [vmem:[%s1803 + $0x40] sm:$0xff]
  %v1813 = vld [vmem:[%s1803 + $0x48] sm:$0xff]
  %v1814 = vld [vmem:[%s1803 + $0x50] sm:$0xff]
  %v1815 = vld [vmem:[%s1803 + $0x58] sm:$0xff]
  %v1816 = vld [vmem:[%s1803 + $0x60] sm:$0xff]
  %v1817 = vld [vmem:[%s1803 + $0x68] sm:$0xff]
  %v1818 = vld [vmem:[%s1803 + $0x70] sm:$0xff]
  %v1819 = vld [vmem:[%s1803 + $0x78] sm:$0xff]
  %s1820 = scalar_lea.vmem %s5, 8
  %v1821 = vld [vmem:[%s1820] sm:$0xff]
  %v1822 = vlaneseq
  %v1823 = vshrl.u32 %v1822, 7
  %v1824 = vsub.s32 0, %v1823
  %v1825 = vrot.slane %v1821, %v1824
  %v1827 = vsel %vm85, %v1790, 0
  %v1830 = vsel %vm85, %v1791, 0
  %v1833 = vsel %vm85, %v1792, 0
  %v1836 = vsel %vm85, %v1793, 0
  %1838 = vmatprep.subr.mxu0 0.0
  %1839 = vmatpush1.msra.mxu0 %v1795
  %1840 = vmatprep.subr.mxu0 0.0
  %1841 = vmatpush1.msra.mxu0 %v1797
  %1842 = vmatprep.subr.mxu0 0.0
  %1843 = vmatpush1.msra.mxu0 %v1799
  %1844 = vmatprep.subr.mxu0 0.0
  %1845 = vmatpush1.msra.mxu0 %v1801
  %1846 = vmatprep.subr.mxu0 0.0
  %1847 = vmatpush1.msra.mxu0 0.0
  %1848 = vmatprep.subr.mxu0 0.0
  %1849 = vmatpush1.msra.mxu0 0.0
  %1850 = vmatprep.subr.mxu0 0.0
  %1851 = vmatpush1.msra.mxu0 0.0
  %1852 = vmatprep.subr.mxu0 0.0
  %1853 = vmatpush1.msra.mxu0 0.0
  %1854 = vmatprep.subr.mxu0 0.0
  %1855 = vmatpush1.msra.mxu0 0.0
  %1856 = vmatprep.subr.mxu0 0.0
  %1857 = vmatpush1.msra.mxu0 0.0
  %1858 = vmatprep.subr.mxu0 0.0
  %1859 = vmatpush1.msra.mxu0 0.0
  %1860 = vmatprep.subr.mxu0 0.0
  %1861 = vmatpush1.msra.mxu0 0.0
  %1862 = vmatprep.subr.mxu0 0.0
  %1863 = vmatpush1.msra.mxu0 0.0
  %1864 = vmatprep.subr.mxu0 0.0
  %1865 = vmatpush1.msra.mxu0 0.0
  %1866 = vmatprep.subr.mxu0 0.0
  %1867 = vmatpush1.msra.mxu0 0.0
  %1868 = vmatprep.subr.mxu0 0.0
  %1869 = vmatpush1.msra.mxu0 0.0
  %1870 = vmatprep.subr.mxu0 0.0
  %1871 = vmatpush1.msra.mxu0 0.0
  %1872 = vmatprep.subr.mxu0 0.0
  %1873 = vmatpush1.msra.mxu0 0.0
  %1874 = vmatprep.subr.mxu0 0.0
  %1875 = vmatpush1.msra.mxu0 0.0
  %1876 = vmatprep.subr.mxu0 0.0
  %1877 = vmatpush1.msra.mxu0 0.0
  %1878 = vmatprep.subr.mxu0 0.0
  %1879 = vmatpush1.msra.mxu0 0.0
  %1880 = vmatprep.subr.mxu0 0.0
  %1881 = vmatpush1.msra.mxu0 0.0
  %1882 = vmatprep.subr.mxu0 0.0
  %1883 = vmatpush1.msra.mxu0 0.0
  %1884 = vmatprep.subr.mxu0 0.0
  %1885 = vmatpush1.msra.mxu0 0.0
  %1886 = vmatprep.subr.mxu0 0.0
  %1887 = vmatpush1.msra.mxu0 0.0
  %1888 = vmatprep.subr.mxu0 0.0
  %1889 = vmatpush1.msra.mxu0 0.0
  %1890 = vmatprep.subr.mxu0 0.0
  %1891 = vmatpush1.msra.mxu0 0.0
  %1892 = vmatprep.subr.mxu0 0.0
  %1893 = vmatpush1.msra.mxu0 0.0
  %1894 = vmatprep.subr.mxu0 0.0
  %1895 = vmatpush1.msra.mxu0 0.0
  %1896 = vmatprep.subr.mxu0 0.0
  %1897 = vmatpush1.msra.mxu0 0.0
  %1898 = vmatprep.subr.mxu0 0.0
  %1899 = vmatpush1.msra.mxu0 0.0
  %1900 = vmatprep.subr.mxu0 0.0
  %1901 = vmatpush1.msra.mxu0 0.0
  %1902 = vmatprep.mubr.f32.mxu0 0.0
  %1903 = vmatmul.mubr.f32.gmra.mrb[0].mxu0 %v1827
  %v1904 = vpop.f32.mrb[0].mxu0
  %v1905 = vadd.f32 %v1825, %v1904
  %v1906 = vpop.f32.mrb[0].mxu0
  %1907 = vmatprep.mubr.f32.mxu0 0.0
  %1908 = vmatmul.mubr.f32.gmra.mrb[0].mxu0 %v1830
  %v1909 = vpop.f32.mrb[0].mxu0
  %v1910 = vadd.f32 %v1825, %v1909
  %v1911 = vpop.f32.mrb[0].mxu0
  %1912 = vmatprep.mubr.f32.mxu0 0.0
  %1913 = vmatmul.mubr.f32.gmra.mrb[0].mxu0 %v1833
  %v1914 = vpop.f32.mrb[0].mxu0
  %v1915 = vadd.f32 %v1825, %v1914
  %v1916 = vpop.f32.mrb[0].mxu0
  %1917 = vmatprep.mubr.f32.mxu0 0.0
  %1918 = vmatmul.mubr.f32.gmra.mrb[0].mxu0 %v1836
  %v1919 = vpop.f32.mrb[0].mxu0
  %v1920 = vadd.f32 %v1825, %v1919
  %v1921 = vpop.f32.mrb[0].mxu0
  %1922 = vdwg.mxu0
  %1927 = vrot.lane.b32.xlu0 %v1905, 96
  %v1928 = vpop.permute.xlu0 %1927
  %1929 = vrot.lane.b32.xlu0 %v1910, 96
  %v1930 = vpop.permute.xlu0 %1929
  %1931 = vrot.lane.b32.xlu0 %v1915, 96
  %v1932 = vpop.permute.xlu0 %1931
  %1933 = vrot.lane.b32.xlu0 %v1920, 96
  %v1934 = vpop.permute.xlu0 %1933
  %v1935 = vsel %vm195, %v1905, 0
  %v1937 = vsel %vm195, %v1910, 0
  %v1939 = vsel %vm195, %v1915, 0
  %v1941 = vsel %vm195, %v1920, 0
  %v1943 = vsel %vm195, %v1928, 0
  %v1945 = vsel %vm195, %v1930, 0
  %v1947 = vsel %vm195, %v1932, 0
  %v1949 = vsel %vm195, %v1934, 0
  %1951 = vmatprep.subr.mxu0 0.0
  %1952 = vmatpush1.xpose.msra.mxu0 %v1943
  %1953 = vmatprep.subr.mxu0 0.0
  %1954 = vmatpush1.xpose.msra.mxu0 %v1945
  %1955 = vmatprep.subr.mxu0 0.0
  %1956 = vmatpush1.xpose.msra.mxu0 %v1947
  %1957 = vmatprep.subr.mxu0 0.0
  %1958 = vmatpush1.xpose.msra.mxu0 %v1949
  %1959 = vmatprep.subr.mxu0 0.0
  %1960 = vmatpush1.xpose.msra.mxu0 0.0
  %1961 = vmatprep.subr.mxu0 0.0
  %1962 = vmatpush1.xpose.msra.mxu0 0.0
  %1963 = vmatprep.subr.mxu0 0.0
  %1964 = vmatpush1.xpose.msra.mxu0 0.0
  %1965 = vmatprep.subr.mxu0 0.0
  %1966 = vmatpush1.xpose.msra.mxu0 0.0
  %1967 = vmatprep.subr.mxu0 0.0
  %1968 = vmatpush1.xpose.msra.mxu0 0.0
  %1969 = vmatprep.subr.mxu0 0.0
  %1970 = vmatpush1.xpose.msra.mxu0 0.0
  %1971 = vmatprep.subr.mxu0 0.0
  %1972 = vmatpush1.xpose.msra.mxu0 0.0
  %1973 = vmatprep.subr.mxu0 0.0
  %1974 = vmatpush1.xpose.msra.mxu0 0.0
  %1975 = vmatprep.subr.mxu0 0.0
  %1976 = vmatpush1.xpose.msra.mxu0 0.0
  %1977 = vmatprep.subr.mxu0 0.0
  %1978 = vmatpush1.xpose.msra.mxu0 0.0
  %1979 = vmatprep.subr.mxu0 0.0
  %1980 = vmatpush1.xpose.msra.mxu0 0.0
  %1981 = vmatprep.subr.mxu0 0.0
  %1982 = vmatpush1.xpose.msra.mxu0 0.0
  %1983 = vmatprep.subr.mxu0 0.0
  %1984 = vmatpush1.xpose.msra.mxu0 0.0
  %1985 = vmatprep.subr.mxu0 0.0
  %1986 = vmatpush1.xpose.msra.mxu0 0.0
  %1987 = vmatprep.subr.mxu0 0.0
  %1988 = vmatpush1.xpose.msra.mxu0 0.0
  %1989 = vmatprep.subr.mxu0 0.0
  %1990 = vmatpush1.xpose.msra.mxu0 0.0
  %1991 = vmatprep.subr.mxu0 0.0
  %1992 = vmatpush1.xpose.msra.mxu0 0.0
  %1993 = vmatprep.subr.mxu0 0.0
  %1994 = vmatpush1.xpose.msra.mxu0 0.0
  %1995 = vmatprep.subr.mxu0 0.0
  %1996 = vmatpush1.xpose.msra.mxu0 0.0
  %1997 = vmatprep.subr.mxu0 0.0
  %1998 = vmatpush1.xpose.msra.mxu0 0.0
  %1999 = vmatprep.subr.mxu0 0.0
  %2000 = vmatpush1.xpose.msra.mxu0 0.0
  %2001 = vmatprep.subr.mxu0 0.0
  %2002 = vmatpush1.xpose.msra.mxu0 0.0
  %2003 = vmatprep.subr.mxu0 0.0
  %2004 = vmatpush1.xpose.msra.mxu0 0.0
  %2005 = vmatprep.subr.mxu0 0.0
  %2006 = vmatpush1.xpose.msra.mxu0 0.0
  %2007 = vmatprep.subr.mxu0 0.0
  %2008 = vmatpush1.xpose.msra.mxu0 0.0
  %2009 = vmatprep.subr.mxu0 0.0
  %2010 = vmatpush1.xpose.msra.mxu0 0.0
  %2011 = vmatprep.subr.mxu0 0.0
  %2012 = vmatpush1.xpose.msra.mxu0 0.0
  %2013 = vmatprep.subr.mxu0 0.0
  %2014 = vmatpush1.xpose.msra.mxu0 0.0
  %2015 = vmatprep.mubr.f32.mxu0 0.0
  %2016 = vmatmul.mubr.f32.gmra.mrb[0].mxu0 %v1935
  %v2017 = vpop.f32.mrb[0].mxu0
  %v2018 = vadd.f32 %v52, %v2017
  %v2019 = vpop.f32.mrb[0].mxu0
  %2020 = vmatprep.mubr.f32.mxu0 0.0
  %2021 = vmatmul.mubr.f32.gmra.mrb[0].mxu0 %v1937
  %v2022 = vpop.f32.mrb[0].mxu0
  %v2023 = vadd.f32 %v53, %v2022
  %v2024 = vpop.f32.mrb[0].mxu0
  %2025 = vmatprep.mubr.f32.mxu0 0.0
  %2026 = vmatmul.mubr.f32.gmra.mrb[0].mxu0 %v1939
  %v2027 = vpop.f32.mrb[0].mxu0
  %v2028 = vadd.f32 %v54, %v2027
  %v2029 = vpop.f32.mrb[0].mxu0
  %2030 = vmatprep.mubr.f32.mxu0 0.0
  %2031 = vmatmul.mubr.f32.gmra.mrb[0].mxu0 %v1941
  %v2032 = vpop.f32.mrb[0].mxu0
  %v2033 = vadd.f32 %v55, %v2032
  %v2034 = vpop.f32.mrb[0].mxu0
  %2035 = vdwg.mxu0
  %v2036 = vsel %vm85, %v2018, -inf
  %2037 = vmax.xlane.f32.xlu0 %v2036
  %v2038 = vpop.xlane.xlu0 %2037
  %v2039 = vsel %vm85, %v2023, -inf
  %2040 = vmax.xlane.f32.xlu0 %v2039
  %v2041 = vpop.xlane.xlu0 %2040
  %v2042 = vsel %vm85, %v2028, -inf
  %2043 = vmax.xlane.f32.xlu0 %v2042
  %v2044 = vpop.xlane.xlu0 %2043
  %v2045 = vsel %vm85, %v2033, -inf
  %2046 = vmax.xlane.f32.xlu0 %v2045
  %v2047 = vpop.xlane.xlu0 %2046
  %v2048 = vsub.f32 %v2018, %v2038
  %v2049 = vsub.f32 %v2023, %v2041
  %v2050 = vsub.f32 %v2028, %v2044
  %v2051 = vsub.f32 %v2033, %v2047
  %v2052 = vmul.f32 %v2048, 1.442695
  %v2053 = vpow.pop %v2052
  %v2054 = vmul.f32 %v2049, 1.442695
  %v2055 = vpow.pop %v2054
  %v2056 = vmul.f32 %v2050, 1.442695
  %v2057 = vpow.pop %v2056
  %v2058 = vmul.f32 %v2051, 1.442695
  %v2059 = vpow.pop %v2058
  %v2060 = vsel %vm85, %v2053, 0.0
  %2061 = vadd.xlane.f32.xlu0 %v2060
  %v2062 = vpop.xlane.xlu0 %2061
  %v2063 = vsel %vm85, %v2055, 0.0
  %2064 = vadd.xlane.f32.xlu0 %v2063
  %v2065 = vpop.xlane.xlu0 %2064
  %v2066 = vsel %vm85, %v2057, 0.0
  %2067 = vadd.xlane.f32.xlu0 %v2066
  %v2068 = vpop.xlane.xlu0 %2067
  %v2069 = vsel %vm85, %v2059, 0.0
  %2070 = vadd.xlane.f32.xlu0 %v2069
  %v2071 = vpop.xlane.xlu0 %2070
  %v2072 = vrcp.pop %v2062
  %v2073 = vmul.f32 %v2053, %v2072
  %v2074 = vrcp.pop %v2065
  %v2075 = vmul.f32 %v2055, %v2074
  %v2076 = vrcp.pop %v2068
  %v2077 = vmul.f32 %v2057, %v2076
  %v2078 = vrcp.pop %v2071
  %v2079 = vmul.f32 %v2059, %v2078
  %2080 = vrot.lane.b32.xlu0 %v1905, 64
  %v2081 = vpop.permute.xlu0 %2080
  %2082 = vrot.lane.b32.xlu0 %v1910, 64
  %v2083 = vpop.permute.xlu0 %2082
  %2084 = vrot.lane.b32.xlu0 %v1915, 64
  %v2085 = vpop.permute.xlu0 %2084
  %2086 = vrot.lane.b32.xlu0 %v1920, 64
  %v2087 = vpop.permute.xlu0 %2086
  %v2093 = vsel %vm85, %v2073, 0
  %v2096 = vsel %vm85, %v2075, 0
  %v2099 = vsel %vm85, %v2077, 0
  %v2102 = vsel %vm85, %v2079, 0
  %2104 = vmatprep.subr.mxu0 0.0
  %2105 = vmatpush1.msra.mxu0 %v2081
  %2106 = vmatprep.subr.mxu0 0.0
  %2107 = vmatpush1.msra.mxu0 %v2083
  %2108 = vmatprep.subr.mxu0 0.0
  %2109 = vmatpush1.msra.mxu0 %v2085
  %2110 = vmatprep.subr.mxu0 0.0
  %2111 = vmatpush1.msra.mxu0 %v2087
  %2112 = vmatprep.subr.mxu0 0.0
  %2113 = vmatpush1.msra.mxu0 0.0
  %2114 = vmatprep.subr.mxu0 0.0
  %2115 = vmatpush1.msra.mxu0 0.0
  %2116 = vmatprep.subr.mxu0 0.0
  %2117 = vmatpush1.msra.mxu0 0.0
  %2118 = vmatprep.subr.mxu0 0.0
  %2119 = vmatpush1.msra.mxu0 0.0
  %2120 = vmatprep.subr.mxu0 0.0
  %2121 = vmatpush1.msra.mxu0 0.0
  %2122 = vmatprep.subr.mxu0 0.0
  %2123 = vmatpush1.msra.mxu0 0.0
  %2124 = vmatprep.subr.mxu0 0.0
  %2125 = vmatpush1.msra.mxu0 0.0
  %2126 = vmatprep.subr.mxu0 0.0
  %2127 = vmatpush1.msra.mxu0 0.0
  %2128 = vmatprep.subr.mxu0 0.0
  %2129 = vmatpush1.msra.mxu0 0.0
  %2130 = vmatprep.subr.mxu0 0.0
  %2131 = vmatpush1.msra.mxu0 0.0
  %2132 = vmatprep.subr.mxu0 0.0
  %2133 = vmatpush1.msra.mxu0 0.0
  %2134 = vmatprep.subr.mxu0 0.0
  %2135 = vmatpush1.msra.mxu0 0.0
  %2136 = vmatprep.subr.mxu0 0.0
  %2137 = vmatpush1.msra.mxu0 0.0
  %2138 = vmatprep.subr.mxu0 0.0
  %2139 = vmatpush1.msra.mxu0 0.0
  %2140 = vmatprep.subr.mxu0 0.0
  %2141 = vmatpush1.msra.mxu0 0.0
  %2142 = vmatprep.subr.mxu0 0.0
  %2143 = vmatpush1.msra.mxu0 0.0
  %2144 = vmatprep.subr.mxu0 0.0
  %2145 = vmatpush1.msra.mxu0 0.0
  %2146 = vmatprep.subr.mxu0 0.0
  %2147 = vmatpush1.msra.mxu0 0.0
  %2148 = vmatprep.subr.mxu0 0.0
  %2149 = vmatpush1.msra.mxu0 0.0
  %2150 = vmatprep.subr.mxu0 0.0
  %2151 = vmatpush1.msra.mxu0 0.0
  %2152 = vmatprep.subr.mxu0 0.0
  %2153 = vmatpush1.msra.mxu0 0.0
  %2154 = vmatprep.subr.mxu0 0.0
  %2155 = vmatpush1.msra.mxu0 0.0
  %2156 = vmatprep.subr.mxu0 0.0
  %2157 = vmatpush1.msra.mxu0 0.0
  %2158 = vmatprep.subr.mxu0 0.0
  %2159 = vmatpush1.msra.mxu0 0.0
  %2160 = vmatprep.subr.mxu0 0.0
  %2161 = vmatpush1.msra.mxu0 0.0
  %2162 = vmatprep.subr.mxu0 0.0
  %2163 = vmatpush1.msra.mxu0 0.0
  %2164 = vmatprep.subr.mxu0 0.0
  %2165 = vmatpush1.msra.mxu0 0.0
  %2166 = vmatprep.subr.mxu0 0.0
  %2167 = vmatpush1.msra.mxu0 0.0
  %2168 = vmatprep.mubr.f32.mxu0 0.0
  %2169 = vmatmul.mubr.f32.gmra.mrb[0].mxu0 %v2093
  %v2170 = vpop.f32.mrb[0].mxu0
  %v2171 = vadd.f32 0.0, %v2170
  %v2172 = vpop.f32.mrb[0].mxu0
  %2173 = vmatprep.mubr.f32.mxu0 0.0
  %2174 = vmatmul.mubr.f32.gmra.mrb[0].mxu0 %v2096
  %v2175 = vpop.f32.mrb[0].mxu0
  %v2176 = vadd.f32 0.0, %v2175
  %v2177 = vpop.f32.mrb[0].mxu0
  %2178 = vmatprep.mubr.f32.mxu0 0.0
  %2179 = vmatmul.mubr.f32.gmra.mrb[0].mxu0 %v2099
  %v2180 = vpop.f32.mrb[0].mxu0
  %v2181 = vadd.f32 0.0, %v2180
  %v2182 = vpop.f32.mrb[0].mxu0
  %2183 = vmatprep.mubr.f32.mxu0 0.0
  %2184 = vmatmul.mubr.f32.gmra.mrb[0].mxu0 %v2102
  %v2185 = vpop.f32.mrb[0].mxu0
  %v2186 = vadd.f32 0.0, %v2185
  %v2187 = vpop.f32.mrb[0].mxu0
  %2188 = vdwg.mxu0
  %2189 = vrot.lane.b32.xlu0 %v1905, 120
  %v2190 = vpop.permute.xlu0 %2189
  %2191 = vrot.lane.b32.xlu0 %v1910, 120
  %v2192 = vpop.permute.xlu0 %2191
  %2193 = vrot.lane.b32.xlu0 %v1915, 120
  %v2194 = vpop.permute.xlu0 %2193
  %2195 = vrot.lane.b32.xlu0 %v1920, 120
  %v2196 = vpop.permute.xlu0 %2195
  %2197 = vrot.lane.b32.xlu0 %v1905, 88
  %v2198 = vpop.permute.xlu0 %2197
  %2199 = vrot.lane.b32.xlu0 %v1910, 88
  %v2200 = vpop.permute.xlu0 %2199
  %2201 = vrot.lane.b32.xlu0 %v1915, 88
  %v2202 = vpop.permute.xlu0 %2201
  %2203 = vrot.lane.b32.xlu0 %v1920, 88
  %v2204 = vpop.permute.xlu0 %2203
  %v2205 = vsel %vm195, %v2190, 0
  %v2207 = vsel %vm195, %v2192, 0
  %v2209 = vsel %vm195, %v2194, 0
  %v2211 = vsel %vm195, %v2196, 0
  %v2213 = vsel %vm195, %v2198, 0
  %v2215 = vsel %vm195, %v2200, 0
  %v2217 = vsel %vm195, %v2202, 0
  %v2219 = vsel %vm195, %v2204, 0
  %2221 = vmatprep.subr.mxu0 0.0
  %2222 = vmatpush1.xpose.msra.mxu0 %v2213
  %2223 = vmatprep.subr.mxu0 0.0
  %2224 = vmatpush1.xpose.msra.mxu0 %v2215
  %2225 = vmatprep.subr.mxu0 0.0
  %2226 = vmatpush1.xpose.msra.mxu0 %v2217
  %2227 = vmatprep.subr.mxu0 0.0
  %2228 = vmatpush1.xpose.msra.mxu0 %v2219
  %2229 = vmatprep.subr.mxu0 0.0
  %2230 = vmatpush1.xpose.msra.mxu0 0.0
  %2231 = vmatprep.subr.mxu0 0.0
  %2232 = vmatpush1.xpose.msra.mxu0 0.0
  %2233 = vmatprep.subr.mxu0 0.0
  %2234 = vmatpush1.xpose.msra.mxu0 0.0
  %2235 = vmatprep.subr.mxu0 0.0
  %2236 = vmatpush1.xpose.msra.mxu0 0.0
  %2237 = vmatprep.subr.mxu0 0.0
  %2238 = vmatpush1.xpose.msra.mxu0 0.0
  %2239 = vmatprep.subr.mxu0 0.0
  %2240 = vmatpush1.xpose.msra.mxu0 0.0
  %2241 = vmatprep.subr.mxu0 0.0
  %2242 = vmatpush1.xpose.msra.mxu0 0.0
  %2243 = vmatprep.subr.mxu0 0.0
  %2244 = vmatpush1.xpose.msra.mxu0 0.0
  %2245 = vmatprep.subr.mxu0 0.0
  %2246 = vmatpush1.xpose.msra.mxu0 0.0
  %2247 = vmatprep.subr.mxu0 0.0
  %2248 = vmatpush1.xpose.msra.mxu0 0.0
  %2249 = vmatprep.subr.mxu0 0.0
  %2250 = vmatpush1.xpose.msra.mxu0 0.0
  %2251 = vmatprep.subr.mxu0 0.0
  %2252 = vmatpush1.xpose.msra.mxu0 0.0
  %2253 = vmatprep.subr.mxu0 0.0
  %2254 = vmatpush1.xpose.msra.mxu0 0.0
  %2255 = vmatprep.subr.mxu0 0.0
  %2256 = vmatpush1.xpose.msra.mxu0 0.0
  %2257 = vmatprep.subr.mxu0 0.0
  %2258 = vmatpush1.xpose.msra.mxu0 0.0
  %2259 = vmatprep.subr.mxu0 0.0
  %2260 = vmatpush1.xpose.msra.mxu0 0.0
  %2261 = vmatprep.subr.mxu0 0.0
  %2262 = vmatpush1.xpose.msra.mxu0 0.0
  %2263 = vmatprep.subr.mxu0 0.0
  %2264 = vmatpush1.xpose.msra.mxu0 0.0
  %2265 = vmatprep.subr.mxu0 0.0
  %2266 = vmatpush1.xpose.msra.mxu0 0.0
  %2267 = vmatprep.subr.mxu0 0.0
  %2268 = vmatpush1.xpose.msra.mxu0 0.0
  %2269 = vmatprep.subr.mxu0 0.0
  %2270 = vmatpush1.xpose.msra.mxu0 0.0
  %2271 = vmatprep.subr.mxu0 0.0
  %2272 = vmatpush1.xpose.msra.mxu0 0.0
  %2273 = vmatprep.subr.mxu0 0.0
  %2274 = vmatpush1.xpose.msra.mxu0 0.0
  %2275 = vmatprep.subr.mxu0 0.0
  %2276 = vmatpush1.xpose.msra.mxu0 0.0
  %2277 = vmatprep.subr.mxu0 0.0
  %2278 = vmatpush1.xpose.msra.mxu0 0.0
  %2279 = vmatprep.subr.mxu0 0.0
  %2280 = vmatpush1.xpose.msra.mxu0 0.0
  %2281 = vmatprep.subr.mxu0 0.0
  %2282 = vmatpush1.xpose.msra.mxu0 0.0
  %2283 = vmatprep.subr.mxu0 0.0
  %2284 = vmatpush1.xpose.msra.mxu0 0.0
  %2285 = vmatprep.mubr.f32.mxu0 0.0
  %2286 = vmatmul.mubr.f32.gmra.mrb[0].mxu0 %v2205
  %v2287 = vpop.f32.mrb[0].mxu0
  %v2288 = vadd.f32 %v52, %v2287
  %v2289 = vpop.f32.mrb[0].mxu0
  %2290 = vmatprep.mubr.f32.mxu0 0.0
  %2291 = vmatmul.mubr.f32.gmra.mrb[0].mxu0 %v2207
  %v2292 = vpop.f32.mrb[0].mxu0
  %v2293 = vadd.f32 %v53, %v2292
  %v2294 = vpop.f32.mrb[0].mxu0
  %2295 = vmatprep.mubr.f32.mxu0 0.0
  %2296 = vmatmul.mubr.f32.gmra.mrb[0].mxu0 %v2209
  %v2297 = vpop.f32.mrb[0].mxu0
  %v2298 = vadd.f32 %v54, %v2297
  %v2299 = vpop.f32.mrb[0].mxu0
  %2300 = vmatprep.mubr.f32.mxu0 0.0
  %2301 = vmatmul.mubr.f32.gmra.mrb[0].mxu0 %v2211
  %v2302 = vpop.f32.mrb[0].mxu0
  %v2303 = vadd.f32 %v55, %v2302
  %v2304 = vpop.f32.mrb[0].mxu0
  %2305 = vdwg.mxu0
  %v2306 = vsel %vm85, %v2288, -inf
  %2307 = vmax.xlane.f32.xlu0 %v2306
  %v2308 = vpop.xlane.xlu0 %2307
  %v2309 = vsel %vm85, %v2293, -inf
  %2310 = vmax.xlane.f32.xlu0 %v2309
  %v2311 = vpop.xlane.xlu0 %2310
  %v2312 = vsel %vm85, %v2298, -inf
  %2313 = vmax.xlane.f32.xlu0 %v2312
  %v2314 = vpop.xlane.xlu0 %2313
  %v2315 = vsel %vm85, %v2303, -inf
  %2316 = vmax.xlane.f32.xlu0 %v2315
  %v2317 = vpop.xlane.xlu0 %2316
  %v2318 = vsub.f32 %v2288, %v2308
  %v2319 = vsub.f32 %v2293, %v2311
  %v2320 = vsub.f32 %v2298, %v2314
  %v2321 = vsub.f32 %v2303, %v2317
  %v2322 = vmul.f32 %v2318, 1.442695
  %v2323 = vpow.pop %v2322
  %v2324 = vmul.f32 %v2319, 1.442695
  %v2325 = vpow.pop %v2324
  %v2326 = vmul.f32 %v2320, 1.442695
  %v2327 = vpow.pop %v2326
  %v2328 = vmul.f32 %v2321, 1.442695
  %v2329 = vpow.pop %v2328
  %v2330 = vsel %vm85, %v2323, 0.0
  %2331 = vadd.xlane.f32.xlu0 %v2330
  %v2332 = vpop.xlane.xlu0 %2331
  %v2333 = vsel %vm85, %v2325, 0.0
  %2334 = vadd.xlane.f32.xlu0 %v2333
  %v2335 = vpop.xlane.xlu0 %2334
  %v2336 = vsel %vm85, %v2327, 0.0
  %2337 = vadd.xlane.f32.xlu0 %v2336
  %v2338 = vpop.xlane.xlu0 %2337
  %v2339 = vsel %vm85, %v2329, 0.0
  %2340 = vadd.xlane.f32.xlu0 %v2339
  %v2341 = vpop.xlane.xlu0 %2340
  %v2342 = vrcp.pop %v2332
  %v2343 = vmul.f32 %v2323, %v2342
  %v2344 = vrcp.pop %v2335
  %v2345 = vmul.f32 %v2325, %v2344
  %v2346 = vrcp.pop %v2338
  %v2347 = vmul.f32 %v2327, %v2346
  %v2348 = vrcp.pop %v2341
  %v2349 = vmul.f32 %v2329, %v2348
  %2350 = vrot.lane.b32.xlu0 %v1905, 56
  %v2351 = vpop.permute.xlu0 %2350
  %2352 = vrot.lane.b32.xlu0 %v1910, 56
  %v2353 = vpop.permute.xlu0 %2352
  %2354 = vrot.lane.b32.xlu0 %v1915, 56
  %v2355 = vpop.permute.xlu0 %2354
  %2356 = vrot.lane.b32.xlu0 %v1920, 56
  %v2357 = vpop.permute.xlu0 %2356
  %v2363 = vsel %vm85, %v2343, 0
  %v2366 = vsel %vm85, %v2345, 0
  %v2369 = vsel %vm85, %v2347, 0
  %v2372 = vsel %vm85, %v2349, 0
  %2374 = vmatprep.subr.mxu0 0.0
  %2375 = vmatpush1.msra.mxu0 %v2351
  %2376 = vmatprep.subr.mxu0 0.0
  %2377 = vmatpush1.msra.mxu0 %v2353
  %2378 = vmatprep.subr.mxu0 0.0
  %2379 = vmatpush1.msra.mxu0 %v2355
  %2380 = vmatprep.subr.mxu0 0.0
  %2381 = vmatpush1.msra.mxu0 %v2357
  %2382 = vmatprep.subr.mxu0 0.0
  %2383 = vmatpush1.msra.mxu0 0.0
  %2384 = vmatprep.subr.mxu0 0.0
  %2385 = vmatpush1.msra.mxu0 0.0
  %2386 = vmatprep.subr.mxu0 0.0
  %2387 = vmatpush1.msra.mxu0 0.0
  %2388 = vmatprep.subr.mxu0 0.0
  %2389 = vmatpush1.msra.mxu0 0.0
  %2390 = vmatprep.subr.mxu0 0.0
  %2391 = vmatpush1.msra.mxu0 0.0
  %2392 = vmatprep.subr.mxu0 0.0
  %2393 = vmatpush1.msra.mxu0 0.0
  %2394 = vmatprep.subr.mxu0 0.0
  %2395 = vmatpush1.msra.mxu0 0.0
  %2396 = vmatprep.subr.mxu0 0.0
  %2397 = vmatpush1.msra.mxu0 0.0
  %2398 = vmatprep.subr.mxu0 0.0
  %2399 = vmatpush1.msra.mxu0 0.0
  %2400 = vmatprep.subr.mxu0 0.0
  %2401 = vmatpush1.msra.mxu0 0.0
  %2402 = vmatprep.subr.mxu0 0.0
  %2403 = vmatpush1.msra.mxu0 0.0
  %2404 = vmatprep.subr.mxu0 0.0
  %2405 = vmatpush1.msra.mxu0 0.0
  %2406 = vmatprep.subr.mxu0 0.0
  %2407 = vmatpush1.msra.mxu0 0.0
  %2408 = vmatprep.subr.mxu0 0.0
  %2409 = vmatpush1.msra.mxu0 0.0
  %2410 = vmatprep.subr.mxu0 0.0
  %2411 = vmatpush1.msra.mxu0 0.0
  %2412 = vmatprep.subr.mxu0 0.0
  %2413 = vmatpush1.msra.mxu0 0.0
  %2414 = vmatprep.subr.mxu0 0.0
  %2415 = vmatpush1.msra.mxu0 0.0
  %2416 = vmatprep.subr.mxu0 0.0
  %2417 = vmatpush1.msra.mxu0 0.0
  %2418 = vmatprep.subr.mxu0 0.0
  %2419 = vmatpush1.msra.mxu0 0.0
  %2420 = vmatprep.subr.mxu0 0.0
  %2421 = vmatpush1.msra.mxu0 0.0
  %2422 = vmatprep.subr.mxu0 0.0
  %2423 = vmatpush1.msra.mxu0 0.0
  %2424 = vmatprep.subr.mxu0 0.0
  %2425 = vmatpush1.msra.mxu0 0.0
  %2426 = vmatprep.subr.mxu0 0.0
  %2427 = vmatpush1.msra.mxu0 0.0
  %2428 = vmatprep.subr.mxu0 0.0
  %2429 = vmatpush1.msra.mxu0 0.0
  %2430 = vmatprep.subr.mxu0 0.0
  %2431 = vmatpush1.msra.mxu0 0.0
  %2432 = vmatprep.subr.mxu0 0.0
  %2433 = vmatpush1.msra.mxu0 0.0
  %2434 = vmatprep.subr.mxu0 0.0
  %2435 = vmatpush1.msra.mxu0 0.0
  %2436 = vmatprep.subr.mxu0 0.0
  %2437 = vmatpush1.msra.mxu0 0.0
  %2438 = vmatprep.mubr.f32.mxu0 0.0
  %2439 = vmatmul.mubr.f32.gmra.mrb[0].mxu0 %v2363
  %v2440 = vpop.f32.mrb[0].mxu0
  %v2441 = vadd.f32 0.0, %v2440
  %v2442 = vpop.f32.mrb[0].mxu0
  %2443 = vmatprep.mubr.f32.mxu0 0.0
  %2444 = vmatmul.mubr.f32.gmra.mrb[0].mxu0 %v2366
  %v2445 = vpop.f32.mrb[0].mxu0
  %v2446 = vadd.f32 0.0, %v2445
  %v2447 = vpop.f32.mrb[0].mxu0
  %2448 = vmatprep.mubr.f32.mxu0 0.0
  %2449 = vmatmul.mubr.f32.gmra.mrb[0].mxu0 %v2369
  %v2450 = vpop.f32.mrb[0].mxu0
  %v2451 = vadd.f32 0.0, %v2450
  %v2452 = vpop.f32.mrb[0].mxu0
  %2453 = vmatprep.mubr.f32.mxu0 0.0
  %2454 = vmatmul.mubr.f32.gmra.mrb[0].mxu0 %v2372
  %v2455 = vpop.f32.mrb[0].mxu0
  %v2456 = vadd.f32 0.0, %v2455
  %v2457 = vpop.f32.mrb[0].mxu0
  %2458 = vdwg.mxu0
  %2459 = vrot.lane.b32.xlu0 %v1905, 112
  %v2460 = vpop.permute.xlu0 %2459
  %2461 = vrot.lane.b32.xlu0 %v1910, 112
  %v2462 = vpop.permute.xlu0 %2461
  %2463 = vrot.lane.b32.xlu0 %v1915, 112
  %v2464 = vpop.permute.xlu0 %2463
  %2465 = vrot.lane.b32.xlu0 %v1920, 112
  %v2466 = vpop.permute.xlu0 %2465
  %2467 = vrot.lane.b32.xlu0 %v1905, 80
  %v2468 = vpop.permute.xlu0 %2467
  %2469 = vrot.lane.b32.xlu0 %v1910, 80
  %v2470 = vpop.permute.xlu0 %2469
  %2471 = vrot.lane.b32.xlu0 %v1915, 80
  %v2472 = vpop.permute.xlu0 %2471
  %2473 = vrot.lane.b32.xlu0 %v1920, 80
  %v2474 = vpop.permute.xlu0 %2473
  %v2475 = vsel %vm195, %v2460, 0
  %v2477 = vsel %vm195, %v2462, 0
  %v2479 = vsel %vm195, %v2464, 0
  %v2481 = vsel %vm195, %v2466, 0
  %v2483 = vsel %vm195, %v2468, 0
  %v2485 = vsel %vm195, %v2470, 0
  %v2487 = vsel %vm195, %v2472, 0
  %v2489 = vsel %vm195, %v2474, 0
  %2491 = vmatprep.subr.mxu0 0.0
  %2492 = vmatpush1.xpose.msra.mxu0 %v2483
  %2493 = vmatprep.subr.mxu0 0.0
  %2494 = vmatpush1.xpose.msra.mxu0 %v2485
  %2495 = vmatprep.subr.mxu0 0.0
  %2496 = vmatpush1.xpose.msra.mxu0 %v2487
  %2497 = vmatprep.subr.mxu0 0.0
  %2498 = vmatpush1.xpose.msra.mxu0 %v2489
  %2499 = vmatprep.subr.mxu0 0.0
  %2500 = vmatpush1.xpose.msra.mxu0 0.0
  %2501 = vmatprep.subr.mxu0 0.0
  %2502 = vmatpush1.xpose.msra.mxu0 0.0
  %2503 = vmatprep.subr.mxu0 0.0
  %2504 = vmatpush1.xpose.msra.mxu0 0.0
  %2505 = vmatprep.subr.mxu0 0.0
  %2506 = vmatpush1.xpose.msra.mxu0 0.0
  %2507 = vmatprep.subr.mxu0 0.0
  %2508 = vmatpush1.xpose.msra.mxu0 0.0
  %2509 = vmatprep.subr.mxu0 0.0
  %2510 = vmatpush1.xpose.msra.mxu0 0.0
  %2511 = vmatprep.subr.mxu0 0.0
  %2512 = vmatpush1.xpose.msra.mxu0 0.0
  %2513 = vmatprep.subr.mxu0 0.0
  %2514 = vmatpush1.xpose.msra.mxu0 0.0
  %2515 = vmatprep.subr.mxu0 0.0
  %2516 = vmatpush1.xpose.msra.mxu0 0.0
  %2517 = vmatprep.subr.mxu0 0.0
  %2518 = vmatpush1.xpose.msra.mxu0 0.0
  %2519 = vmatprep.subr.mxu0 0.0
  %2520 = vmatpush1.xpose.msra.mxu0 0.0
  %2521 = vmatprep.subr.mxu0 0.0
  %2522 = vmatpush1.xpose.msra.mxu0 0.0
  %2523 = vmatprep.subr.mxu0 0.0
  %2524 = vmatpush1.xpose.msra.mxu0 0.0
  %2525 = vmatprep.subr.mxu0 0.0
  %2526 = vmatpush1.xpose.msra.mxu0 0.0
  %2527 = vmatprep.subr.mxu0 0.0
  %2528 = vmatpush1.xpose.msra.mxu0 0.0
  %2529 = vmatprep.subr.mxu0 0.0
  %2530 = vmatpush1.xpose.msra.mxu0 0.0
  %2531 = vmatprep.subr.mxu0 0.0
  %2532 = vmatpush1.xpose.msra.mxu0 0.0
  %2533 = vmatprep.subr.mxu0 0.0
  %2534 = vmatpush1.xpose.msra.mxu0 0.0
  %2535 = vmatprep.subr.mxu0 0.0
  %2536 = vmatpush1.xpose.msra.mxu0 0.0
  %2537 = vmatprep.subr.mxu0 0.0
  %2538 = vmatpush1.xpose.msra.mxu0 0.0
  %2539 = vmatprep.subr.mxu0 0.0
  %2540 = vmatpush1.xpose.msra.mxu0 0.0
  %2541 = vmatprep.subr.mxu0 0.0
  %2542 = vmatpush1.xpose.msra.mxu0 0.0
  %2543 = vmatprep.subr.mxu0 0.0
  %2544 = vmatpush1.xpose.msra.mxu0 0.0
  %2545 = vmatprep.subr.mxu0 0.0
  %2546 = vmatpush1.xpose.msra.mxu0 0.0
  %2547 = vmatprep.subr.mxu0 0.0
  %2548 = vmatpush1.xpose.msra.mxu0 0.0
  %2549 = vmatprep.subr.mxu0 0.0
  %2550 = vmatpush1.xpose.msra.mxu0 0.0
  %2551 = vmatprep.subr.mxu0 0.0
  %2552 = vmatpush1.xpose.msra.mxu0 0.0
  %2553 = vmatprep.subr.mxu0 0.0
  %2554 = vmatpush1.xpose.msra.mxu0 0.0
  %2555 = vmatprep.mubr.f32.mxu0 0.0
  %2556 = vmatmul.mubr.f32.gmra.mrb[0].mxu0 %v2475
  %v2557 = vpop.f32.mrb[0].mxu0
  %v2558 = vadd.f32 %v52, %v2557
  %v2559 = vpop.f32.mrb[0].mxu0
  %2560 = vmatprep.mubr.f32.mxu0 0.0
  %2561 = vmatmul.mubr.f32.gmra.mrb[0].mxu0 %v2477
  %v2562 = vpop.f32.mrb[0].mxu0
  %v2563 = vadd.f32 %v53, %v2562
  %v2564 = vpop.f32.mrb[0].mxu0
  %2565 = vmatprep.mubr.f32.mxu0 0.0
  %2566 = vmatmul.mubr.f32.gmra.mrb[0].mxu0 %v2479
  %v2567 = vpop.f32.mrb[0].mxu0
  %v2568 = vadd.f32 %v54, %v2567
  %v2569 = vpop.f32.mrb[0].mxu0
  %2570 = vmatprep.mubr.f32.mxu0 0.0
  %2571 = vmatmul.mubr.f32.gmra.mrb[0].mxu0 %v2481
  %v2572 = vpop.f32.mrb[0].mxu0
  %v2573 = vadd.f32 %v55, %v2572
  %v2574 = vpop.f32.mrb[0].mxu0
  %2575 = vdwg.mxu0
  %v2576 = vsel %vm85, %v2558, -inf
  %2577 = vmax.xlane.f32.xlu0 %v2576
  %v2578 = vpop.xlane.xlu0 %2577
  %v2579 = vsel %vm85, %v2563, -inf
  %2580 = vmax.xlane.f32.xlu0 %v2579
  %v2581 = vpop.xlane.xlu0 %2580
  %v2582 = vsel %vm85, %v2568, -inf
  %2583 = vmax.xlane.f32.xlu0 %v2582
  %v2584 = vpop.xlane.xlu0 %2583
  %v2585 = vsel %vm85, %v2573, -inf
  %2586 = vmax.xlane.f32.xlu0 %v2585
  %v2587 = vpop.xlane.xlu0 %2586
  %v2588 = vsub.f32 %v2558, %v2578
  %v2589 = vsub.f32 %v2563, %v2581
  %v2590 = vsub.f32 %v2568, %v2584
  %v2591 = vsub.f32 %v2573, %v2587
  %v2592 = vmul.f32 %v2588, 1.442695
  %v2593 = vpow.pop %v2592
  %v2594 = vmul.f32 %v2589, 1.442695
  %v2595 = vpow.pop %v2594
  %v2596 = vmul.f32 %v2590, 1.442695
  %v2597 = vpow.pop %v2596
  %v2598 = vmul.f32 %v2591, 1.442695
  %v2599 = vpow.pop %v2598
  %v2600 = vsel %vm85, %v2593, 0.0
  %2601 = vadd.xlane.f32.xlu0 %v2600
  %v2602 = vpop.xlane.xlu0 %2601
  %v2603 = vsel %vm85, %v2595, 0.0
  %2604 = vadd.xlane.f32.xlu0 %v2603
  %v2605 = vpop.xlane.xlu0 %2604
  %v2606 = vsel %vm85, %v2597, 0.0
  %2607 = vadd.xlane.f32.xlu0 %v2606
  %v2608 = vpop.xlane.xlu0 %2607
  %v2609 = vsel %vm85, %v2599, 0.0
  %2610 = vadd.xlane.f32.xlu0 %v2609
  %v2611 = vpop.xlane.xlu0 %2610
  %v2612 = vrcp.pop %v2602
  %v2613 = vmul.f32 %v2593, %v2612
  %v2614 = vrcp.pop %v2605
  %v2615 = vmul.f32 %v2595, %v2614
  %v2616 = vrcp.pop %v2608
  %v2617 = vmul.f32 %v2597, %v2616
  %v2618 = vrcp.pop %v2611
  %v2619 = vmul.f32 %v2599, %v2618
  %2620 = vrot.lane.b32.xlu0 %v1905, 48
  %v2621 = vpop.permute.xlu0 %2620
  %2622 = vrot.lane.b32.xlu0 %v1910, 48
  %v2623 = vpop.permute.xlu0 %2622
  %2624 = vrot.lane.b32.xlu0 %v1915, 48
  %v2625 = vpop.permute.xlu0 %2624
  %2626 = vrot.lane.b32.xlu0 %v1920, 48
  %v2627 = vpop.permute.xlu0 %2626
  %v2633 = vsel %vm85, %v2613, 0
  %v2636 = vsel %vm85, %v2615, 0
  %v2639 = vsel %vm85, %v2617, 0
  %v2642 = vsel %vm85, %v2619, 0
  %2644 = vmatprep.subr.mxu0 0.0
  %2645 = vmatpush1.msra.mxu0 %v2621
  %2646 = vmatprep.subr.mxu0 0.0
  %2647 = vmatpush1.msra.mxu0 %v2623
  %2648 = vmatprep.subr.mxu0 0.0
  %2649 = vmatpush1.msra.mxu0 %v2625
  %2650 = vmatprep.subr.mxu0 0.0
  %2651 = vmatpush1.msra.mxu0 %v2627
  %2652 = vmatprep.subr.mxu0 0.0
  %2653 = vmatpush1.msra.mxu0 0.0
  %2654 = vmatprep.subr.mxu0 0.0
  %2655 = vmatpush1.msra.mxu0 0.0
  %2656 = vmatprep.subr.mxu0 0.0
  %2657 = vmatpush1.msra.mxu0 0.0
  %2658 = vmatprep.subr.mxu0 0.0
  %2659 = vmatpush1.msra.mxu0 0.0
  %2660 = vmatprep.subr.mxu0 0.0
  %2661 = vmatpush1.msra.mxu0 0.0
  %2662 = vmatprep.subr.mxu0 0.0
  %2663 = vmatpush1.msra.mxu0 0.0
  %2664 = vmatprep.subr.mxu0 0.0
  %2665 = vmatpush1.msra.mxu0 0.0
  %2666 = vmatprep.subr.mxu0 0.0
  %2667 = vmatpush1.msra.mxu0 0.0
  %2668 = vmatprep.subr.mxu0 0.0
  %2669 = vmatpush1.msra.mxu0 0.0
  %2670 = vmatprep.subr.mxu0 0.0
  %2671 = vmatpush1.msra.mxu0 0.0
  %2672 = vmatprep.subr.mxu0 0.0
  %2673 = vmatpush1.msra.mxu0 0.0
  %2674 = vmatprep.subr.mxu0 0.0
  %2675 = vmatpush1.msra.mxu0 0.0
  %2676 = vmatprep.subr.mxu0 0.0
  %2677 = vmatpush1.msra.mxu0 0.0
  %2678 = vmatprep.subr.mxu0 0.0
  %2679 = vmatpush1.msra.mxu0 0.0
  %2680 = vmatprep.subr.mxu0 0.0
  %2681 = vmatpush1.msra.mxu0 0.0
  %2682 = vmatprep.subr.mxu0 0.0
  %2683 = vmatpush1.msra.mxu0 0.0
  %2684 = vmatprep.subr.mxu0 0.0
  %2685 = vmatpush1.msra.mxu0 0.0
  %2686 = vmatprep.subr.mxu0 0.0
  %2687 = vmatpush1.msra.mxu0 0.0
  %2688 = vmatprep.subr.mxu0 0.0
  %2689 = vmatpush1.msra.mxu0 0.0
  %2690 = vmatprep.subr.mxu0 0.0
  %2691 = vmatpush1.msra.mxu0 0.0
  %2692 = vmatprep.subr.mxu0 0.0
  %2693 = vmatpush1.msra.mxu0 0.0
  %2694 = vmatprep.subr.mxu0 0.0
  %2695 = vmatpush1.msra.mxu0 0.0
  %2696 = vmatprep.subr.mxu0 0.0
  %2697 = vmatpush1.msra.mxu0 0.0
  %2698 = vmatprep.subr.mxu0 0.0
  %2699 = vmatpush1.msra.mxu0 0.0
  %2700 = vmatprep.subr.mxu0 0.0
  %2701 = vmatpush1.msra.mxu0 0.0
  %2702 = vmatprep.subr.mxu0 0.0
  %2703 = vmatpush1.msra.mxu0 0.0
  %2704 = vmatprep.subr.mxu0 0.0
  %2705 = vmatpush1.msra.mxu0 0.0
  %2706 = vmatprep.subr.mxu0 0.0
  %2707 = vmatpush1.msra.mxu0 0.0
  %2708 = vmatprep.mubr.f32.mxu0 0.0
  %2709 = vmatmul.mubr.f32.gmra.mrb[0].mxu0 %v2633
  %v2710 = vpop.f32.mrb[0].mxu0
  %v2711 = vadd.f32 0.0, %v2710
  %v2712 = vpop.f32.mrb[0].mxu0
  %2713 = vmatprep.mubr.f32.mxu0 0.0
  %2714 = vmatmul.mubr.f32.gmra.mrb[0].mxu0 %v2636
  %v2715 = vpop.f32.mrb[0].mxu0
  %v2716 = vadd.f32 0.0, %v2715
  %v2717 = vpop.f32.mrb[0].mxu0
  %2718 = vmatprep.mubr.f32.mxu0 0.0
  %2719 = vmatmul.mubr.f32.gmra.mrb[0].mxu0 %v2639
  %v2720 = vpop.f32.mrb[0].mxu0
  %v2721 = vadd.f32 0.0, %v2720
  %v2722 = vpop.f32.mrb[0].mxu0
  %2723 = vmatprep.mubr.f32.mxu0 0.0
  %2724 = vmatmul.mubr.f32.gmra.mrb[0].mxu0 %v2642
  %v2725 = vpop.f32.mrb[0].mxu0
  %v2726 = vadd.f32 0.0, %v2725
  %v2727 = vpop.f32.mrb[0].mxu0
  %2728 = vdwg.mxu0
  %2729 = vrot.lane.b32.xlu0 %v1905, 104
  %v2730 = vpop.permute.xlu0 %2729
  %2731 = vrot.lane.b32.xlu0 %v1910, 104
  %v2732 = vpop.permute.xlu0 %2731
  %2733 = vrot.lane.b32.xlu0 %v1915, 104
  %v2734 = vpop.permute.xlu0 %2733
  %2735 = vrot.lane.b32.xlu0 %v1920, 104
  %v2736 = vpop.permute.xlu0 %2735
  %2737 = vrot.lane.b32.xlu0 %v1905, 72
  %v2738 = vpop.permute.xlu0 %2737
  %2739 = vrot.lane.b32.xlu0 %v1910, 72
  %v2740 = vpop.permute.xlu0 %2739
  %2741 = vrot.lane.b32.xlu0 %v1915, 72
  %v2742 = vpop.permute.xlu0 %2741
  %2743 = vrot.lane.b32.xlu0 %v1920, 72
  %v2744 = vpop.permute.xlu0 %2743
  %v2745 = vsel %vm195, %v2730, 0
  %v2747 = vsel %vm195, %v2732, 0
  %v2749 = vsel %vm195, %v2734, 0
  %v2751 = vsel %vm195, %v2736, 0
  %v2753 = vsel %vm195, %v2738, 0
  %v2755 = vsel %vm195, %v2740, 0
  %v2757 = vsel %vm195, %v2742, 0
  %v2759 = vsel %vm195, %v2744, 0
  %2761 = vmatprep.subr.mxu0 0.0
  %2762 = vmatpush1.xpose.msra.mxu0 %v2753
  %2763 = vmatprep.subr.mxu0 0.0
  %2764 = vmatpush1.xpose.msra.mxu0 %v2755
  %2765 = vmatprep.subr.mxu0 0.0
  %2766 = vmatpush1.xpose.msra.mxu0 %v2757
  %2767 = vmatprep.subr.mxu0 0.0
  %2768 = vmatpush1.xpose.msra.mxu0 %v2759
  %2769 = vmatprep.subr.mxu0 0.0
  %2770 = vmatpush1.xpose.msra.mxu0 0.0
  %2771 = vmatprep.subr.mxu0 0.0
  %2772 = vmatpush1.xpose.msra.mxu0 0.0
  %2773 = vmatprep.subr.mxu0 0.0
  %2774 = vmatpush1.xpose.msra.mxu0 0.0
  %2775 = vmatprep.subr.mxu0 0.0
  %2776 = vmatpush1.xpose.msra.mxu0 0.0
  %2777 = vmatprep.subr.mxu0 0.0
  %2778 = vmatpush1.xpose.msra.mxu0 0.0
  %2779 = vmatprep.subr.mxu0 0.0
  %2780 = vmatpush1.xpose.msra.mxu0 0.0
  %2781 = vmatprep.subr.mxu0 0.0
  %2782 = vmatpush1.xpose.msra.mxu0 0.0
  %2783 = vmatprep.subr.mxu0 0.0
  %2784 = vmatpush1.xpose.msra.mxu0 0.0
  %2785 = vmatprep.subr.mxu0 0.0
  %2786 = vmatpush1.xpose.msra.mxu0 0.0
  %2787 = vmatprep.subr.mxu0 0.0
  %2788 = vmatpush1.xpose.msra.mxu0 0.0
  %2789 = vmatprep.subr.mxu0 0.0
  %2790 = vmatpush1.xpose.msra.mxu0 0.0
  %2791 = vmatprep.subr.mxu0 0.0
  %2792 = vmatpush1.xpose.msra.mxu0 0.0
  %2793 = vmatprep.subr.mxu0 0.0
  %2794 = vmatpush1.xpose.msra.mxu0 0.0
  %2795 = vmatprep.subr.mxu0 0.0
  %2796 = vmatpush1.xpose.msra.mxu0 0.0
  %2797 = vmatprep.subr.mxu0 0.0
  %2798 = vmatpush1.xpose.msra.mxu0 0.0
  %2799 = vmatprep.subr.mxu0 0.0
  %2800 = vmatpush1.xpose.msra.mxu0 0.0
  %2801 = vmatprep.subr.mxu0 0.0
  %2802 = vmatpush1.xpose.msra.mxu0 0.0
  %2803 = vmatprep.subr.mxu0 0.0
  %2804 = vmatpush1.xpose.msra.mxu0 0.0
  %2805 = vmatprep.subr.mxu0 0.0
  %2806 = vmatpush1.xpose.msra.mxu0 0.0
  %2807 = vmatprep.subr.mxu0 0.0
  %2808 = vmatpush1.xpose.msra.mxu0 0.0
  %2809 = vmatprep.subr.mxu0 0.0
  %2810 = vmatpush1.xpose.msra.mxu0 0.0
  %2811 = vmatprep.subr.mxu0 0.0
  %2812 = vmatpush1.xpose.msra.mxu0 0.0
  %2813 = vmatprep.subr.mxu0 0.0
  %2814 = vmatpush1.xpose.msra.mxu0 0.0
  %2815 = vmatprep.subr.mxu0 0.0
  %2816 = vmatpush1.xpose.msra.mxu0 0.0
  %2817 = vmatprep.subr.mxu0 0.0
  %2818 = vmatpush1.xpose.msra.mxu0 0.0
  %2819 = vmatprep.subr.mxu0 0.0
  %2820 = vmatpush1.xpose.msra.mxu0 0.0
  %2821 = vmatprep.subr.mxu0 0.0
  %2822 = vmatpush1.xpose.msra.mxu0 0.0
  %2823 = vmatprep.subr.mxu0 0.0
  %2824 = vmatpush1.xpose.msra.mxu0 0.0
  %2825 = vmatprep.mubr.f32.mxu0 0.0
  %2826 = vmatmul.mubr.f32.gmra.mrb[0].mxu0 %v2745
  %v2827 = vpop.f32.mrb[0].mxu0
  %v2828 = vadd.f32 %v52, %v2827
  %v2829 = vpop.f32.mrb[0].mxu0
  %2830 = vmatprep.mubr.f32.mxu0 0.0
  %2831 = vmatmul.mubr.f32.gmra.mrb[0].mxu0 %v2747
  %v2832 = vpop.f32.mrb[0].mxu0
  %v2833 = vadd.f32 %v53, %v2832
  %v2834 = vpop.f32.mrb[0].mxu0
  %2835 = vmatprep.mubr.f32.mxu0 0.0
  %2836 = vmatmul.mubr.f32.gmra.mrb[0].mxu0 %v2749
  %v2837 = vpop.f32.mrb[0].mxu0
  %v2838 = vadd.f32 %v54, %v2837
  %v2839 = vpop.f32.mrb[0].mxu0
  %2840 = vmatprep.mubr.f32.mxu0 0.0
  %2841 = vmatmul.mubr.f32.gmra.mrb[0].mxu0 %v2751
  %v2842 = vpop.f32.mrb[0].mxu0
  %v2843 = vadd.f32 %v55, %v2842
  %v2844 = vpop.f32.mrb[0].mxu0
  %2845 = vdwg.mxu0
  %v2846 = vsel %vm85, %v2828, -inf
  %2847 = vmax.xlane.f32.xlu0 %v2846
  %v2848 = vpop.xlane.xlu0 %2847
  %v2849 = vsel %vm85, %v2833, -inf
  %2850 = vmax.xlane.f32.xlu0 %v2849
  %v2851 = vpop.xlane.xlu0 %2850
  %v2852 = vsel %vm85, %v2838, -inf
  %2853 = vmax.xlane.f32.xlu0 %v2852
  %v2854 = vpop.xlane.xlu0 %2853
  %v2855 = vsel %vm85, %v2843, -inf
  %2856 = vmax.xlane.f32.xlu0 %v2855
  %v2857 = vpop.xlane.xlu0 %2856
  %v2858 = vsub.f32 %v2828, %v2848
  %v2859 = vsub.f32 %v2833, %v2851
  %v2860 = vsub.f32 %v2838, %v2854
  %v2861 = vsub.f32 %v2843, %v2857
  %v2862 = vmul.f32 %v2858, 1.442695
  %v2863 = vpow.pop %v2862
  %v2864 = vmul.f32 %v2859, 1.442695
  %v2865 = vpow.pop %v2864
  %v2866 = vmul.f32 %v2860, 1.442695
  %v2867 = vpow.pop %v2866
  %v2868 = vmul.f32 %v2861, 1.442695
  %v2869 = vpow.pop %v2868
  %v2870 = vsel %vm85, %v2863, 0.0
  %2871 = vadd.xlane.f32.xlu0 %v2870
  %v2872 = vpop.xlane.xlu0 %2871
  %v2873 = vsel %vm85, %v2865, 0.0
  %2874 = vadd.xlane.f32.xlu0 %v2873
  %v2875 = vpop.xlane.xlu0 %2874
  %v2876 = vsel %vm85, %v2867, 0.0
  %2877 = vadd.xlane.f32.xlu0 %v2876
  %v2878 = vpop.xlane.xlu0 %2877
  %v2879 = vsel %vm85, %v2869, 0.0
  %2880 = vadd.xlane.f32.xlu0 %v2879
  %v2881 = vpop.xlane.xlu0 %2880
  %v2882 = vrcp.pop %v2872
  %v2883 = vmul.f32 %v2863, %v2882
  %v2884 = vrcp.pop %v2875
  %v2885 = vmul.f32 %v2865, %v2884
  %v2886 = vrcp.pop %v2878
  %v2887 = vmul.f32 %v2867, %v2886
  %v2888 = vrcp.pop %v2881
  %v2889 = vmul.f32 %v2869, %v2888
  %2890 = vrot.lane.b32.xlu0 %v1905, 40
  %v2891 = vpop.permute.xlu0 %2890
  %2892 = vrot.lane.b32.xlu0 %v1910, 40
  %v2893 = vpop.permute.xlu0 %2892
  %2894 = vrot.lane.b32.xlu0 %v1915, 40
  %v2895 = vpop.permute.xlu0 %2894
  %2896 = vrot.lane.b32.xlu0 %v1920, 40
  %v2897 = vpop.permute.xlu0 %2896
  %v2903 = vsel %vm85, %v2883, 0
  %v2906 = vsel %vm85, %v2885, 0
  %v2909 = vsel %vm85, %v2887, 0
  %v2912 = vsel %vm85, %v2889, 0
  %2914 = vmatprep.subr.mxu0 0.0
  %2915 = vmatpush1.msra.mxu0 %v2891
  %2916 = vmatprep.subr.mxu0 0.0
  %2917 = vmatpush1.msra.mxu0 %v2893
  %2918 = vmatprep.subr.mxu0 0.0
  %2919 = vmatpush1.msra.mxu0 %v2895
  %2920 = vmatprep.subr.mxu0 0.0
  %2921 = vmatpush1.msra.mxu0 %v2897
  %2922 = vmatprep.subr.mxu0 0.0
  %2923 = vmatpush1.msra.mxu0 0.0
  %2924 = vmatprep.subr.mxu0 0.0
  %2925 = vmatpush1.msra.mxu0 0.0
  %2926 = vmatprep.subr.mxu0 0.0
  %2927 = vmatpush1.msra.mxu0 0.0
  %2928 = vmatprep.subr.mxu0 0.0
  %2929 = vmatpush1.msra.mxu0 0.0
  %2930 = vmatprep.subr.mxu0 0.0
  %2931 = vmatpush1.msra.mxu0 0.0
  %2932 = vmatprep.subr.mxu0 0.0
  %2933 = vmatpush1.msra.mxu0 0.0
  %2934 = vmatprep.subr.mxu0 0.0
  %2935 = vmatpush1.msra.mxu0 0.0
  %2936 = vmatprep.subr.mxu0 0.0
  %2937 = vmatpush1.msra.mxu0 0.0
  %2938 = vmatprep.subr.mxu0 0.0
  %2939 = vmatpush1.msra.mxu0 0.0
  %2940 = vmatprep.subr.mxu0 0.0
  %2941 = vmatpush1.msra.mxu0 0.0
  %2942 = vmatprep.subr.mxu0 0.0
  %2943 = vmatpush1.msra.mxu0 0.0
  %2944 = vmatprep.subr.mxu0 0.0
  %2945 = vmatpush1.msra.mxu0 0.0
  %2946 = vmatprep.subr.mxu0 0.0
  %2947 = vmatpush1.msra.mxu0 0.0
  %2948 = vmatprep.subr.mxu0 0.0
  %2949 = vmatpush1.msra.mxu0 0.0
  %2950 = vmatprep.subr.mxu0 0.0
  %2951 = vmatpush1.msra.mxu0 0.0
  %2952 = vmatprep.subr.mxu0 0.0
  %2953 = vmatpush1.msra.mxu0 0.0
  %2954 = vmatprep.subr.mxu0 0.0
  %2955 = vmatpush1.msra.mxu0 0.0
  %2956 = vmatprep.subr.mxu0 0.0
  %2957 = vmatpush1.msra.mxu0 0.0
  %2958 = vmatprep.subr.mxu0 0.0
  %2959 = vmatpush1.msra.mxu0 0.0
  %2960 = vmatprep.subr.mxu0 0.0
  %2961 = vmatpush1.msra.mxu0 0.0
  %2962 = vmatprep.subr.mxu0 0.0
  %2963 = vmatpush1.msra.mxu0 0.0
  %2964 = vmatprep.subr.mxu0 0.0
  %2965 = vmatpush1.msra.mxu0 0.0
  %2966 = vmatprep.subr.mxu0 0.0
  %2967 = vmatpush1.msra.mxu0 0.0
  %2968 = vmatprep.subr.mxu0 0.0
  %2969 = vmatpush1.msra.mxu0 0.0
  %2970 = vmatprep.subr.mxu0 0.0
  %2971 = vmatpush1.msra.mxu0 0.0
  %2972 = vmatprep.subr.mxu0 0.0
  %2973 = vmatpush1.msra.mxu0 0.0
  %2974 = vmatprep.subr.mxu0 0.0
  %2975 = vmatpush1.msra.mxu0 0.0
  %2976 = vmatprep.subr.mxu0 0.0
  %2977 = vmatpush1.msra.mxu0 0.0
  %2978 = vmatprep.mubr.f32.mxu0 0.0
  %2979 = vmatmul.mubr.f32.gmra.mrb[0].mxu0 %v2903
  %v2980 = vpop.f32.mrb[0].mxu0
  %v2981 = vadd.f32 0.0, %v2980
  %v2982 = vpop.f32.mrb[0].mxu0
  %2983 = vmatprep.mubr.f32.mxu0 0.0
  %2984 = vmatmul.mubr.f32.gmra.mrb[0].mxu0 %v2906
  %v2985 = vpop.f32.mrb[0].mxu0
  %v2986 = vadd.f32 0.0, %v2985
  %v2987 = vpop.f32.mrb[0].mxu0
  %2988 = vmatprep.mubr.f32.mxu0 0.0
  %2989 = vmatmul.mubr.f32.gmra.mrb[0].mxu0 %v2909
  %v2990 = vpop.f32.mrb[0].mxu0
  %v2991 = vadd.f32 0.0, %v2990
  %v2992 = vpop.f32.mrb[0].mxu0
  %2993 = vmatprep.mubr.f32.mxu0 0.0
  %2994 = vmatmul.mubr.f32.gmra.mrb[0].mxu0 %v2912
  %v2995 = vpop.f32.mrb[0].mxu0
  %v2996 = vadd.f32 0.0, %v2995
  %v2997 = vpop.f32.mrb[0].mxu0
  %2998 = vdwg.mxu0
  %3003 = vrot.lane.b32.xlu0 %v2441, 8
  %v3004 = vpop.permute.xlu0 %3003
  %3005 = vrot.lane.b32.xlu0 %v2446, 8
  %v3006 = vpop.permute.xlu0 %3005
  %3007 = vrot.lane.b32.xlu0 %v2451, 8
  %v3008 = vpop.permute.xlu0 %3007
  %3009 = vrot.lane.b32.xlu0 %v2456, 8
  %v3010 = vpop.permute.xlu0 %3009
  %3019 = vrot.lane.b32.xlu0 %v2711, 16
  %v3020 = vpop.permute.xlu0 %3019
  %3021 = vrot.lane.b32.xlu0 %v2716, 16
  %v3022 = vpop.permute.xlu0 %3021
  %3023 = vrot.lane.b32.xlu0 %v2721, 16
  %v3024 = vpop.permute.xlu0 %3023
  %3025 = vrot.lane.b32.xlu0 %v2726, 16
  %v3026 = vpop.permute.xlu0 %3025
  %3035 = vrot.lane.b32.xlu0 %v2981, 24
  %v3036 = vpop.permute.xlu0 %3035
  %3037 = vrot.lane.b32.xlu0 %v2986, 24
  %v3038 = vpop.permute.xlu0 %3037
  %3039 = vrot.lane.b32.xlu0 %v2991, 24
  %v3040 = vpop.permute.xlu0 %3039
  %3041 = vrot.lane.b32.xlu0 %v2996, 24
  %v3042 = vpop.permute.xlu0 %3041
  %v3047 = vsel %vm195, %v2171, %v3004
  %v3048 = vsel %vm195, %v2176, %v3006
  %v3049 = vsel %vm195, %v2181, %v3008
  %v3050 = vsel %vm195, %v2186, %v3010
  %v3051 = vsel %vm1312, %v3047, %v3020
  %v3052 = vsel %vm1312, %v3048, %v3022
  %v3053 = vsel %vm1312, %v3049, %v3024
  %v3054 = vsel %vm1312, %v3050, %v3026
  %v3055 = vsel %vm1317, %v3051, %v3036
  %v3056 = vsel %vm1317, %v3052, %v3038
  %v3057 = vsel %vm1317, %v3053, %v3040
  %v3058 = vsel %vm1317, %v3054, %v3042
  %v3059 = vlaneseq
  %v3060 = vshrl.u32 %v3059, 7
  %v3061 = vsub.s32 1, %v3060
  %v3062 = vrot.slane %v1821, %v3061
  %3067 = vrot.lane.b32.xlu0 %v1795, 32
  %v3068 = vpop.permute.xlu0 %3067
  %3069 = vrot.lane.b32.xlu0 %v1797, 32
  %v3070 = vpop.permute.xlu0 %3069
  %3071 = vrot.lane.b32.xlu0 %v1799, 32
  %v3072 = vpop.permute.xlu0 %3071
  %3073 = vrot.lane.b32.xlu0 %v1801, 32
  %v3074 = vpop.permute.xlu0 %3073
  %v3080 = vsel %vm85, %v3055, 0
  %v3083 = vsel %vm85, %v3056, 0
  %v3086 = vsel %vm85, %v3057, 0
  %v3089 = vsel %vm85, %v3058, 0
  %3091 = vmatprep.subr.mxu0 0.0
  %3092 = vmatpush1.msra.mxu0 %v3068
  %3093 = vmatprep.subr.mxu0 0.0
  %3094 = vmatpush1.msra.mxu0 %v3070
  %3095 = vmatprep.subr.mxu0 0.0
  %3096 = vmatpush1.msra.mxu0 %v3072
  %3097 = vmatprep.subr.mxu0 0.0
  %3098 = vmatpush1.msra.mxu0 %v3074
  %3099 = vmatprep.subr.mxu0 0.0
  %3100 = vmatpush1.msra.mxu0 0.0
  %3101 = vmatprep.subr.mxu0 0.0
  %3102 = vmatpush1.msra.mxu0 0.0
  %3103 = vmatprep.subr.mxu0 0.0
  %3104 = vmatpush1.msra.mxu0 0.0
  %3105 = vmatprep.subr.mxu0 0.0
  %3106 = vmatpush1.msra.mxu0 0.0
  %3107 = vmatprep.subr.mxu0 0.0
  %3108 = vmatpush1.msra.mxu0 0.0
  %3109 = vmatprep.subr.mxu0 0.0
  %3110 = vmatpush1.msra.mxu0 0.0
  %3111 = vmatprep.subr.mxu0 0.0
  %3112 = vmatpush1.msra.mxu0 0.0
  %3113 = vmatprep.subr.mxu0 0.0
  %3114 = vmatpush1.msra.mxu0 0.0
  %3115 = vmatprep.subr.mxu0 0.0
  %3116 = vmatpush1.msra.mxu0 0.0
  %3117 = vmatprep.subr.mxu0 0.0
  %3118 = vmatpush1.msra.mxu0 0.0
  %3119 = vmatprep.subr.mxu0 0.0
  %3120 = vmatpush1.msra.mxu0 0.0
  %3121 = vmatprep.subr.mxu0 0.0
  %3122 = vmatpush1.msra.mxu0 0.0
  %3123 = vmatprep.subr.mxu0 0.0
  %3124 = vmatpush1.msra.mxu0 0.0
  %3125 = vmatprep.subr.mxu0 0.0
  %3126 = vmatpush1.msra.mxu0 0.0
  %3127 = vmatprep.subr.mxu0 0.0
  %3128 = vmatpush1.msra.mxu0 0.0
  %3129 = vmatprep.subr.mxu0 0.0
  %3130 = vmatpush1.msra.mxu0 0.0
  %3131 = vmatprep.subr.mxu0 0.0
  %3132 = vmatpush1.msra.mxu0 0.0
  %3133 = vmatprep.subr.mxu0 0.0
  %3134 = vmatpush1.msra.mxu0 0.0
  %3135 = vmatprep.subr.mxu0 0.0
  %3136 = vmatpush1.msra.mxu0 0.0
  %3137 = vmatprep.subr.mxu0 0.0
  %3138 = vmatpush1.msra.mxu0 0.0
  %3139 = vmatprep.subr.mxu0 0.0
  %3140 = vmatpush1.msra.mxu0 0.0
  %3141 = vmatprep.subr.mxu0 0.0
  %3142 = vmatpush1.msra.mxu0 0.0
  %3143 = vmatprep.subr.mxu0 0.0
  %3144 = vmatpush1.msra.mxu0 0.0
  %3145 = vmatprep.subr.mxu0 0.0
  %3146 = vmatpush1.msra.mxu0 0.0
  %3147 = vmatprep.subr.mxu0 0.0
  %3148 = vmatpush1.msra.mxu0 0.0
  %3149 = vmatprep.subr.mxu0 0.0
  %3150 = vmatpush1.msra.mxu0 0.0
  %3151 = vmatprep.subr.mxu0 0.0
  %3152 = vmatpush1.msra.mxu0 0.0
  %3153 = vmatprep.subr.mxu0 0.0
  %3154 = vmatpush1.msra.mxu0 0.0
  %3155 = vmatprep.mubr.f32.mxu0 0.0
  %3156 = vmatmul.mubr.f32.gmra.mrb[0].mxu0 %v3080
  %v3157 = vpop.f32.mrb[0].mxu0
  %v3158 = vadd.f32 %v3062, %v3157
  %v3159 = vpop.f32.mrb[0].mxu0
  %3160 = vmatprep.mubr.f32.mxu0 0.0
  %3161 = vmatmul.mubr.f32.gmra.mrb[0].mxu0 %v3083
  %v3162 = vpop.f32.mrb[0].mxu0
  %v3163 = vadd.f32 %v3062, %v3162
  %v3164 = vpop.f32.mrb[0].mxu0
  %3165 = vmatprep.mubr.f32.mxu0 0.0
  %3166 = vmatmul.mubr.f32.gmra.mrb[0].mxu0 %v3086
  %v3167 = vpop.f32.mrb[0].mxu0
  %v3168 = vadd.f32 %v3062, %v3167
  %v3169 = vpop.f32.mrb[0].mxu0
  %3170 = vmatprep.mubr.f32.mxu0 0.0
  %3171 = vmatmul.mubr.f32.gmra.mrb[0].mxu0 %v3089
  %v3172 = vpop.f32.mrb[0].mxu0
  %v3173 = vadd.f32 %v3062, %v3172
  %v3174 = vpop.f32.mrb[0].mxu0
  %3175 = vdwg.mxu0
  %v3176 = vadd.f32 %v1790, %v3158
  %v3177 = vadd.f32 %v1791, %v3163
  %v3178 = vadd.f32 %v1792, %v3168
  %v3179 = vadd.f32 %v1793, %v3173
  %v3180 = vsel %vm85, %v3176, 0.0
  %3181 = vadd.xlane.f32.xlu0 %v3180
  %v3182 = vpop.xlane.xlu0 %3181
  %v3183 = vsel %vm85, %v3177, 0.0
  %3184 = vadd.xlane.f32.xlu0 %v3183
  %v3185 = vpop.xlane.xlu0 %3184
  %v3186 = vsel %vm85, %v3178, 0.0
  %3187 = vadd.xlane.f32.xlu0 %v3186
  %v3188 = vpop.xlane.xlu0 %3187
  %v3189 = vsel %vm85, %v3179, 0.0
  %3190 = vadd.xlane.f32.xlu0 %v3189
  %v3191 = vpop.xlane.xlu0 %3190
  %v3192 = vmul.f32 %v3182, %v1455
  %v3193 = vmul.f32 %v3185, %v1455
  %v3194 = vmul.f32 %v3188, %v1455
  %v3195 = vmul.f32 %v3191, %v1455
  %v3196 = vmul.f32 %v3176, %v3176
  %v3197 = vmul.f32 %v3177, %v3177
  %v3198 = vmul.f32 %v3178, %v3178
  %v3199 = vmul.f32 %v3179, %v3179
  %v3200 = vsel %vm85, %v3196, 0.0
  %3201 = vadd.xlane.f32.xlu0 %v3200
  %v3202 = vpop.xlane.xlu0 %3201
  %v3203 = vsel %vm85, %v3197, 0.0
  %3204 = vadd.xlane.f32.xlu0 %v3203
  %v3205 = vpop.xlane.xlu0 %3204
  %v3206 = vsel %vm85, %v3198, 0.0
  %3207 = vadd.xlane.f32.xlu0 %v3206
  %v3208 = vpop.xlane.xlu0 %3207
  %v3209 = vsel %vm85, %v3199, 0.0
  %3210 = vadd.xlane.f32.xlu0 %v3209
  %v3211 = vpop.xlane.xlu0 %3210
  %v3212 = vmul.f32 %v3202, %v1455
  %v3213 = vmul.f32 %v3205, %v1455
  %v3214 = vmul.f32 %v3208, %v1455
  %v3215 = vmul.f32 %v3211, %v1455
  %v3216 = vmul.f32 %v3192, %v3192
  %v3217 = vmul.f32 %v3193, %v3193
  %v3218 = vmul.f32 %v3194, %v3194
  %v3219 = vmul.f32 %v3195, %v3195
  %v3220 = vsub.f32 %v3212, %v3216
  %v3221 = vsub.f32 %v3213, %v3217
  %v3222 = vsub.f32 %v3214, %v3218
  %v3223 = vsub.f32 %v3215, %v3219
  %v3224 = vsub.f32 %v3176, %v3192
  %v3225 = vsub.f32 %v3177, %v3193
  %v3226 = vsub.f32 %v3178, %v3194
  %v3227 = vsub.f32 %v3179, %v3195
  %v3228 = vadd.f32 %v3220, 1e-05
  %v3229 = vadd.f32 %v3221, 1e-05
  %v3230 = vadd.f32 %v3222, 1e-05
  %v3231 = vadd.f32 %v3223, 1e-05
  %v3232 = vrsqrt.pop %v3228
  %v3233 = vrsqrt.pop %v3229
  %v3234 = vrsqrt.pop %v3230
  %v3235 = vrsqrt.pop %v3231
  %v3236 = vmul.f32 %v3224, %v3232
  %v3237 = vmul.f32 %v3225, %v3233
  %v3238 = vmul.f32 %v3226, %v3234
  %v3239 = vmul.f32 %v3227, %v3235
  %v3240 = vlaneseq
  %v3241 = vshrl.u32 %v3240, 7
  %v3242 = vsub.s32 4, %v3241
  %v3243 = vrot.slane %v1821, %v3242
  %v3244 = vmul.f32 %v3236, %v3243
  %v3245 = vmul.f32 %v3237, %v3243
  %v3246 = vmul.f32 %v3238, %v3243
  %v3247 = vmul.f32 %v3239, %v3243
  %v3248 = vlaneseq
  %v3249 = vshrl.u32 %v3248, 7
  %v3250 = vsub.s32 5, %v3249
  %v3251 = vrot.slane %v1821, %v3250
  %v3252 = vadd.f32 %v3244, %v3251
  %v3253 = vadd.f32 %v3245, %v3251
  %v3254 = vadd.f32 %v3246, %v3251
  %v3255 = vadd.f32 %v3247, %v3251
  %v3256 = vlaneseq
  %v3257 = vshrl.u32 %v3256, 7
  %v3258 = vsub.s32 2, %v3257
  %v3259 = vrot.slane %v1821, %v3258
  %v3261 = vsel %vm85, %v3252, 0
  %v3264 = vsel %vm85, %v3253, 0
  %v3267 = vsel %vm85, %v3254, 0
  %v3270 = vsel %vm85, %v3255, 0
  %3272 = vmatprep.subr.mxu0 0.0
  %3273 = vmatpush1.msra.mxu0 %v1796
  %3274 = vmatprep.subr.mxu0 0.0
  %3275 = vmatpush1.msra.mxu0 %v1798
  %3276 = vmatprep.subr.mxu0 0.0
  %3277 = vmatpush1.msra.mxu0 %v1800
  %3278 = vmatprep.subr.mxu0 0.0
  %3279 = vmatpush1.msra.mxu0 %v1802
  %3280 = vmatprep.subr.mxu0 0.0
  %3281 = vmatpush1.msra.mxu0 0.0
  %3282 = vmatprep.subr.mxu0 0.0
  %3283 = vmatpush1.msra.mxu0 0.0
  %3284 = vmatprep.subr.mxu0 0.0
  %3285 = vmatpush1.msra.mxu0 0.0
  %3286 = vmatprep.subr.mxu0 0.0
  %3287 = vmatpush1.msra.mxu0 0.0
  %3288 = vmatprep.subr.mxu0 0.0
  %3289 = vmatpush1.msra.mxu0 0.0
  %3290 = vmatprep.subr.mxu0 0.0
  %3291 = vmatpush1.msra.mxu0 0.0
  %3292 = vmatprep.subr.mxu0 0.0
  %3293 = vmatpush1.msra.mxu0 0.0
  %3294 = vmatprep.subr.mxu0 0.0
  %3295 = vmatpush1.msra.mxu0 0.0
  %3296 = vmatprep.subr.mxu0 0.0
  %3297 = vmatpush1.msra.mxu0 0.0
  %3298 = vmatprep.subr.mxu0 0.0
  %3299 = vmatpush1.msra.mxu0 0.0
  %3300 = vmatprep.subr.mxu0 0.0
  %3301 = vmatpush1.msra.mxu0 0.0
  %3302 = vmatprep.subr.mxu0 0.0
  %3303 = vmatpush1.msra.mxu0 0.0
  %3304 = vmatprep.subr.mxu0 0.0
  %3305 = vmatpush1.msra.mxu0 0.0
  %3306 = vmatprep.subr.mxu0 0.0
  %3307 = vmatpush1.msra.mxu0 0.0
  %3308 = vmatprep.subr.mxu0 0.0
  %3309 = vmatpush1.msra.mxu0 0.0
  %3310 = vmatprep.subr.mxu0 0.0
  %3311 = vmatpush1.msra.mxu0 0.0
  %3312 = vmatprep.subr.mxu0 0.0
  %3313 = vmatpush1.msra.mxu0 0.0
  %3314 = vmatprep.subr.mxu0 0.0
  %3315 = vmatpush1.msra.mxu0 0.0
  %3316 = vmatprep.subr.mxu0 0.0
  %3317 = vmatpush1.msra.mxu0 0.0
  %3318 = vmatprep.subr.mxu0 0.0
  %3319 = vmatpush1.msra.mxu0 0.0
  %3320 = vmatprep.subr.mxu0 0.0
  %3321 = vmatpush1.msra.mxu0 0.0
  %3322 = vmatprep.subr.mxu0 0.0
  %3323 = vmatpush1.msra.mxu0 0.0
  %3324 = vmatprep.subr.mxu0 0.0
  %3325 = vmatpush1.msra.mxu0 0.0
  %3326 = vmatprep.subr.mxu0 0.0
  %3327 = vmatpush1.msra.mxu0 0.0
  %3328 = vmatprep.subr.mxu0 0.0
  %3329 = vmatpush1.msra.mxu0 0.0
  %3330 = vmatprep.subr.mxu0 0.0
  %3331 = vmatpush1.msra.mxu0 0.0
  %3332 = vmatprep.subr.mxu0 0.0
  %3333 = vmatpush1.msra.mxu0 0.0
  %3334 = vmatprep.subr.mxu0 0.0
  %3335 = vmatpush1.msra.mxu0 0.0
  %3336 = vmatprep.mubr.f32.mxu0 0.0
  %3337 = vmatmul.mubr.f32.gmra.mrb[0].mxu0 %v3261
  %v3338 = vpop.f32.mrb[0].mxu0
  %v3339 = vadd.f32 %v3259, %v3338
  %v3340 = vpop.f32.mrb[0].mxu0
  %3341 = vmatprep.mubr.f32.mxu0 0.0
  %3342 = vmatmul.mubr.f32.gmra.mrb[0].mxu0 %v3264
  %v3343 = vpop.f32.mrb[0].mxu0
  %v3344 = vadd.f32 %v3259, %v3343
  %v3345 = vpop.f32.mrb[0].mxu0
  %3346 = vmatprep.mubr.f32.mxu0 0.0
  %3347 = vmatmul.mubr.f32.gmra.mrb[0].mxu0 %v3267
  %v3348 = vpop.f32.mrb[0].mxu0
  %v3349 = vadd.f32 %v3259, %v3348
  %v3350 = vpop.f32.mrb[0].mxu0
  %3351 = vmatprep.mubr.f32.mxu0 0.0
  %3352 = vmatmul.mubr.f32.gmra.mrb[0].mxu0 %v3270
  %v3353 = vpop.f32.mrb[0].mxu0
  %v3354 = vadd.f32 %v3259, %v3353
  %v3355 = vpop.f32.mrb[0].mxu0
  %3356 = vdwg.mxu0
  %v3357 = vmax.f32 %v3339, 0.0
  %v3358 = vmax.f32 %v3344, 0.0
  %v3359 = vmax.f32 %v3349, 0.0
  %v3360 = vmax.f32 %v3354, 0.0
  %v3361 = vlaneseq
  %v3362 = vshrl.u32 %v3361, 7
  %v3363 = vsub.s32 3, %v3362
  %v3364 = vrot.slane %v1821, %v3363
  %3365 = vmatprep.subr.mxu0 0.0
  %3366 = vmatpush1.msra.mxu0 %v1804
  %3367 = vmatprep.subr.mxu0 0.0
  %3368 = vmatpush1.msra.mxu0 %v1805
  %3369 = vmatprep.subr.mxu0 0.0
  %3370 = vmatpush1.msra.mxu0 %v1806
  %3371 = vmatprep.subr.mxu0 0.0
  %3372 = vmatpush1.msra.mxu0 %v1807
  %3373 = vmatprep.subr.mxu0 0.0
  %3374 = vmatpush1.msra.mxu0 %v1808
  %3375 = vmatprep.subr.mxu0 0.0
  %3376 = vmatpush1.msra.mxu0 %v1809
  %3377 = vmatprep.subr.mxu0 0.0
  %3378 = vmatpush1.msra.mxu0 %v1810
  %3379 = vmatprep.subr.mxu0 0.0
  %3380 = vmatpush1.msra.mxu0 %v1811
  %3381 = vmatprep.subr.mxu0 0.0
  %3382 = vmatpush1.msra.mxu0 %v1812
  %3383 = vmatprep.subr.mxu0 0.0
  %3384 = vmatpush1.msra.mxu0 %v1813
  %3385 = vmatprep.subr.mxu0 0.0
  %3386 = vmatpush1.msra.mxu0 %v1814
  %3387 = vmatprep.subr.mxu0 0.0
  %3388 = vmatpush1.msra.mxu0 %v1815
  %3389 = vmatprep.subr.mxu0 0.0
  %3390 = vmatpush1.msra.mxu0 %v1816
  %3391 = vmatprep.subr.mxu0 0.0
  %3392 = vmatpush1.msra.mxu0 %v1817
  %3393 = vmatprep.subr.mxu0 0.0
  %3394 = vmatpush1.msra.mxu0 %v1818
  %3395 = vmatprep.subr.mxu0 0.0
  %3396 = vmatpush1.msra.mxu0 %v1819
  %3397 = vmatprep.subr.mxu0 0.0
  %3398 = vmatpush1.msra.mxu0 0.0
  %3399 = vmatprep.subr.mxu0 0.0
  %3400 = vmatpush1.msra.mxu0 0.0
  %3401 = vmatprep.subr.mxu0 0.0
  %3402 = vmatpush1.msra.mxu0 0.0
  %3403 = vmatprep.subr.mxu0 0.0
  %3404 = vmatpush1.msra.mxu0 0.0
  %3405 = vmatprep.subr.mxu0 0.0
  %3406 = vmatpush1.msra.mxu0 0.0
  %3407 = vmatprep.subr.mxu0 0.0
  %3408 = vmatpush1.msra.mxu0 0.0
  %3409 = vmatprep.subr.mxu0 0.0
  %3410 = vmatpush1.msra.mxu0 0.0
  %3411 = vmatprep.subr.mxu0 0.0
  %3412 = vmatpush1.msra.mxu0 0.0
  %3413 = vmatprep.subr.mxu0 0.0
  %3414 = vmatpush1.msra.mxu0 0.0
  %3415 = vmatprep.subr.mxu0 0.0
  %3416 = vmatpush1.msra.mxu0 0.0
  %3417 = vmatprep.subr.mxu0 0.0
  %3418 = vmatpush1.msra.mxu0 0.0
  %3419 = vmatprep.subr.mxu0 0.0
  %3420 = vmatpush1.msra.mxu0 0.0
  %3421 = vmatprep.subr.mxu0 0.0
  %3422 = vmatpush1.msra.mxu0 0.0
  %3423 = vmatprep.subr.mxu0 0.0
  %3424 = vmatpush1.msra.mxu0 0.0
  %3425 = vmatprep.subr.mxu0 0.0
  %3426 = vmatpush1.msra.mxu0 0.0
  %3427 = vmatprep.subr.mxu0 0.0
  %3428 = vmatpush1.msra.mxu0 0.0
  %3429 = vmatprep.mubr.f32.mxu0 0.0
  %3430 = vmatmul.mubr.f32.gmra.mrb[0].mxu0 %v3357
  %v3431 = vpop.f32.mrb[0].mxu0
  %v3432 = vadd.f32 %v3364, %v3431
  %v3433 = vpop.f32.mrb[0].mxu0
  %3434 = vmatprep.mubr.f32.mxu0 0.0
  %3435 = vmatmul.mubr.f32.gmra.mrb[0].mxu0 %v3358
  %v3436 = vpop.f32.mrb[0].mxu0
  %v3437 = vadd.f32 %v3364, %v3436
  %v3438 = vpop.f32.mrb[0].mxu0
  %3439 = vmatprep.mubr.f32.mxu0 0.0
  %3440 = vmatmul.mubr.f32.gmra.mrb[0].mxu0 %v3359
  %v3441 = vpop.f32.mrb[0].mxu0
  %v3442 = vadd.f32 %v3364, %v3441
  %v3443 = vpop.f32.mrb[0].mxu0
  %3444 = vmatprep.mubr.f32.mxu0 0.0
  %3445 = vmatmul.mubr.f32.gmra.mrb[0].mxu0 %v3360
  %v3446 = vpop.f32.mrb[0].mxu0
  %v3447 = vadd.f32 %v3364, %v3446
  %v3448 = vpop.f32.mrb[0].mxu0
  %3449 = vdwg.mxu0
  %v3450 = vadd.f32 %v3252, %v3432
  %v3451 = vadd.f32 %v3253, %v3437
  %v3452 = vadd.f32 %v3254, %v3442
  %v3453 = vadd.f32 %v3255, %v3447
  %v3454 = vsel %vm85, %v3450, 0.0
  %3455 = vadd.xlane.f32.xlu0 %v3454
  %v3456 = vpop.xlane.xlu0 %3455
  %v3457 = vsel %vm85, %v3451, 0.0
  %3458 = vadd.xlane.f32.xlu0 %v3457
  %v3459 = vpop.xlane.xlu0 %3458
  %v3460 = vsel %vm85, %v3452, 0.0
  %3461 = vadd.xlane.f32.xlu0 %v3460
  %v3462 = vpop.xlane.xlu0 %3461
  %v3463 = vsel %vm85, %v3453, 0.0
  %3464 = vadd.xlane.f32.xlu0 %v3463
  %v3465 = vpop.xlane.xlu0 %3464
  %v3466 = vmul.f32 %v3456, %v1455
  %v3467 = vmul.f32 %v3459, %v1455
  %v3468 = vmul.f32 %v3462, %v1455
  %v3469 = vmul.f32 %v3465, %v1455
  %v3470 = vmul.f32 %v3450, %v3450
  %v3471 = vmul.f32 %v3451, %v3451
  %v3472 = vmul.f32 %v3452, %v3452
  %v3473 = vmul.f32 %v3453, %v3453
  %v3474 = vsel %vm85, %v3470, 0.0
  %3475 = vadd.xlane.f32.xlu0 %v3474
  %v3476 = vpop.xlane.xlu0 %3475
  %v3477 = vsel %vm85, %v3471, 0.0
  %3478 = vadd.xlane.f32.xlu0 %v3477
  %v3479 = vpop.xlane.xlu0 %3478
  %v3480 = vsel %vm85, %v3472, 0.0
  %3481 = vadd.xlane.f32.xlu0 %v3480
  %v3482 = vpop.xlane.xlu0 %3481
  %v3483 = vsel %vm85, %v3473, 0.0
  %3484 = vadd.xlane.f32.xlu0 %v3483
  %v3485 = vpop.xlane.xlu0 %3484
  %v3486 = vmul.f32 %v3476, %v1455
  %v3487 = vmul.f32 %v3479, %v1455
  %v3488 = vmul.f32 %v3482, %v1455
  %v3489 = vmul.f32 %v3485, %v1455
  %v3490 = vmul.f32 %v3466, %v3466
  %v3491 = vmul.f32 %v3467, %v3467
  %v3492 = vmul.f32 %v3468, %v3468
  %v3493 = vmul.f32 %v3469, %v3469
  %v3494 = vsub.f32 %v3486, %v3490
  %v3495 = vsub.f32 %v3487, %v3491
  %v3496 = vsub.f32 %v3488, %v3492
  %v3497 = vsub.f32 %v3489, %v3493
  %v3498 = vsub.f32 %v3450, %v3466
  %v3499 = vsub.f32 %v3451, %v3467
  %v3500 = vsub.f32 %v3452, %v3468
  %v3501 = vsub.f32 %v3453, %v3469
  %v3502 = vadd.f32 %v3494, 1e-05
  %v3503 = vadd.f32 %v3495, 1e-05
  %v3504 = vadd.f32 %v3496, 1e-05
  %v3505 = vadd.f32 %v3497, 1e-05
  %v3506 = vrsqrt.pop %v3502
  %v3507 = vrsqrt.pop %v3503
  %v3508 = vrsqrt.pop %v3504
  %v3509 = vrsqrt.pop %v3505
  %v3510 = vmul.f32 %v3498, %v3506
  %v3511 = vmul.f32 %v3499, %v3507
  %v3512 = vmul.f32 %v3500, %v3508
  %v3513 = vmul.f32 %v3501, %v3509
  %v3514 = vlaneseq
  %v3515 = vshrl.u32 %v3514, 7
  %v3516 = vsub.s32 6, %v3515
  %v3517 = vrot.slane %v1821, %v3516
  %v3518 = vmul.f32 %v3510, %v3517
  %v3519 = vmul.f32 %v3511, %v3517
  %v3520 = vmul.f32 %v3512, %v3517
  %v3521 = vmul.f32 %v3513, %v3517
  %v3522 = vlaneseq
  %v3523 = vshrl.u32 %v3522, 7
  %v3524 = vsub.s32 7, %v3523
  %v3525 = vrot.slane %v1821, %v3524
  %v3526 = vadd.f32 %v3518, %v3525
  %v3527 = vadd.f32 %v3519, %v3525
  %v3528 = vadd.f32 %v3520, %v3525
  %v3529 = vadd.f32 %v3521, %v3525
  %3530 = vst.msk [vmem:[%s6] sm:$0xff] %vm85, %v3526
  %3531 = vst.msk [vmem:[%s6 + $0x8] sm:$0xff] %vm85, %v3527
  %3532 = vst.msk [vmem:[%s6 + $0x10] sm:$0xff] %vm85, %v3528
  %3533 = vst.msk [vmem:[%s6 + $0x18] sm:$0xff] %vm85, %v3529
  // Predicated region
  $region26: #{graph_transformer_forward.1} parent=0 // pred_check
    _
  $region27: #{graph_transformer_forward.1} parent=0 // pred_check_branch
    %3535 = sbr.rel (0) target = $region29
  $region28: #{graph_transformer_forward.1} parent=0 // pred_region
    _
  $region29: #{graph_transformer_forward.1} parent=0 // pred_fallthru
    _
  // Predicated region
  $region30: #{graph_transformer_forward.1} parent=0 // pred_check
    _
  $region31: #{graph_transformer_forward.1} parent=0 // pred_check_branch
    %3537 = sbr.rel (0) target = $region33
  $region32: #{graph_transformer_forward.1} parent=0 // pred_region
    _
  $region33: #{graph_transformer_forward.1} parent=0 // pred_fallthru
    _

</llo_original>
